<compile_context>
chip_gen: v5e
topology: v5e:2x2
jax: 0.10.0
libtpu: 0.0.40
codegen_flags: <defaults>
</compile_context>

<pallas_src>
import functools

import jax
import jax.numpy as jnp
from jax.experimental import pallas as pl
from jax.experimental.pallas import tpu as pltpu

LANE = 128
SUBLANE_BF16 = 16   # bf16 sublane packing
TILE_B = 256        # default batch tile: fills a 256-tall MXU pass on v6e/v7x


def _round_up(n, m):
    return ((n + m - 1) // m) * m


def _cdiv(a, b):
    return (a + b - 1) // b


def _resident_spec(shape):
    """Whole-array block with a constant index_map: stays VMEM-resident across
    all batch-grid steps. Single-buffered (a second buffer would never be used)."""
    try:
        return pl.BlockSpec(shape, lambda i: (0,) * len(shape),
                            pipeline_mode=pl.Buffered(1))
    except Exception:  # older jax without pipeline_mode / Buffered
        return pl.BlockSpec(shape, lambda i: (0,) * len(shape))


def _choose_tiling(batch, requested_tile):
    """Pick (tile_b, num_steps). tile_b is a multiple of 16 (bf16 sublane pack)
    and the grid always has >= 2 steps so the 'parallel' batch axis can shard
    across both TensorCores on v7x."""
    requested_tile = max(SUBLANE_BF16,
                         (requested_tile // SUBLANE_BF16) * SUBLANE_BF16)
    if batch > 2 * requested_tile:
        return requested_tile, _cdiv(batch, requested_tile)
    tile = max(SUBLANE_BF16, _round_up(_cdiv(batch, 2), SUBLANE_BF16))
    return tile, 2


def _mlp_kernel(x_ref,
                w1_ref, b1_ref,
                w2_ref, b2_ref,
                w3_ref, b3_ref,
                w4_ref, b4_ref,
                w5_ref, b5_ref,
                w6_ref, b6_ref,
                o_ref):
    """Fused forward: 5x (Linear + ReLU) + final Linear.

    Layers 1-5: bf16 weights/activations, f32 MXU accumulation.
    Layer 6:    f32 weights/activations (tiny; tightens Q-value accuracy).
    """

    def layer(h, w_ref, b_ref, relu, out_dtype):
        y = jnp.dot(h, w_ref[...], preferred_element_type=jnp.float32)
        y = y + b_ref[...]                       # (1, out) f32 bias broadcast
        if relu:
            y = jnp.maximum(y, 0.0)
        return y.astype(out_dtype)

    h = x_ref[...]                                            # bf16 (tile_b, in_pad)
    h = layer(h, w1_ref, b1_ref, relu=True,  out_dtype=jnp.bfloat16)
    h = layer(h, w2_ref, b2_ref, relu=True,  out_dtype=jnp.bfloat16)
    h = layer(h, w3_ref, b3_ref, relu=True,  out_dtype=jnp.bfloat16)
    h = layer(h, w4_ref, b4_ref, relu=True,  out_dtype=jnp.bfloat16)
    h = layer(h, w5_ref, b5_ref, relu=True,  out_dtype=jnp.float32)   # feeds f32 layer 6
    h = layer(h, w6_ref, b6_ref, relu=False, out_dtype=jnp.float32)
    o_ref[...] = h


@functools.partial(jax.jit, static_argnames=("action_dim", "tile_b"))
def qnetwork_forward(x, kparams, *, action_dim, tile_b=TILE_B):
    """x: (batch, state_dim) f32. kparams: padded/cast params from prepare_kernel_params."""
    batch, state_dim = x.shape
    in_pad = kparams[0][0].shape[0]     # layer-1 contraction dim (multiple of 16)
    out_pad = kparams[-1][0].shape[1]   # lane-dense padded output width

    tile_eff, n_steps = _choose_tiling(batch, tile_b)
    b_pad = tile_eff * n_steps

    xp = jnp.pad(x.astype(jnp.bfloat16),
                 ((0, b_pad - batch), (0, in_pad - state_dim)))

    flat = []
    in_specs = [pl.BlockSpec((tile_eff, in_pad), lambda i: (i, 0))]
    for w, b in kparams:
        flat.extend([w, b])
        in_specs.append(_resident_spec(w.shape))
        in_specs.append(_resident_spec(b.shape))

    out_padded = pl.pallas_call(
        _mlp_kernel,
        out_shape=jax.ShapeDtypeStruct((b_pad, out_pad), jnp.float32),
        grid=(n_steps,),
        in_specs=in_specs,
        out_specs=pl.BlockSpec((tile_eff, out_pad), lambda i: (i, 0)),
        compiler_params=pltpu.CompilerParams(
            dimension_semantics=("parallel",),
            vmem_limit_bytes=32 << 20,
        ),
    )(xp, *flat)

    return out_padded[:batch, :action_dim]


def init_qnetwork_params(key, state_dim, action_dim, hidden=512):
    """PyTorch nn.Linear-style init (uniform +-1/sqrt(fan_in)); weights stored
    pre-transposed as (in_features, out_features), f32."""
    dims = [state_dim] + [hidden] * 5 + [action_dim]
    params = []
    for i in range(6):
        fan_in, fan_out = dims[i], dims[i + 1]
        key, wk, bk = jax.random.split(key, 3)
        bound = 1.0 / jnp.sqrt(jnp.float32(fan_in))
        w = jax.random.uniform(wk, (fan_in, fan_out), jnp.float32, -bound, bound)
        b = jax.random.uniform(bk, (1, fan_out), jnp.float32, -bound, bound)
        params.append((w, b))
    return params


def prepare_kernel_params(params, lane=LANE):
    """Pad layer boundaries for TPU tiling and cast to kernel dtypes.

    * Layer-1 input dim: padded only to a multiple of 16 (bf16 sublane pack),
      not 128 -> x stays narrow and layer 1 does no zero-K MXU work.
    * Hidden / output dims: padded to multiples of 128 lanes (lane-dense stores).
    * Layers 1-5 weights cast to bf16; final layer kept f32. Biases f32.
    Padding is semantically inert: padded rows/cols and padded biases are zero,
    so real outputs are unchanged."""
    n = len(params)
    kparams = []
    for idx, (w, b) in enumerate(params):
        fi, fo = w.shape
        fip = _round_up(fi, SUBLANE_BF16) if idx == 0 else _round_up(fi, lane)
        fop = _round_up(fo, lane)
        w_dtype = jnp.float32 if idx == n - 1 else jnp.bfloat16
        wp = jnp.zeros((fip, fop), jnp.float32).at[:fi, :fo].set(w).astype(w_dtype)
        bp = jnp.zeros((1, fop), jnp.float32).at[:, :fo].set(b)
        kparams.append((wp, bp))
    return kparams


def qnetwork_reference(x, params):
    """Pure-f32 reference matching the PyTorch module semantics."""
    h = x
    for i, (w, b) in enumerate(params):
        h = h @ w + b
        if i < len(params) - 1:
            h = jnp.maximum(h, 0.0)
    return h


if __name__ == "__main__":
    key = jax.random.PRNGKey(0)
    state_dim, action_dim, batch = 16, 4, 8

    pkey, xkey = jax.random.split(key)
    params = init_qnetwork_params(pkey, state_dim, action_dim, hidden=512)
    kparams = prepare_kernel_params(params)
    x = jax.random.normal(xkey, (batch, state_dim), jnp.float32)

    out = qnetwork_forward(x, kparams, action_dim=action_dim)
    out = jax.block_until_ready(out)

    ref = qnetwork_reference(x, params)
    assert out.shape == (batch, action_dim), out.shape
    # bf16 hidden layers (f32 MXU accumulation, f32 final layer) -> loose tolerance.
    assert jnp.allclose(out, ref, atol=5e-2, rtol=5e-2), "mismatch vs reference"

    print("KERNEL_OK")
</pallas_src>

<mosaic_0001>
module attributes {stable_mosaic.version = 11 : i64} {
  func.func @_mlp_kernel(%arg0: i32, %arg1: memref<16x16xbf16, #tpu.memory_space<vmem>>, %arg2: memref<16x512xbf16, #tpu.memory_space<vmem>>, %arg3: memref<1x512xf32, #tpu.memory_space<vmem>>, %arg4: memref<512x512xbf16, #tpu.memory_space<vmem>>, %arg5: memref<1x512xf32, #tpu.memory_space<vmem>>, %arg6: memref<512x512xbf16, #tpu.memory_space<vmem>>, %arg7: memref<1x512xf32, #tpu.memory_space<vmem>>, %arg8: memref<512x512xbf16, #tpu.memory_space<vmem>>, %arg9: memref<1x512xf32, #tpu.memory_space<vmem>>, %arg10: memref<512x512xbf16, #tpu.memory_space<vmem>>, %arg11: memref<1x512xf32, #tpu.memory_space<vmem>>, %arg12: memref<512x128xf32, #tpu.memory_space<vmem>>, %arg13: memref<1x128xf32, #tpu.memory_space<vmem>>, %arg14: memref<16x128xf32, #tpu.memory_space<vmem>>) attributes {dimension_semantics = [#tpu.dimension_semantics<parallel>], iteration_bounds = array<i64: 2>, scalar_prefetch = 0 : i64, scratch_operands = 0 : i64, tpu.core_type = #tpu.core_type<tc>, window_params = [{transform_indices = @transform_0, window_bounds = array<i64: 16, 16>}, {pipeline_mode = #tpu.pipeline_mode<synchronous>, transform_indices = @transform_1, window_bounds = array<i64: 16, 512>}, {pipeline_mode = #tpu.pipeline_mode<synchronous>, transform_indices = @transform_2, window_bounds = array<i64: 1, 512>}, {pipeline_mode = #tpu.pipeline_mode<synchronous>, transform_indices = @transform_3, window_bounds = array<i64: 512, 512>}, {pipeline_mode = #tpu.pipeline_mode<synchronous>, transform_indices = @transform_4, window_bounds = array<i64: 1, 512>}, {pipeline_mode = #tpu.pipeline_mode<synchronous>, transform_indices = @transform_5, window_bounds = array<i64: 512, 512>}, {pipeline_mode = #tpu.pipeline_mode<synchronous>, transform_indices = @transform_6, window_bounds = array<i64: 1, 512>}, {pipeline_mode = #tpu.pipeline_mode<synchronous>, transform_indices = @transform_7, window_bounds = array<i64: 512, 512>}, {pipeline_mode = #tpu.pipeline_mode<synchronous>, transform_indices = @transform_8, window_bounds = array<i64: 1, 512>}, {pipeline_mode = #tpu.pipeline_mode<synchronous>, transform_indices = @transform_9, window_bounds = array<i64: 512, 512>}, {pipeline_mode = #tpu.pipeline_mode<synchronous>, transform_indices = @transform_10, window_bounds = array<i64: 1, 512>}, {pipeline_mode = #tpu.pipeline_mode<synchronous>, transform_indices = @transform_11, window_bounds = array<i64: 512, 128>}, {pipeline_mode = #tpu.pipeline_mode<synchronous>, transform_indices = @transform_12, window_bounds = array<i64: 1, 128>}, {transform_indices = @transform_13, window_bounds = array<i64: 16, 128>}]} {
    %c0 = arith.constant 0 : index
    %c0_0 = arith.constant 0 : index
    %0 = vector.load %arg1[%c0, %c0_0] : memref<16x16xbf16, #tpu.memory_space<vmem>>, vector<16x16xbf16>
    %c0_1 = arith.constant 0 : index
    %c0_2 = arith.constant 0 : index
    %1 = vector.load %arg2[%c0_1, %c0_2] : memref<16x512xbf16, #tpu.memory_space<vmem>>, vector<16x512xbf16>
    %cst = arith.constant dense<0.000000e+00> : vector<16x512xf32>
    %2 = tpu.matmul %0, %1, %cst {dimension_numbers = #tpu.dot_dimension_numbers<[1], [0], [0], [1], [0, 0, 1, 1], [], []>} : vector<16x16xbf16>, vector<16x512xbf16>, vector<16x512xf32> -> vector<16x512xf32>
    %c0_3 = arith.constant 0 : index
    %c0_4 = arith.constant 0 : index
    %3 = vector.load %arg3[%c0_3, %c0_4] : memref<1x512xf32, #tpu.memory_space<vmem>>, vector<1x512xf32>
    %4 = vector.broadcast %3 : vector<1x512xf32> to vector<16x512xf32>
    %5 = arith.addf %2, %4 : vector<16x512xf32>
    %cst_5 = arith.constant 0.000000e+00 : f32
    %6 = vector.broadcast %cst_5 : f32 to vector<16x512xf32>
    %7 = arith.maximumf %5, %6 : vector<16x512xf32>
    %8 = arith.truncf %7 : vector<16x512xf32> to vector<16x512xbf16>
    %c0_6 = arith.constant 0 : index
    %c0_7 = arith.constant 0 : index
    %9 = vector.load %arg4[%c0_6, %c0_7] : memref<512x512xbf16, #tpu.memory_space<vmem>>, vector<512x512xbf16>
    %cst_8 = arith.constant dense<0.000000e+00> : vector<16x512xf32>
    %10 = tpu.matmul %8, %9, %cst_8 {dimension_numbers = #tpu.dot_dimension_numbers<[1], [0], [0], [1], [0, 0, 1, 1], [], []>} : vector<16x512xbf16>, vector<512x512xbf16>, vector<16x512xf32> -> vector<16x512xf32>
    %c0_9 = arith.constant 0 : index
    %c0_10 = arith.constant 0 : index
    %11 = vector.load %arg5[%c0_9, %c0_10] : memref<1x512xf32, #tpu.memory_space<vmem>>, vector<1x512xf32>
    %12 = vector.broadcast %11 : vector<1x512xf32> to vector<16x512xf32>
    %13 = arith.addf %10, %12 : vector<16x512xf32>
    %cst_11 = arith.constant 0.000000e+00 : f32
    %14 = vector.broadcast %cst_11 : f32 to vector<16x512xf32>
    %15 = arith.maximumf %13, %14 : vector<16x512xf32>
    %16 = arith.truncf %15 : vector<16x512xf32> to vector<16x512xbf16>
    %c0_12 = arith.constant 0 : index
    %c0_13 = arith.constant 0 : index
    %17 = vector.load %arg6[%c0_12, %c0_13] : memref<512x512xbf16, #tpu.memory_space<vmem>>, vector<512x512xbf16>
    %cst_14 = arith.constant dense<0.000000e+00> : vector<16x512xf32>
    %18 = tpu.matmul %16, %17, %cst_14 {dimension_numbers = #tpu.dot_dimension_numbers<[1], [0], [0], [1], [0, 0, 1, 1], [], []>} : vector<16x512xbf16>, vector<512x512xbf16>, vector<16x512xf32> -> vector<16x512xf32>
    %c0_15 = arith.constant 0 : index
    %c0_16 = arith.constant 0 : index
    %19 = vector.load %arg7[%c0_15, %c0_16] : memref<1x512xf32, #tpu.memory_space<vmem>>, vector<1x512xf32>
    %20 = vector.broadcast %19 : vector<1x512xf32> to vector<16x512xf32>
    %21 = arith.addf %18, %20 : vector<16x512xf32>
    %cst_17 = arith.constant 0.000000e+00 : f32
    %22 = vector.broadcast %cst_17 : f32 to vector<16x512xf32>
    %23 = arith.maximumf %21, %22 : vector<16x512xf32>
    %24 = arith.truncf %23 : vector<16x512xf32> to vector<16x512xbf16>
    %c0_18 = arith.constant 0 : index
    %c0_19 = arith.constant 0 : index
    %25 = vector.load %arg8[%c0_18, %c0_19] : memref<512x512xbf16, #tpu.memory_space<vmem>>, vector<512x512xbf16>
    %cst_20 = arith.constant dense<0.000000e+00> : vector<16x512xf32>
    %26 = tpu.matmul %24, %25, %cst_20 {dimension_numbers = #tpu.dot_dimension_numbers<[1], [0], [0], [1], [0, 0, 1, 1], [], []>} : vector<16x512xbf16>, vector<512x512xbf16>, vector<16x512xf32> -> vector<16x512xf32>
    %c0_21 = arith.constant 0 : index
    %c0_22 = arith.constant 0 : index
    %27 = vector.load %arg9[%c0_21, %c0_22] : memref<1x512xf32, #tpu.memory_space<vmem>>, vector<1x512xf32>
    %28 = vector.broadcast %27 : vector<1x512xf32> to vector<16x512xf32>
    %29 = arith.addf %26, %28 : vector<16x512xf32>
    %cst_23 = arith.constant 0.000000e+00 : f32
    %30 = vector.broadcast %cst_23 : f32 to vector<16x512xf32>
    %31 = arith.maximumf %29, %30 : vector<16x512xf32>
    %32 = arith.truncf %31 : vector<16x512xf32> to vector<16x512xbf16>
    %c0_24 = arith.constant 0 : index
    %c0_25 = arith.constant 0 : index
    %33 = vector.load %arg10[%c0_24, %c0_25] : memref<512x512xbf16, #tpu.memory_space<vmem>>, vector<512x512xbf16>
    %cst_26 = arith.constant dense<0.000000e+00> : vector<16x512xf32>
    %34 = tpu.matmul %32, %33, %cst_26 {dimension_numbers = #tpu.dot_dimension_numbers<[1], [0], [0], [1], [0, 0, 1, 1], [], []>} : vector<16x512xbf16>, vector<512x512xbf16>, vector<16x512xf32> -> vector<16x512xf32>
    %c0_27 = arith.constant 0 : index
    %c0_28 = arith.constant 0 : index
    %35 = vector.load %arg11[%c0_27, %c0_28] : memref<1x512xf32, #tpu.memory_space<vmem>>, vector<1x512xf32>
    %36 = vector.broadcast %35 : vector<1x512xf32> to vector<16x512xf32>
    %37 = arith.addf %34, %36 : vector<16x512xf32>
    %cst_29 = arith.constant 0.000000e+00 : f32
    %38 = vector.broadcast %cst_29 : f32 to vector<16x512xf32>
    %39 = arith.maximumf %37, %38 : vector<16x512xf32>
    %c0_30 = arith.constant 0 : index
    %c0_31 = arith.constant 0 : index
    %40 = vector.load %arg12[%c0_30, %c0_31] : memref<512x128xf32, #tpu.memory_space<vmem>>, vector<512x128xf32>
    %cst_32 = arith.constant dense<0.000000e+00> : vector<16x128xf32>
    %41 = tpu.matmul %39, %40, %cst_32 {dimension_numbers = #tpu.dot_dimension_numbers<[1], [0], [0], [1], [0, 0, 1, 1], [], []>} : vector<16x512xf32>, vector<512x128xf32>, vector<16x128xf32> -> vector<16x128xf32>
    %c0_33 = arith.constant 0 : index
    %c0_34 = arith.constant 0 : index
    %42 = vector.load %arg13[%c0_33, %c0_34] : memref<1x128xf32, #tpu.memory_space<vmem>>, vector<1x128xf32>
    %43 = vector.broadcast %42 : vector<1x128xf32> to vector<16x128xf32>
    %44 = arith.addf %41, %43 : vector<16x128xf32>
    %c0_35 = arith.constant 0 : index
    %c0_36 = arith.constant 0 : index
    %45 = vector.load %arg14[%c0_35, %c0_36] : memref<16x128xf32, #tpu.memory_space<vmem>>, vector<16x128xf32>
    tpu.vector_store %arg14[%c0_35, %c0_36], %44 {strides = array<i32>} : memref<16x128xf32, #tpu.memory_space<vmem>>, vector<16x128xf32>,
    return
  }
  func.func @transform_0(%arg0: i32) -> (i32, i32) {
    %c0_i32 = arith.constant 0 : i32
    %c0_i32_0 = arith.constant 0 : i32
    return %arg0, %c0_i32 : i32, i32
  }
  func.func @transform_1(%arg0: i32) -> (i32, i32) {
    %c0_i32 = arith.constant 0 : i32
    %c0_i32_0 = arith.constant 0 : i32
    %c0_i32_1 = arith.constant 0 : i32
    return %c0_i32, %c0_i32_0 : i32, i32
  }
  func.func @transform_2(%arg0: i32) -> (i32, i32) {
    %c0_i32 = arith.constant 0 : i32
    %c0_i32_0 = arith.constant 0 : i32
    %c0_i32_1 = arith.constant 0 : i32
    return %c0_i32, %c0_i32_0 : i32, i32
  }
  func.func @transform_3(%arg0: i32) -> (i32, i32) {
    %c0_i32 = arith.constant 0 : i32
    %c0_i32_0 = arith.constant 0 : i32
    %c0_i32_1 = arith.constant 0 : i32
    return %c0_i32, %c0_i32_0 : i32, i32
  }
  func.func @transform_4(%arg0: i32) -> (i32, i32) {
    %c0_i32 = arith.constant 0 : i32
    %c0_i32_0 = arith.constant 0 : i32
    %c0_i32_1 = arith.constant 0 : i32
    return %c0_i32, %c0_i32_0 : i32, i32
  }
  func.func @transform_5(%arg0: i32) -> (i32, i32) {
    %c0_i32 = arith.constant 0 : i32
    %c0_i32_0 = arith.constant 0 : i32
    %c0_i32_1 = arith.constant 0 : i32
    return %c0_i32, %c0_i32_0 : i32, i32
  }
  func.func @transform_6(%arg0: i32) -> (i32, i32) {
    %c0_i32 = arith.constant 0 : i32
    %c0_i32_0 = arith.constant 0 : i32
    %c0_i32_1 = arith.constant 0 : i32
    return %c0_i32, %c0_i32_0 : i32, i32
  }
  func.func @transform_7(%arg0: i32) -> (i32, i32) {
    %c0_i32 = arith.constant 0 : i32
    %c0_i32_0 = arith.constant 0 : i32
    %c0_i32_1 = arith.constant 0 : i32
    return %c0_i32, %c0_i32_0 : i32, i32
  }
  func.func @transform_8(%arg0: i32) -> (i32, i32) {
    %c0_i32 = arith.constant 0 : i32
    %c0_i32_0 = arith.constant 0 : i32
    %c0_i32_1 = arith.constant 0 : i32
    return %c0_i32, %c0_i32_0 : i32, i32
  }
  func.func @transform_9(%arg0: i32) -> (i32, i32) {
    %c0_i32 = arith.constant 0 : i32
    %c0_i32_0 = arith.constant 0 : i32
    %c0_i32_1 = arith.constant 0 : i32
    return %c0_i32, %c0_i32_0 : i32, i32
  }
  func.func @transform_10(%arg0: i32) -> (i32, i32) {
    %c0_i32 = arith.constant 0 : i32
    %c0_i32_0 = arith.constant 0 : i32
    %c0_i32_1 = arith.constant 0 : i32
    return %c0_i32, %c0_i32_0 : i32, i32
  }
  func.func @transform_11(%arg0: i32) -> (i32, i32) {
    %c0_i32 = arith.constant 0 : i32
    %c0_i32_0 = arith.constant 0 : i32
    %c0_i32_1 = arith.constant 0 : i32
    return %c0_i32, %c0_i32_0 : i32, i32
  }
  func.func @transform_12(%arg0: i32) -> (i32, i32) {
    %c0_i32 = arith.constant 0 : i32
    %c0_i32_0 = arith.constant 0 : i32
    %c0_i32_1 = arith.constant 0 : i32
    return %c0_i32, %c0_i32_0 : i32, i32
  }
  func.func @transform_13(%arg0: i32) -> (i32, i32) {
    %c0_i32 = arith.constant 0 : i32
    %c0_i32_0 = arith.constant 0 : i32
    return %arg0, %c0_i32 : i32, i32
  }
}

</mosaic_0001>

<llo_original>
// kernel: qnetwork_forward.1
$region0: #{qnetwork_forward.1}
  #allocation0 [shape = 'u32[]', space=smem, size = 0x4, offset = 0x4, fixed_abs, tag = 'smem constant byte address 0x4 - core index']
  #allocation1 [shape = 'u32[72,128]{1,0:T(1,128)}', space=vmem, size = 0x9000, scoped, tag = 'internal scratch']
  %s0 = inlined_call_operand.vmem [shape: bf16[32,16], index: 0, kind: input, shape index: {}]
  %s1 = inlined_call_operand.vmem [shape: bf16[16,512], index: 1, kind: input, shape index: {}]
  %s2 = inlined_call_operand.hbm [shape: f32[1,512], index: 2, kind: input, shape index: {}]
  %s3 = inlined_call_operand.hbm [shape: bf16[512,512], index: 3, kind: input, shape index: {}]
  %s4 = inlined_call_operand.vmem [shape: f32[1,512], index: 4, kind: input, shape index: {}]
  %s5 = inlined_call_operand.hbm [shape: bf16[512,512], index: 5, kind: input, shape index: {}]
  %s6 = inlined_call_operand.hbm [shape: f32[1,512], index: 6, kind: input, shape index: {}]
  %s7 = inlined_call_operand.hbm [shape: bf16[512,512], index: 7, kind: input, shape index: {}]
  %s8 = inlined_call_operand.vmem [shape: f32[1,512], index: 8, kind: input, shape index: {}]
  %s9 = inlined_call_operand.hbm [shape: bf16[512,512], index: 9, kind: input, shape index: {}]
  %s10 = inlined_call_operand.hbm [shape: f32[1,512], index: 10, kind: input, shape index: {}]
  %s11 = inlined_call_operand.hbm [shape: f32[512,128], index: 11, kind: input, shape index: {}]
  %s12 = inlined_call_operand.vmem [shape: f32[1,128], index: 12, kind: input, shape index: {}]
  %s13 = inlined_call_operand.vmem [shape: f32[32,128], index: 13, kind: output, shape index: {}]
  %s14 = sld [smem:[#allocation0]]
  $region117: #{qnetwork_forward.1} parent=0
    _
  %s16 = ssub.s32 1, %s14
  %s17 = scalar_select 0, %s16, %s14
  $region1: #{qnetwork_forward.1} parent=0
    #allocation2 [shape = 'u8[2048]{0}', space=vmem, size = 0x800, scoped, tag = 'input window, operand 2, single buffered']
    #allocation3 [shape = 's32[2]{0}', space=sflag, size = 0x8, scoped, tag = 'scoped memory for qnetwork_forward.1']
    #allocation4 [shape = 'u8[524288]{0}', space=vmem, size = 0x80000, scoped, tag = 'input window, operand 3, single buffered']
    #allocation5 [shape = 's32[1]{0}', space=sflag, size = 0x4, scoped, tag = 'scoped memory for qnetwork_forward.1']
    #allocation6 [shape = 'u8[524288]{0}', space=vmem, size = 0x80000, scoped, tag = 'input window, operand 5, single buffered']
    #allocation7 [shape = 'u8[2048]{0}', space=vmem, size = 0x800, scoped, tag = 'input window, operand 6, single buffered']
    #allocation8 [shape = 's32[1]{0}', space=sflag, size = 0x4, scoped, tag = 'scoped memory for qnetwork_forward.1']
    #allocation9 [shape = 'u8[524288]{0}', space=vmem, size = 0x80000, scoped, tag = 'input window, operand 7, single buffered']
    #allocation10 [shape = 'u8[524288]{0}', space=vmem, size = 0x80000, scoped, tag = 'input window, operand 9, single buffered']
    #allocation11 [shape = 's32[1]{0}', space=sflag, size = 0x4, scoped, tag = 'scoped memory for qnetwork_forward.1']
    #allocation12 [shape = 'u8[2048]{0}', space=vmem, size = 0x800, scoped, tag = 'input window, operand 10, single buffered']
    #allocation13 [shape = 'u8[262144]{0}', space=vmem, size = 0x40000, scoped, tag = 'input window, operand 11, single buffered']
    #allocation14 [shape = 's32[1]{0}', space=sflag, size = 0x4, scoped, tag = 'scoped memory for qnetwork_forward.1']
    %18 = vsyncpa [#allocation3], 0
    %19 = vsyncpa [#allocation5], 0
    %20 = vsyncpa [#allocation8], 0
    %21 = vsyncpa [#allocation11], 0
    %22 = vsyncpa [#allocation14], 0
    loop: start=0, step=1, limit=4
    $region2: #{qnetwork_forward.1} parent=1 // loop_pre_header
      _
    $region3: #{qnetwork_forward.1} parent=1 // loop_header
      %s24 = sphi 0, %s28
      %p25 = scmp.ge.s32.totalorder %s24, 4
      %s34 = sphi 0, %s36
      %s37 = sphi 0, %s34
      %s38 = sphi 0, %s37
      %s54 = sphi 0, %s38
      %s58 = sphi 0, %s58
      %s60 = sphi 0, %s58
      %s61 = sphi 0, %s60
      %s75 = sphi 0, %s61
      %s79 = sphi 0, %s79
      %s81 = sphi 0, %s79
      %s82 = sphi 0, %s81
      %s96 = sphi 0, %s82
      %s100 = sphi 0, %s100
      %s102 = sphi 0, %s100
      %s103 = sphi 0, %s102
      %s117 = sphi 0, %s103
      %s121 = sphi 0, %s121
      %s123 = sphi 0, %s121
      %s124 = sphi 0, %s123
      %s138 = sphi 0, %s124
      %s142 = sphi 0, %s142
      %s144 = sphi 0, %s142
      %s145 = sphi 0, %s144
      %s159 = sphi 0, %s145
      %s163 = sphi 0, %s163
      %s165 = sphi 0, %s163
      %s166 = sphi 0, %s165
      %s180 = sphi 0, %s166
      %s184 = sphi 0, %s184
      %s186 = sphi 0, %s184
      %s187 = sphi 0, %s186
      %s201 = sphi 0, %s187
      %s205 = sphi 0, %s205
      %s207 = sphi 0, %s205
      %s208 = sphi 0, %s207
      %s222 = sphi 0, %s208
      %s226 = sphi 0, %s226
      %s228 = sphi 0, %s226
      %s229 = sphi 0, %s228
      %s243 = sphi 0, %s229
      %s247 = sphi 0, %s247
      %s249 = sphi 0, %s247
      %s250 = sphi 0, %s249
      %s264 = sphi 0, %s250
      %s268 = sphi 0, %s268
      %s270 = sphi 0, %s268
      %s271 = sphi 0, %s270
      %s285 = sphi 0, %s271
      %s289 = sphi 0, %s289
      %s291 = sphi 0, %s289
      %s292 = sphi 0, %s291
      %s306 = sphi 0, %s292
      %s312 = sphi 0, %s314
      %s315 = sphi 0, %s312
      %s316 = sphi 0, %s315
      %s332 = sphi 0, %s316
    $region4: #{qnetwork_forward.1} parent=1 // loop_header_branch
      %27 = sbr.rel (%p25) target = $region8
    $region5: #{qnetwork_forward.1} parent=1 // loop_body
      %s29 = ssub.s32 %s24, 1
      %s30 = ssub.s32 %s24, 2
      %s31 = sadd.s32 %s24, 1
      %s32 = ssub.s32 %s24, %s31
      %p33 = scmp.eq.s32.totalorder %s32, 0
      %s35 = sadd.s32 %s34, 1
      %s36 = scalar_select %p33, %s34, %s35
      %p39 = pneg %p33
      %p40 = scmp.eq.s32.totalorder %s24, 1
      %p41 = por %p39, %p40
      %p42 = scmp.ne.s32.totalorder %s34, %s37
      %p43 = scmp.eq.s32.totalorder %s24, 0
      %p44 = por %p42, %p43
      %p45 = scmp.ne.s32.totalorder %s34, %s37
      %p46 = scmp.eq.s32.totalorder %s29, 1
      %p47 = por %p45, %p46
      %p48 = scmp.ne.s32.totalorder %s37, %s38
      %p49 = scmp.eq.s32.totalorder %s29, 0
      %p50 = por %p48, %p49
      %p51 = scmp.ne.s32.totalorder %s37, %s38
      %p52 = scmp.eq.s32.totalorder %s30, 1
      %p53 = por %p51, %p52
      %p55 = scmp.ne.s32.totalorder %s38, %s54
      %p56 = scmp.eq.s32.totalorder %s30, 0
      %p57 = por %p55, %p56
      %s59 = sadd.s32 %s58, 1
      %p62 = scmp.eq.s32.totalorder %s24, 1
      %p63 = scmp.ne.s32.totalorder %s58, %s60
      %p64 = scmp.eq.s32.totalorder %s24, 0
      %p65 = por %p63, %p64
      %p66 = scmp.ne.s32.totalorder %s58, %s60
      %p67 = scmp.eq.s32.totalorder %s29, 1
      %p68 = por %p66, %p67
      %p69 = scmp.ne.s32.totalorder %s60, %s61
      %p70 = scmp.eq.s32.totalorder %s29, 0
      %p71 = por %p69, %p70
      %p72 = scmp.ne.s32.totalorder %s60, %s61
      %p73 = scmp.eq.s32.totalorder %s30, 1
      %p74 = por %p72, %p73
      %p76 = scmp.ne.s32.totalorder %s61, %s75
      %p77 = scmp.eq.s32.totalorder %s30, 0
      %p78 = por %p76, %p77
      %s80 = sadd.s32 %s79, 1
      %p83 = scmp.eq.s32.totalorder %s24, 1
      %p84 = scmp.ne.s32.totalorder %s79, %s81
      %p85 = scmp.eq.s32.totalorder %s24, 0
      %p86 = por %p84, %p85
      %p87 = scmp.ne.s32.totalorder %s79, %s81
      %p88 = scmp.eq.s32.totalorder %s29, 1
      %p89 = por %p87, %p88
      %p90 = scmp.ne.s32.totalorder %s81, %s82
      %p91 = scmp.eq.s32.totalorder %s29, 0
      %p92 = por %p90, %p91
      %p93 = scmp.ne.s32.totalorder %s81, %s82
      %p94 = scmp.eq.s32.totalorder %s30, 1
      %p95 = por %p93, %p94
      %p97 = scmp.ne.s32.totalorder %s82, %s96
      %p98 = scmp.eq.s32.totalorder %s30, 0
      %p99 = por %p97, %p98
      %s101 = sadd.s32 %s100, 1
      %p104 = scmp.eq.s32.totalorder %s24, 1
      %p105 = scmp.ne.s32.totalorder %s100, %s102
      %p106 = scmp.eq.s32.totalorder %s24, 0
      %p107 = por %p105, %p106
      %p108 = scmp.ne.s32.totalorder %s100, %s102
      %p109 = scmp.eq.s32.totalorder %s29, 1
      %p110 = por %p108, %p109
      %p111 = scmp.ne.s32.totalorder %s102, %s103
      %p112 = scmp.eq.s32.totalorder %s29, 0
      %p113 = por %p111, %p112
      %p114 = scmp.ne.s32.totalorder %s102, %s103
      %p115 = scmp.eq.s32.totalorder %s30, 1
      %p116 = por %p114, %p115
      %p118 = scmp.ne.s32.totalorder %s103, %s117
      %p119 = scmp.eq.s32.totalorder %s30, 0
      %p120 = por %p118, %p119
      %s122 = sadd.s32 %s121, 1
      %p125 = scmp.eq.s32.totalorder %s24, 1
      %p126 = scmp.ne.s32.totalorder %s121, %s123
      %p127 = scmp.eq.s32.totalorder %s24, 0
      %p128 = por %p126, %p127
      %p129 = scmp.ne.s32.totalorder %s121, %s123
      %p130 = scmp.eq.s32.totalorder %s29, 1
      %p131 = por %p129, %p130
      %p132 = scmp.ne.s32.totalorder %s123, %s124
      %p133 = scmp.eq.s32.totalorder %s29, 0
      %p134 = por %p132, %p133
      %p135 = scmp.ne.s32.totalorder %s123, %s124
      %p136 = scmp.eq.s32.totalorder %s30, 1
      %p137 = por %p135, %p136
      %p139 = scmp.ne.s32.totalorder %s124, %s138
      %p140 = scmp.eq.s32.totalorder %s30, 0
      %p141 = por %p139, %p140
      %s143 = sadd.s32 %s142, 1
      %p146 = scmp.eq.s32.totalorder %s24, 1
      %p147 = scmp.ne.s32.totalorder %s142, %s144
      %p148 = scmp.eq.s32.totalorder %s24, 0
      %p149 = por %p147, %p148
      %p150 = scmp.ne.s32.totalorder %s142, %s144
      %p151 = scmp.eq.s32.totalorder %s29, 1
      %p152 = por %p150, %p151
      %p153 = scmp.ne.s32.totalorder %s144, %s145
      %p154 = scmp.eq.s32.totalorder %s29, 0
      %p155 = por %p153, %p154
      %p156 = scmp.ne.s32.totalorder %s144, %s145
      %p157 = scmp.eq.s32.totalorder %s30, 1
      %p158 = por %p156, %p157
      %p160 = scmp.ne.s32.totalorder %s145, %s159
      %p161 = scmp.eq.s32.totalorder %s30, 0
      %p162 = por %p160, %p161
      %s164 = sadd.s32 %s163, 1
      %p167 = scmp.eq.s32.totalorder %s24, 1
      %p168 = scmp.ne.s32.totalorder %s163, %s165
      %p169 = scmp.eq.s32.totalorder %s24, 0
      %p170 = por %p168, %p169
      %p171 = scmp.ne.s32.totalorder %s163, %s165
      %p172 = scmp.eq.s32.totalorder %s29, 1
      %p173 = por %p171, %p172
      %p174 = scmp.ne.s32.totalorder %s165, %s166
      %p175 = scmp.eq.s32.totalorder %s29, 0
      %p176 = por %p174, %p175
      %p177 = scmp.ne.s32.totalorder %s165, %s166
      %p178 = scmp.eq.s32.totalorder %s30, 1
      %p179 = por %p177, %p178
      %p181 = scmp.ne.s32.totalorder %s166, %s180
      %p182 = scmp.eq.s32.totalorder %s30, 0
      %p183 = por %p181, %p182
      %s185 = sadd.s32 %s184, 1
      %p188 = scmp.eq.s32.totalorder %s24, 1
      %p189 = scmp.ne.s32.totalorder %s184, %s186
      %p190 = scmp.eq.s32.totalorder %s24, 0
      %p191 = por %p189, %p190
      %p192 = scmp.ne.s32.totalorder %s184, %s186
      %p193 = scmp.eq.s32.totalorder %s29, 1
      %p194 = por %p192, %p193
      %p195 = scmp.ne.s32.totalorder %s186, %s187
      %p196 = scmp.eq.s32.totalorder %s29, 0
      %p197 = por %p195, %p196
      %p198 = scmp.ne.s32.totalorder %s186, %s187
      %p199 = scmp.eq.s32.totalorder %s30, 1
      %p200 = por %p198, %p199
      %p202 = scmp.ne.s32.totalorder %s187, %s201
      %p203 = scmp.eq.s32.totalorder %s30, 0
      %p204 = por %p202, %p203
      %s206 = sadd.s32 %s205, 1
      %p209 = scmp.eq.s32.totalorder %s24, 1
      %p210 = scmp.ne.s32.totalorder %s205, %s207
      %p211 = scmp.eq.s32.totalorder %s24, 0
      %p212 = por %p210, %p211
      %p213 = scmp.ne.s32.totalorder %s205, %s207
      %p214 = scmp.eq.s32.totalorder %s29, 1
      %p215 = por %p213, %p214
      %p216 = scmp.ne.s32.totalorder %s207, %s208
      %p217 = scmp.eq.s32.totalorder %s29, 0
      %p218 = por %p216, %p217
      %p219 = scmp.ne.s32.totalorder %s207, %s208
      %p220 = scmp.eq.s32.totalorder %s30, 1
      %p221 = por %p219, %p220
      %p223 = scmp.ne.s32.totalorder %s208, %s222
      %p224 = scmp.eq.s32.totalorder %s30, 0
      %p225 = por %p223, %p224
      %s227 = sadd.s32 %s226, 1
      %p230 = scmp.eq.s32.totalorder %s24, 1
      %p231 = scmp.ne.s32.totalorder %s226, %s228
      %p232 = scmp.eq.s32.totalorder %s24, 0
      %p233 = por %p231, %p232
      %p234 = scmp.ne.s32.totalorder %s226, %s228
      %p235 = scmp.eq.s32.totalorder %s29, 1
      %p236 = por %p234, %p235
      %p237 = scmp.ne.s32.totalorder %s228, %s229
      %p238 = scmp.eq.s32.totalorder %s29, 0
      %p239 = por %p237, %p238
      %p240 = scmp.ne.s32.totalorder %s228, %s229
      %p241 = scmp.eq.s32.totalorder %s30, 1
      %p242 = por %p240, %p241
      %p244 = scmp.ne.s32.totalorder %s229, %s243
      %p245 = scmp.eq.s32.totalorder %s30, 0
      %p246 = por %p244, %p245
      %s248 = sadd.s32 %s247, 1
      %p251 = scmp.eq.s32.totalorder %s24, 1
      %p252 = scmp.ne.s32.totalorder %s247, %s249
      %p253 = scmp.eq.s32.totalorder %s24, 0
      %p254 = por %p252, %p253
      %p255 = scmp.ne.s32.totalorder %s247, %s249
      %p256 = scmp.eq.s32.totalorder %s29, 1
      %p257 = por %p255, %p256
      %p258 = scmp.ne.s32.totalorder %s249, %s250
      %p259 = scmp.eq.s32.totalorder %s29, 0
      %p260 = por %p258, %p259
      %p261 = scmp.ne.s32.totalorder %s249, %s250
      %p262 = scmp.eq.s32.totalorder %s30, 1
      %p263 = por %p261, %p262
      %p265 = scmp.ne.s32.totalorder %s250, %s264
      %p266 = scmp.eq.s32.totalorder %s30, 0
      %p267 = por %p265, %p266
      %s269 = sadd.s32 %s268, 1
      %p272 = scmp.eq.s32.totalorder %s24, 1
      %p273 = scmp.ne.s32.totalorder %s268, %s270
      %p274 = scmp.eq.s32.totalorder %s24, 0
      %p275 = por %p273, %p274
      %p276 = scmp.ne.s32.totalorder %s268, %s270
      %p277 = scmp.eq.s32.totalorder %s29, 1
      %p278 = por %p276, %p277
      %p279 = scmp.ne.s32.totalorder %s270, %s271
      %p280 = scmp.eq.s32.totalorder %s29, 0
      %p281 = por %p279, %p280
      %p282 = scmp.ne.s32.totalorder %s270, %s271
      %p283 = scmp.eq.s32.totalorder %s30, 1
      %p284 = por %p282, %p283
      %p286 = scmp.ne.s32.totalorder %s271, %s285
      %p287 = scmp.eq.s32.totalorder %s30, 0
      %p288 = por %p286, %p287
      %s290 = sadd.s32 %s289, 1
      %p293 = scmp.eq.s32.totalorder %s24, 1
      %p294 = scmp.ne.s32.totalorder %s289, %s291
      %p295 = scmp.eq.s32.totalorder %s24, 0
      %p296 = por %p294, %p295
      %p297 = scmp.ne.s32.totalorder %s289, %s291
      %p298 = scmp.eq.s32.totalorder %s29, 1
      %p299 = por %p297, %p298
      %p300 = scmp.ne.s32.totalorder %s291, %s292
      %p301 = scmp.eq.s32.totalorder %s29, 0
      %p302 = por %p300, %p301
      %p303 = scmp.ne.s32.totalorder %s291, %s292
      %p304 = scmp.eq.s32.totalorder %s30, 1
      %p305 = por %p303, %p304
      %p307 = scmp.ne.s32.totalorder %s292, %s306
      %p308 = scmp.eq.s32.totalorder %s30, 0
      %p309 = por %p307, %p308
      %s310 = ssub.s32 %s24, %s31
      %p311 = scmp.eq.s32.totalorder %s310, 0
      %s313 = sadd.s32 %s312, 1
      %s314 = scalar_select %p311, %s312, %s313
      %p317 = pneg %p311
      %p318 = scmp.eq.s32.totalorder %s24, 1
      %p319 = por %p317, %p318
      %p320 = scmp.ne.s32.totalorder %s312, %s315
      %p321 = scmp.eq.s32.totalorder %s24, 0
      %p322 = por %p320, %p321
      %p323 = scmp.ne.s32.totalorder %s312, %s315
      %p324 = scmp.eq.s32.totalorder %s29, 1
      %p325 = por %p323, %p324
      %p326 = scmp.ne.s32.totalorder %s315, %s316
      %p327 = scmp.eq.s32.totalorder %s29, 0
      %p328 = por %p326, %p327
      %p329 = scmp.ne.s32.totalorder %s315, %s316
      %p330 = scmp.eq.s32.totalorder %s30, 1
      %p331 = por %p329, %p330
      %p333 = scmp.ne.s32.totalorder %s316, %s332
      %p334 = scmp.eq.s32.totalorder %s30, 0
      %p335 = por %p333, %p334
      %p336 = scmp.le.s32.totalorder 1, %s24
      %p337 = scmp.lt.s32.totalorder %s24, 3
      %p338 = pnand %p336, %p337
      %p339 = pneg %p338
      // Predicated region
      $region9: #{qnetwork_forward.1} parent=5 // pred_check
        _
      $region10: #{qnetwork_forward.1} parent=5 // pred_check_branch
        %341 = sbr.rel (%p338) target = $region12
      $region11: #{qnetwork_forward.1} parent=5 // pred_region
        %s342 = ssub.s32 %s24, 1
        // Predicated region
        $region13: #{qnetwork_forward.1} parent=11 // pred_check
          %p343 = pneg %p71
        $region14: #{qnetwork_forward.1} parent=11 // pred_check_branch
          %345 = sbr.rel (%p343) target = $region16
        $region15: #{qnetwork_forward.1} parent=11 // pred_region
          _
        $region16: #{qnetwork_forward.1} parent=11 // pred_fallthru
          _
        // Predicated region
        $region17: #{qnetwork_forward.1} parent=11 // pred_check
          %p346 = pneg %p92
        $region18: #{qnetwork_forward.1} parent=11 // pred_check_branch
          %348 = sbr.rel (%p346) target = $region20
        $region19: #{qnetwork_forward.1} parent=11 // pred_region
          %350 = vsyncadd [#allocation3], 0
          %s352 = sshll.u32 %s2, 4
          %s353 = int_to_ptr.hbm [resolvable:$true] %s352
          %s354 = sshll.u32 [#allocation2], 4
          %s355 = int_to_ptr.vmem [resolvable:$true] %s354
          %357 = dma.hbm_to_vmem [thread:$0]  %s353, 64, %s355, [#allocation3]
        $region20: #{qnetwork_forward.1} parent=11 // pred_fallthru
          _
        // Predicated region
        $region21: #{qnetwork_forward.1} parent=11 // pred_check
          %p358 = pneg %p113
        $region22: #{qnetwork_forward.1} parent=11 // pred_check_branch
          %360 = sbr.rel (%p358) target = $region24
        $region23: #{qnetwork_forward.1} parent=11 // pred_region
          %362 = vsyncadd [#allocation5], 0
          %s363 = sshll.u32 %s3, 4
          %s364 = int_to_ptr.hbm [resolvable:$true] %s363
          %s365 = sshll.u32 [#allocation4], 4
          %s366 = int_to_ptr.vmem [resolvable:$true] %s365
          %371 = dma.hbm_to_vmem [thread:$0]  %s364, 16384, %s366, [#allocation5], 256, 256, 16
        $region24: #{qnetwork_forward.1} parent=11 // pred_fallthru
          _
        // Predicated region
        $region25: #{qnetwork_forward.1} parent=11 // pred_check
          %p372 = pneg %p134
        $region26: #{qnetwork_forward.1} parent=11 // pred_check_branch
          %374 = sbr.rel (%p372) target = $region28
        $region27: #{qnetwork_forward.1} parent=11 // pred_region
          _
        $region28: #{qnetwork_forward.1} parent=11 // pred_fallthru
          _
        // Predicated region
        $region29: #{qnetwork_forward.1} parent=11 // pred_check
          %p375 = pneg %p155
        $region30: #{qnetwork_forward.1} parent=11 // pred_check_branch
          %377 = sbr.rel (%p375) target = $region32
        $region31: #{qnetwork_forward.1} parent=11 // pred_region
          %379 = vsyncadd [#allocation5], 0
          %s380 = sshll.u32 %s5, 4
          %s381 = int_to_ptr.hbm [resolvable:$true] %s380
          %s382 = sshll.u32 [#allocation6], 4
          %s383 = int_to_ptr.vmem [resolvable:$true] %s382
          %388 = dma.hbm_to_vmem [thread:$0]  %s381, 16384, %s383, [#allocation5], 256, 256, 16
        $region32: #{qnetwork_forward.1} parent=11 // pred_fallthru
          _
        // Predicated region
        $region33: #{qnetwork_forward.1} parent=11 // pred_check
          %p389 = pneg %p176
        $region34: #{qnetwork_forward.1} parent=11 // pred_check_branch
          %391 = sbr.rel (%p389) target = $region36
        $region35: #{qnetwork_forward.1} parent=11 // pred_region
          %393 = vsyncadd [#allocation8], 0
          %s395 = sshll.u32 %s6, 4
          %s396 = int_to_ptr.hbm [resolvable:$true] %s395
          %s397 = sshll.u32 [#allocation7], 4
          %s398 = int_to_ptr.vmem [resolvable:$true] %s397
          %400 = dma.hbm_to_vmem [thread:$0]  %s396, 64, %s398, [#allocation8]
        $region36: #{qnetwork_forward.1} parent=11 // pred_fallthru
          _
        // Predicated region
        $region37: #{qnetwork_forward.1} parent=11 // pred_check
          %p401 = pneg %p197
        $region38: #{qnetwork_forward.1} parent=11 // pred_check_branch
          %403 = sbr.rel (%p401) target = $region40
        $region39: #{qnetwork_forward.1} parent=11 // pred_region
          %405 = vsyncadd [#allocation8], 0
          %s406 = sshll.u32 %s7, 4
          %s407 = int_to_ptr.hbm [resolvable:$true] %s406
          %s408 = sshll.u32 [#allocation9], 4
          %s409 = int_to_ptr.vmem [resolvable:$true] %s408
          %414 = dma.hbm_to_vmem [thread:$0]  %s407, 16384, %s409, [#allocation8], 256, 256, 16
        $region40: #{qnetwork_forward.1} parent=11 // pred_fallthru
          _
        // Predicated region
        $region41: #{qnetwork_forward.1} parent=11 // pred_check
          %p415 = pneg %p218
        $region42: #{qnetwork_forward.1} parent=11 // pred_check_branch
          %417 = sbr.rel (%p415) target = $region44
        $region43: #{qnetwork_forward.1} parent=11 // pred_region
          _
        $region44: #{qnetwork_forward.1} parent=11 // pred_fallthru
          _
        // Predicated region
        $region45: #{qnetwork_forward.1} parent=11 // pred_check
          %p418 = pneg %p239
        $region46: #{qnetwork_forward.1} parent=11 // pred_check_branch
          %420 = sbr.rel (%p418) target = $region48
        $region47: #{qnetwork_forward.1} parent=11 // pred_region
          %422 = vsyncadd [#allocation11], 0
          %s423 = sshll.u32 %s9, 4
          %s424 = int_to_ptr.hbm [resolvable:$true] %s423
          %s425 = sshll.u32 [#allocation10], 4
          %s426 = int_to_ptr.vmem [resolvable:$true] %s425
          %431 = dma.hbm_to_vmem [thread:$0]  %s424, 16384, %s426, [#allocation11], 256, 256, 16
        $region48: #{qnetwork_forward.1} parent=11 // pred_fallthru
          _
        // Predicated region
        $region49: #{qnetwork_forward.1} parent=11 // pred_check
          %p432 = pneg %p260
        $region50: #{qnetwork_forward.1} parent=11 // pred_check_branch
          %434 = sbr.rel (%p432) target = $region52
        $region51: #{qnetwork_forward.1} parent=11 // pred_region
          %436 = vsyncadd [#allocation11], 0
          %s438 = sshll.u32 %s10, 4
          %s439 = int_to_ptr.hbm [resolvable:$true] %s438
          %s440 = sshll.u32 [#allocation12], 4
          %s441 = int_to_ptr.vmem [resolvable:$true] %s440
          %443 = dma.hbm_to_vmem [thread:$0]  %s439, 64, %s441, [#allocation11]
        $region52: #{qnetwork_forward.1} parent=11 // pred_fallthru
          _
        // Predicated region
        $region53: #{qnetwork_forward.1} parent=11 // pred_check
          %p444 = pneg %p281
        $region54: #{qnetwork_forward.1} parent=11 // pred_check_branch
          %446 = sbr.rel (%p444) target = $region56
        $region55: #{qnetwork_forward.1} parent=11 // pred_region
          %448 = vsyncadd [#allocation14], 0
          %s449 = sshll.u32 %s11, 4
          %s450 = int_to_ptr.hbm [resolvable:$true] %s449
          %s451 = sshll.u32 [#allocation13], 4
          %s452 = int_to_ptr.vmem [resolvable:$true] %s451
          %457 = dma.hbm_to_vmem [thread:$0]  %s450, 8192, %s452, [#allocation14], 128, 128, 8
        $region56: #{qnetwork_forward.1} parent=11 // pred_fallthru
          _
        // Predicated region
        $region57: #{qnetwork_forward.1} parent=11 // pred_check
          %p458 = pneg %p302
        $region58: #{qnetwork_forward.1} parent=11 // pred_check_branch
          %460 = sbr.rel (%p458) target = $region60
        $region59: #{qnetwork_forward.1} parent=11 // pred_region
          _
        $region60: #{qnetwork_forward.1} parent=11 // pred_fallthru
          _
      $region12: #{qnetwork_forward.1} parent=5 // pred_fallthru
        _
      %p461 = scmp.lt.s32.totalorder %s24, 2
      // Predicated region
      $region61: #{qnetwork_forward.1} parent=5 // pred_check
        %p462 = pneg %p461
      $region62: #{qnetwork_forward.1} parent=5 // pred_check_branch
        %464 = sbr.rel (%p462) target = $region64
      $region63: #{qnetwork_forward.1} parent=5 // pred_region
        // Predicated region
        $region65: #{qnetwork_forward.1} parent=63 // pred_check
          %p465 = pneg %p44
        $region66: #{qnetwork_forward.1} parent=63 // pred_check_branch
          %467 = sbr.rel (%p465) target = $region68
        $region67: #{qnetwork_forward.1} parent=63 // pred_region
          %s468 = smul.u32 2, %s24
          %p469 = scmp.lt.s32.totalorder %s468, 3
          %s470 = scalar_select %p469, %s468, 3
          %s471 = smul.addr %s470, 4
          %s472 = scalar_lea.vmem %s0, %s471
          %s473 = smul.u32 2, %s24
        $region68: #{qnetwork_forward.1} parent=63 // pred_fallthru
          _
      $region64: #{qnetwork_forward.1} parent=5 // pred_fallthru
        _
      %p474 = scmp.le.s32.totalorder 1, %s24
      %p475 = scmp.lt.s32.totalorder %s24, 3
      %p476 = pnand %p474, %p475
      %p477 = pneg %p476
      // Predicated region
      $region69: #{qnetwork_forward.1} parent=5 // pred_check
        _
      $region70: #{qnetwork_forward.1} parent=5 // pred_check_branch
        %479 = sbr.rel (%p476) target = $region72
      $region71: #{qnetwork_forward.1} parent=5 // pred_region
        %s480 = ssub.s32 %s24, 1
        // Predicated region
        $region73: #{qnetwork_forward.1} parent=71 // pred_check
          %p481 = pneg %p92
        $region74: #{qnetwork_forward.1} parent=71 // pred_check_branch
          %483 = sbr.rel (%p481) target = $region76
        $region75: #{qnetwork_forward.1} parent=71 // pred_region
          %485 = dma.done [#allocation3], 64
        $region76: #{qnetwork_forward.1} parent=71 // pred_fallthru
          _
        // Predicated region
        $region77: #{qnetwork_forward.1} parent=71 // pred_check
          %p486 = pneg %p113
        $region78: #{qnetwork_forward.1} parent=71 // pred_check_branch
          %488 = sbr.rel (%p486) target = $region80
        $region79: #{qnetwork_forward.1} parent=71 // pred_region
          %490 = dma.done [#allocation5], 16384
        $region80: #{qnetwork_forward.1} parent=71 // pred_fallthru
          _
        // Predicated region
        $region81: #{qnetwork_forward.1} parent=71 // pred_check
          %p491 = pneg %p155
        $region82: #{qnetwork_forward.1} parent=71 // pred_check_branch
          %493 = sbr.rel (%p491) target = $region84
        $region83: #{qnetwork_forward.1} parent=71 // pred_region
          %495 = dma.done [#allocation5], 16384
        $region84: #{qnetwork_forward.1} parent=71 // pred_fallthru
          _
        // Predicated region
        $region85: #{qnetwork_forward.1} parent=71 // pred_check
          %p496 = pneg %p176
        $region86: #{qnetwork_forward.1} parent=71 // pred_check_branch
          %498 = sbr.rel (%p496) target = $region88
        $region87: #{qnetwork_forward.1} parent=71 // pred_region
          %500 = dma.done [#allocation8], 64
        $region88: #{qnetwork_forward.1} parent=71 // pred_fallthru
          _
        // Predicated region
        $region89: #{qnetwork_forward.1} parent=71 // pred_check
          %p501 = pneg %p197
        $region90: #{qnetwork_forward.1} parent=71 // pred_check_branch
          %503 = sbr.rel (%p501) target = $region92
        $region91: #{qnetwork_forward.1} parent=71 // pred_region
          %505 = dma.done [#allocation8], 16384
        $region92: #{qnetwork_forward.1} parent=71 // pred_fallthru
          _
        // Predicated region
        $region93: #{qnetwork_forward.1} parent=71 // pred_check
          %p506 = pneg %p239
        $region94: #{qnetwork_forward.1} parent=71 // pred_check_branch
          %508 = sbr.rel (%p506) target = $region96
        $region95: #{qnetwork_forward.1} parent=71 // pred_region
          %510 = dma.done [#allocation11], 16384
        $region96: #{qnetwork_forward.1} parent=71 // pred_fallthru
          _
        // Predicated region
        $region97: #{qnetwork_forward.1} parent=71 // pred_check
          %p511 = pneg %p260
        $region98: #{qnetwork_forward.1} parent=71 // pred_check_branch
          %513 = sbr.rel (%p511) target = $region100
        $region99: #{qnetwork_forward.1} parent=71 // pred_region
          %515 = dma.done [#allocation11], 64
        $region100: #{qnetwork_forward.1} parent=71 // pred_fallthru
          _
        // Predicated region
        $region101: #{qnetwork_forward.1} parent=71 // pred_check
          %p516 = pneg %p281
        $region102: #{qnetwork_forward.1} parent=71 // pred_check_branch
          %518 = sbr.rel (%p516) target = $region104
        $region103: #{qnetwork_forward.1} parent=71 // pred_region
          %520 = dma.done [#allocation14], 8192
        $region104: #{qnetwork_forward.1} parent=71 // pred_fallthru
          _
        %s521 = smul.u32 2, %s29
        %p522 = scmp.lt.s32.totalorder %s521, 3
        %s523 = scalar_select %p522, %s521, 3
        %s524 = smul.addr %s523, 4
        %s525 = scalar_lea.vmem %s0, %s524
        %p526 = pneg %p50
        %p527 = pneg %p47
        %p528 = pneg %p71
        %p529 = pneg %p68
        %p530 = pneg %p92
        %p531 = pneg %p89
        %p532 = pneg %p113
        %p533 = pneg %p110
        %p534 = pneg %p134
        %p535 = pneg %p131
        %p536 = pneg %p155
        %p537 = pneg %p152
        %p538 = pneg %p176
        %p539 = pneg %p173
        %p540 = pneg %p197
        %p541 = pneg %p194
        %p542 = pneg %p218
        %p543 = pneg %p215
        %p544 = pneg %p239
        %p545 = pneg %p236
        %p546 = pneg %p260
        %p547 = pneg %p257
        %p548 = pneg %p281
        %p549 = pneg %p278
        %p550 = pneg %p302
        %p551 = pneg %p299
        %p552 = pneg %p328
        %p553 = pneg %p325
        %s554 = smul.u32 2, %s29
        %p555 = scmp.lt.s32.totalorder %s554, 3
        %s556 = scalar_select %p555, %s554, 3
        %s557 = smul.addr %s556, 8
        %s558 = scalar_lea.vmem %s13, %s557
        %s559 = smul.u32 2, %s29
        %p560 = scmp.lt.s32.totalorder %s559, 3
        %s561 = scalar_select %p560, %s559, 3
        %s562 = smul.addr %s561, 4
        %s563 = scalar_lea.vmem %s0, %s562
        %s564 = smul.u32 2, %s29
        %s565 = smul.u32 2, %s29
        %p566 = scmp.lt.s32.totalorder %s565, 3
        %s567 = scalar_select %p566, %s565, 3
        %s568 = smul.addr %s567, 8
        %s569 = scalar_lea.vmem %s13, %s568
        %s570 = smul.u32 2, %s29
        %v572 = vld [vmem:[%s563] sm:$0xf]
        %v573 = vld [vmem:[%s563 + $0x4] sm:$0xf]
        %v574 = vld [vmem:[%s1] sm:$0xff]
        %v575 = vld [vmem:[%s1 + $0x8] sm:$0xff]
        %v576 = vld [vmem:[%s1 + $0x10] sm:$0xff]
        %v577 = vld [vmem:[%s1 + $0x18] sm:$0xff]
        %v578 = vld [vmem:[#allocation2] sm:$0xf]
        %v580 = vperm.slane %v578, 0
        %v581 = vperm.slane %v578, 1
        %v582 = vperm.slane %v578, 2
        %v583 = vperm.slane %v578, 3
        %v590 = vunpack.c.l.b16 %v572
        %v591 = vunpack.c.l.b16 %v573
        %v592 = vpack.c.b16 %v591, %v590
        %v597 = vunpack.c.l.b16 %v574
        %v598 = vunpack.c.h.b16 %v574
        %v599 = vunpack.c.l.b16 %v575
        %v600 = vunpack.c.h.b16 %v575
        %v601 = vunpack.c.l.b16 %v576
        %v602 = vunpack.c.h.b16 %v576
        %v603 = vunpack.c.l.b16 %v577
        %v604 = vunpack.c.h.b16 %v577
        %v605 = vpack.c.b16 %v601, %v597
        %v606 = vpack.c.b16 %v602, %v598
        %v607 = vpack.c.b16 %v603, %v599
        %v608 = vpack.c.b16 %v604, %v600
        %vm613 = vcmask 130048
        %v615 = vsel %vm613, %v592, 0
        %617 = vmatpush.bf16.msra.mxu0 0
        %618 = vmatpush.bf16.msra.mxu0 0
        %619 = vmatpush.bf16.msra.mxu0 0
        %620 = vmatpush.bf16.msra.mxu0 0
        %621 = vmatpush.bf16.msra.mxu0 0
        %622 = vmatpush.bf16.msra.mxu0 0
        %623 = vmatpush.bf16.msra.mxu0 0
        %624 = vmatpush.bf16.msra.mxu0 %v605
        %625 = vmatmul.bf16.gmra.mxu0 %v615
        %v626 = vpop.f32.mrf.mxu0
        %v627 = vadd.f32 %v580, %v626
        %v628 = vpop.f32.mrf.mxu0
        %v629 = vadd.f32 %v580, %v628
        %630 = vdwg.mxu0
        %631 = vmatpush.bf16.msra.mxu0 0
        %632 = vmatpush.bf16.msra.mxu0 0
        %633 = vmatpush.bf16.msra.mxu0 0
        %634 = vmatpush.bf16.msra.mxu0 0
        %635 = vmatpush.bf16.msra.mxu0 0
        %636 = vmatpush.bf16.msra.mxu0 0
        %637 = vmatpush.bf16.msra.mxu0 0
        %638 = vmatpush.bf16.msra.mxu0 %v606
        %639 = vmatmul.bf16.gmra.mxu0 %v615
        %v640 = vpop.f32.mrf.mxu0
        %v641 = vadd.f32 %v581, %v640
        %v642 = vpop.f32.mrf.mxu0
        %v643 = vadd.f32 %v581, %v642
        %644 = vdwg.mxu0
        %645 = vmatpush.bf16.msra.mxu0 0
        %646 = vmatpush.bf16.msra.mxu0 0
        %647 = vmatpush.bf16.msra.mxu0 0
        %648 = vmatpush.bf16.msra.mxu0 0
        %649 = vmatpush.bf16.msra.mxu0 0
        %650 = vmatpush.bf16.msra.mxu0 0
        %651 = vmatpush.bf16.msra.mxu0 0
        %652 = vmatpush.bf16.msra.mxu0 %v607
        %653 = vmatmul.bf16.gmra.mxu0 %v615
        %v654 = vpop.f32.mrf.mxu0
        %v655 = vadd.f32 %v582, %v654
        %v656 = vpop.f32.mrf.mxu0
        %v657 = vadd.f32 %v582, %v656
        %658 = vdwg.mxu0
        %659 = vmatpush.bf16.msra.mxu0 0
        %660 = vmatpush.bf16.msra.mxu0 0
        %661 = vmatpush.bf16.msra.mxu0 0
        %662 = vmatpush.bf16.msra.mxu0 0
        %663 = vmatpush.bf16.msra.mxu0 0
        %664 = vmatpush.bf16.msra.mxu0 0
        %665 = vmatpush.bf16.msra.mxu0 0
        %666 = vmatpush.bf16.msra.mxu0 %v608
        %667 = vmatmul.bf16.gmra.mxu0 %v615
        %v668 = vpop.f32.mrf.mxu0
        %v669 = vadd.f32 %v583, %v668
        %v670 = vpop.f32.mrf.mxu0
        %v671 = vadd.f32 %v583, %v670
        %672 = vdwg.mxu0
        %v673 = vmax.f32 %v627, 0.0
        %v674 = vmax.f32 %v641, 0.0
        %v675 = vmax.f32 %v655, 0.0
        %v676 = vmax.f32 %v669, 0.0
        %v677 = vmax.f32 %v629, 0.0
        %v678 = vmax.f32 %v643, 0.0
        %v679 = vmax.f32 %v657, 0.0
        %v680 = vmax.f32 %v671, 0.0
        %v681 = vpack.c.bf16 %v677, %v673
        %v682 = vpack.c.bf16 %v678, %v674
        %v683 = vpack.c.bf16 %v679, %v675
        %v684 = vpack.c.bf16 %v680, %v676
        %v685 = vld [vmem:[#allocation4] sm:$0xff]
        %v686 = vld [vmem:[#allocation4 + $0x8] sm:$0xff]
        %v687 = vld [vmem:[#allocation4 + $0x10] sm:$0xff]
        %v688 = vld [vmem:[#allocation4 + $0x18] sm:$0xff]
        %v689 = vld [vmem:[#allocation4 + $0x20] sm:$0xff]
        %v690 = vld [vmem:[#allocation4 + $0x28] sm:$0xff]
        %v691 = vld [vmem:[#allocation4 + $0x30] sm:$0xff]
        %v692 = vld [vmem:[#allocation4 + $0x38] sm:$0xff]
        %v693 = vld [vmem:[#allocation4 + $0x40] sm:$0xff]
        %v694 = vld [vmem:[#allocation4 + $0x48] sm:$0xff]
        %v695 = vld [vmem:[#allocation4 + $0x50] sm:$0xff]
        %v696 = vld [vmem:[#allocation4 + $0x58] sm:$0xff]
        %v697 = vld [vmem:[#allocation4 + $0x60] sm:$0xff]
        %v698 = vld [vmem:[#allocation4 + $0x68] sm:$0xff]
        %v699 = vld [vmem:[#allocation4 + $0x70] sm:$0xff]
        %v700 = vld [vmem:[#allocation4 + $0x78] sm:$0xff]
        %v701 = vld [vmem:[#allocation4 + $0x80] sm:$0xff]
        %v702 = vld [vmem:[#allocation4 + $0x88] sm:$0xff]
        %v703 = vld [vmem:[#allocation4 + $0x90] sm:$0xff]
        %v704 = vld [vmem:[#allocation4 + $0x98] sm:$0xff]
        %v705 = vld [vmem:[#allocation4 + $0xa0] sm:$0xff]
        %v706 = vld [vmem:[#allocation4 + $0xa8] sm:$0xff]
        %v707 = vld [vmem:[#allocation4 + $0xb0] sm:$0xff]
        %v708 = vld [vmem:[#allocation4 + $0xb8] sm:$0xff]
        %v709 = vld [vmem:[#allocation4 + $0xc0] sm:$0xff]
        %v710 = vld [vmem:[#allocation4 + $0xc8] sm:$0xff]
        %v711 = vld [vmem:[#allocation4 + $0xd0] sm:$0xff]
        %v712 = vld [vmem:[#allocation4 + $0xd8] sm:$0xff]
        %v713 = vld [vmem:[#allocation4 + $0xe0] sm:$0xff]
        %v714 = vld [vmem:[#allocation4 + $0xe8] sm:$0xff]
        %v715 = vld [vmem:[#allocation4 + $0xf0] sm:$0xff]
        %v716 = vld [vmem:[#allocation4 + $0xf8] sm:$0xff]
        %v717 = vld [vmem:[#allocation4 + $0x100] sm:$0xff]
        %v718 = vld [vmem:[#allocation4 + $0x108] sm:$0xff]
        %v719 = vld [vmem:[#allocation4 + $0x110] sm:$0xff]
        %v720 = vld [vmem:[#allocation4 + $0x118] sm:$0xff]
        %v721 = vld [vmem:[#allocation4 + $0x120] sm:$0xff]
        %v722 = vld [vmem:[#allocation4 + $0x128] sm:$0xff]
        %v723 = vld [vmem:[#allocation4 + $0x130] sm:$0xff]
        %v724 = vld [vmem:[#allocation4 + $0x138] sm:$0xff]
        %v725 = vld [vmem:[#allocation4 + $0x140] sm:$0xff]
        %v726 = vld [vmem:[#allocation4 + $0x148] sm:$0xff]
        %v727 = vld [vmem:[#allocation4 + $0x150] sm:$0xff]
        %v728 = vld [vmem:[#allocation4 + $0x158] sm:$0xff]
        %v729 = vld [vmem:[#allocation4 + $0x160] sm:$0xff]
        %v730 = vld [vmem:[#allocation4 + $0x168] sm:$0xff]
        %v731 = vld [vmem:[#allocation4 + $0x170] sm:$0xff]
        %v732 = vld [vmem:[#allocation4 + $0x178] sm:$0xff]
        %v733 = vld [vmem:[#allocation4 + $0x180] sm:$0xff]
        %v734 = vld [vmem:[#allocation4 + $0x188] sm:$0xff]
        %v735 = vld [vmem:[#allocation4 + $0x190] sm:$0xff]
        %v736 = vld [vmem:[#allocation4 + $0x198] sm:$0xff]
        %v737 = vld [vmem:[#allocation4 + $0x1a0] sm:$0xff]
        %v738 = vld [vmem:[#allocation4 + $0x1a8] sm:$0xff]
        %v739 = vld [vmem:[#allocation4 + $0x1b0] sm:$0xff]
        %v740 = vld [vmem:[#allocation4 + $0x1b8] sm:$0xff]
        %v741 = vld [vmem:[#allocation4 + $0x1c0] sm:$0xff]
        %v742 = vld [vmem:[#allocation4 + $0x1c8] sm:$0xff]
        %v743 = vld [vmem:[#allocation4 + $0x1d0] sm:$0xff]
        %v744 = vld [vmem:[#allocation4 + $0x1d8] sm:$0xff]
        %v745 = vld [vmem:[#allocation4 + $0x1e0] sm:$0xff]
        %v746 = vld [vmem:[#allocation4 + $0x1e8] sm:$0xff]
        %v747 = vld [vmem:[#allocation4 + $0x1f0] sm:$0xff]
        %v748 = vld [vmem:[#allocation4 + $0x1f8] sm:$0xff]
        %v749 = vld [vmem:[#allocation4 + $0x200] sm:$0xff]
        %v750 = vld [vmem:[#allocation4 + $0x208] sm:$0xff]
        %v751 = vld [vmem:[#allocation4 + $0x210] sm:$0xff]
        %v752 = vld [vmem:[#allocation4 + $0x218] sm:$0xff]
        %v753 = vld [vmem:[#allocation4 + $0x220] sm:$0xff]
        %v754 = vld [vmem:[#allocation4 + $0x228] sm:$0xff]
        %v755 = vld [vmem:[#allocation4 + $0x230] sm:$0xff]
        %v756 = vld [vmem:[#allocation4 + $0x238] sm:$0xff]
        %v757 = vld [vmem:[#allocation4 + $0x240] sm:$0xff]
        %v758 = vld [vmem:[#allocation4 + $0x248] sm:$0xff]
        %v759 = vld [vmem:[#allocation4 + $0x250] sm:$0xff]
        %v760 = vld [vmem:[#allocation4 + $0x258] sm:$0xff]
        %v761 = vld [vmem:[#allocation4 + $0x260] sm:$0xff]
        %v762 = vld [vmem:[#allocation4 + $0x268] sm:$0xff]
        %v763 = vld [vmem:[#allocation4 + $0x270] sm:$0xff]
        %v764 = vld [vmem:[#allocation4 + $0x278] sm:$0xff]
        %v765 = vld [vmem:[#allocation4 + $0x280] sm:$0xff]
        %v766 = vld [vmem:[#allocation4 + $0x288] sm:$0xff]
        %v767 = vld [vmem:[#allocation4 + $0x290] sm:$0xff]
        %v768 = vld [vmem:[#allocation4 + $0x298] sm:$0xff]
        %v769 = vld [vmem:[#allocation4 + $0x2a0] sm:$0xff]
        %v770 = vld [vmem:[#allocation4 + $0x2a8] sm:$0xff]
        %v771 = vld [vmem:[#allocation4 + $0x2b0] sm:$0xff]
        %v772 = vld [vmem:[#allocation4 + $0x2b8] sm:$0xff]
        %v773 = vld [vmem:[#allocation4 + $0x2c0] sm:$0xff]
        %v774 = vld [vmem:[#allocation4 + $0x2c8] sm:$0xff]
        %v775 = vld [vmem:[#allocation4 + $0x2d0] sm:$0xff]
        %v776 = vld [vmem:[#allocation4 + $0x2d8] sm:$0xff]
        %v777 = vld [vmem:[#allocation4 + $0x2e0] sm:$0xff]
        %v778 = vld [vmem:[#allocation4 + $0x2e8] sm:$0xff]
        %v779 = vld [vmem:[#allocation4 + $0x2f0] sm:$0xff]
        %v780 = vld [vmem:[#allocation4 + $0x2f8] sm:$0xff]
        %v781 = vld [vmem:[#allocation4 + $0x300] sm:$0xff]
        %v782 = vld [vmem:[#allocation4 + $0x308] sm:$0xff]
        %v783 = vld [vmem:[#allocation4 + $0x310] sm:$0xff]
        %v784 = vld [vmem:[#allocation4 + $0x318] sm:$0xff]
        %v785 = vld [vmem:[#allocation4 + $0x320] sm:$0xff]
        %v786 = vld [vmem:[#allocation4 + $0x328] sm:$0xff]
        %v787 = vld [vmem:[#allocation4 + $0x330] sm:$0xff]
        %v788 = vld [vmem:[#allocation4 + $0x338] sm:$0xff]
        %v789 = vld [vmem:[#allocation4 + $0x340] sm:$0xff]
        %v790 = vld [vmem:[#allocation4 + $0x348] sm:$0xff]
        %v791 = vld [vmem:[#allocation4 + $0x350] sm:$0xff]
        %v792 = vld [vmem:[#allocation4 + $0x358] sm:$0xff]
        %v793 = vld [vmem:[#allocation4 + $0x360] sm:$0xff]
        %v794 = vld [vmem:[#allocation4 + $0x368] sm:$0xff]
        %v795 = vld [vmem:[#allocation4 + $0x370] sm:$0xff]
        %v796 = vld [vmem:[#allocation4 + $0x378] sm:$0xff]
        %v797 = vld [vmem:[#allocation4 + $0x380] sm:$0xff]
        %v798 = vld [vmem:[#allocation4 + $0x388] sm:$0xff]
        %v799 = vld [vmem:[#allocation4 + $0x390] sm:$0xff]
        %v800 = vld [vmem:[#allocation4 + $0x398] sm:$0xff]
        %v801 = vld [vmem:[#allocation4 + $0x3a0] sm:$0xff]
        %v802 = vld [vmem:[#allocation4 + $0x3a8] sm:$0xff]
        %v803 = vld [vmem:[#allocation4 + $0x3b0] sm:$0xff]
        %v804 = vld [vmem:[#allocation4 + $0x3b8] sm:$0xff]
        %v805 = vld [vmem:[#allocation4 + $0x3c0] sm:$0xff]
        %v806 = vld [vmem:[#allocation4 + $0x3c8] sm:$0xff]
        %v807 = vld [vmem:[#allocation4 + $0x3d0] sm:$0xff]
        %v808 = vld [vmem:[#allocation4 + $0x3d8] sm:$0xff]
        %v809 = vld [vmem:[#allocation4 + $0x3e0] sm:$0xff]
        %v810 = vld [vmem:[#allocation4 + $0x3e8] sm:$0xff]
        %v811 = vld [vmem:[#allocation4 + $0x3f0] sm:$0xff]
        %v812 = vld [vmem:[#allocation4 + $0x3f8] sm:$0xff]
        %v813 = vld [vmem:[%s4] sm:$0xf]
        %v815 = vperm.slane %v813, 0
        %v816 = vperm.slane %v813, 1
        %v817 = vperm.slane %v813, 2
        %v818 = vperm.slane %v813, 3
        %v951 = vunpack.c.l.b16 %v685
        %v952 = vunpack.c.h.b16 %v685
        %v953 = vunpack.c.l.b16 %v686
        %v954 = vunpack.c.h.b16 %v686
        %v955 = vunpack.c.l.b16 %v687
        %v956 = vunpack.c.h.b16 %v687
        %v957 = vunpack.c.l.b16 %v688
        %v958 = vunpack.c.h.b16 %v688
        %v959 = vunpack.c.l.b16 %v689
        %v960 = vunpack.c.h.b16 %v689
        %v961 = vunpack.c.l.b16 %v690
        %v962 = vunpack.c.h.b16 %v690
        %v963 = vunpack.c.l.b16 %v691
        %v964 = vunpack.c.h.b16 %v691
        %v965 = vunpack.c.l.b16 %v692
        %v966 = vunpack.c.h.b16 %v692
        %v967 = vunpack.c.l.b16 %v693
        %v968 = vunpack.c.h.b16 %v693
        %v969 = vunpack.c.l.b16 %v694
        %v970 = vunpack.c.h.b16 %v694
        %v971 = vunpack.c.l.b16 %v695
        %v972 = vunpack.c.h.b16 %v695
        %v973 = vunpack.c.l.b16 %v696
        %v974 = vunpack.c.h.b16 %v696
        %v975 = vunpack.c.l.b16 %v697
        %v976 = vunpack.c.h.b16 %v697
        %v977 = vunpack.c.l.b16 %v698
        %v978 = vunpack.c.h.b16 %v698
        %v979 = vunpack.c.l.b16 %v699
        %v980 = vunpack.c.h.b16 %v699
        %v981 = vunpack.c.l.b16 %v700
        %v982 = vunpack.c.h.b16 %v700
        %v983 = vunpack.c.l.b16 %v701
        %v984 = vunpack.c.h.b16 %v701
        %v985 = vunpack.c.l.b16 %v702
        %v986 = vunpack.c.h.b16 %v702
        %v987 = vunpack.c.l.b16 %v703
        %v988 = vunpack.c.h.b16 %v703
        %v989 = vunpack.c.l.b16 %v704
        %v990 = vunpack.c.h.b16 %v704
        %v991 = vunpack.c.l.b16 %v705
        %v992 = vunpack.c.h.b16 %v705
        %v993 = vunpack.c.l.b16 %v706
        %v994 = vunpack.c.h.b16 %v706
        %v995 = vunpack.c.l.b16 %v707
        %v996 = vunpack.c.h.b16 %v707
        %v997 = vunpack.c.l.b16 %v708
        %v998 = vunpack.c.h.b16 %v708
        %v999 = vunpack.c.l.b16 %v709
        %v1000 = vunpack.c.h.b16 %v709
        %v1001 = vunpack.c.l.b16 %v710
        %v1002 = vunpack.c.h.b16 %v710
        %v1003 = vunpack.c.l.b16 %v711
        %v1004 = vunpack.c.h.b16 %v711
        %v1005 = vunpack.c.l.b16 %v712
        %v1006 = vunpack.c.h.b16 %v712
        %v1007 = vunpack.c.l.b16 %v713
        %v1008 = vunpack.c.h.b16 %v713
        %v1009 = vunpack.c.l.b16 %v714
        %v1010 = vunpack.c.h.b16 %v714
        %v1011 = vunpack.c.l.b16 %v715
        %v1012 = vunpack.c.h.b16 %v715
        %v1013 = vunpack.c.l.b16 %v716
        %v1014 = vunpack.c.h.b16 %v716
        %v1015 = vunpack.c.l.b16 %v717
        %v1016 = vunpack.c.h.b16 %v717
        %v1017 = vunpack.c.l.b16 %v718
        %v1018 = vunpack.c.h.b16 %v718
        %v1019 = vunpack.c.l.b16 %v719
        %v1020 = vunpack.c.h.b16 %v719
        %v1021 = vunpack.c.l.b16 %v720
        %v1022 = vunpack.c.h.b16 %v720
        %v1023 = vunpack.c.l.b16 %v721
        %v1024 = vunpack.c.h.b16 %v721
        %v1025 = vunpack.c.l.b16 %v722
        %v1026 = vunpack.c.h.b16 %v722
        %v1027 = vunpack.c.l.b16 %v723
        %v1028 = vunpack.c.h.b16 %v723
        %v1029 = vunpack.c.l.b16 %v724
        %v1030 = vunpack.c.h.b16 %v724
        %v1031 = vunpack.c.l.b16 %v725
        %v1032 = vunpack.c.h.b16 %v725
        %v1033 = vunpack.c.l.b16 %v726
        %v1034 = vunpack.c.h.b16 %v726
        %v1035 = vunpack.c.l.b16 %v727
        %v1036 = vunpack.c.h.b16 %v727
        %v1037 = vunpack.c.l.b16 %v728
        %v1038 = vunpack.c.h.b16 %v728
        %v1039 = vunpack.c.l.b16 %v729
        %v1040 = vunpack.c.h.b16 %v729
        %v1041 = vunpack.c.l.b16 %v730
        %v1042 = vunpack.c.h.b16 %v730
        %v1043 = vunpack.c.l.b16 %v731
        %v1044 = vunpack.c.h.b16 %v731
        %v1045 = vunpack.c.l.b16 %v732
        %v1046 = vunpack.c.h.b16 %v732
        %v1047 = vunpack.c.l.b16 %v733
        %v1048 = vunpack.c.h.b16 %v733
        %v1049 = vunpack.c.l.b16 %v734
        %v1050 = vunpack.c.h.b16 %v734
        %v1051 = vunpack.c.l.b16 %v735
        %v1052 = vunpack.c.h.b16 %v735
        %v1053 = vunpack.c.l.b16 %v736
        %v1054 = vunpack.c.h.b16 %v736
        %v1055 = vunpack.c.l.b16 %v737
        %v1056 = vunpack.c.h.b16 %v737
        %v1057 = vunpack.c.l.b16 %v738
        %v1058 = vunpack.c.h.b16 %v738
        %v1059 = vunpack.c.l.b16 %v739
        %v1060 = vunpack.c.h.b16 %v739
        %v1061 = vunpack.c.l.b16 %v740
        %v1062 = vunpack.c.h.b16 %v740
        %v1063 = vunpack.c.l.b16 %v741
        %v1064 = vunpack.c.h.b16 %v741
        %v1065 = vunpack.c.l.b16 %v742
        %v1066 = vunpack.c.h.b16 %v742
        %v1067 = vunpack.c.l.b16 %v743
        %v1068 = vunpack.c.h.b16 %v743
        %v1069 = vunpack.c.l.b16 %v744
        %v1070 = vunpack.c.h.b16 %v744
        %v1071 = vunpack.c.l.b16 %v745
        %v1072 = vunpack.c.h.b16 %v745
        %v1073 = vunpack.c.l.b16 %v746
        %v1074 = vunpack.c.h.b16 %v746
        %v1075 = vunpack.c.l.b16 %v747
        %v1076 = vunpack.c.h.b16 %v747
        %v1077 = vunpack.c.l.b16 %v748
        %v1078 = vunpack.c.h.b16 %v748
        %v1079 = vunpack.c.l.b16 %v749
        %v1080 = vunpack.c.h.b16 %v749
        %v1081 = vunpack.c.l.b16 %v750
        %v1082 = vunpack.c.h.b16 %v750
        %v1083 = vunpack.c.l.b16 %v751
        %v1084 = vunpack.c.h.b16 %v751
        %v1085 = vunpack.c.l.b16 %v752
        %v1086 = vunpack.c.h.b16 %v752
        %v1087 = vunpack.c.l.b16 %v753
        %v1088 = vunpack.c.h.b16 %v753
        %v1089 = vunpack.c.l.b16 %v754
        %v1090 = vunpack.c.h.b16 %v754
        %v1091 = vunpack.c.l.b16 %v755
        %v1092 = vunpack.c.h.b16 %v755
        %v1093 = vunpack.c.l.b16 %v756
        %v1094 = vunpack.c.h.b16 %v756
        %v1095 = vunpack.c.l.b16 %v757
        %v1096 = vunpack.c.h.b16 %v757
        %v1097 = vunpack.c.l.b16 %v758
        %v1098 = vunpack.c.h.b16 %v758
        %v1099 = vunpack.c.l.b16 %v759
        %v1100 = vunpack.c.h.b16 %v759
        %v1101 = vunpack.c.l.b16 %v760
        %v1102 = vunpack.c.h.b16 %v760
        %v1103 = vunpack.c.l.b16 %v761
        %v1104 = vunpack.c.h.b16 %v761
        %v1105 = vunpack.c.l.b16 %v762
        %v1106 = vunpack.c.h.b16 %v762
        %v1107 = vunpack.c.l.b16 %v763
        %v1108 = vunpack.c.h.b16 %v763
        %v1109 = vunpack.c.l.b16 %v764
        %v1110 = vunpack.c.h.b16 %v764
        %v1111 = vunpack.c.l.b16 %v765
        %v1112 = vunpack.c.h.b16 %v765
        %v1113 = vunpack.c.l.b16 %v766
        %v1114 = vunpack.c.h.b16 %v766
        %v1115 = vunpack.c.l.b16 %v767
        %v1116 = vunpack.c.h.b16 %v767
        %v1117 = vunpack.c.l.b16 %v768
        %v1118 = vunpack.c.h.b16 %v768
        %v1119 = vunpack.c.l.b16 %v769
        %v1120 = vunpack.c.h.b16 %v769
        %v1121 = vunpack.c.l.b16 %v770
        %v1122 = vunpack.c.h.b16 %v770
        %v1123 = vunpack.c.l.b16 %v771
        %v1124 = vunpack.c.h.b16 %v771
        %v1125 = vunpack.c.l.b16 %v772
        %v1126 = vunpack.c.h.b16 %v772
        %v1127 = vunpack.c.l.b16 %v773
        %v1128 = vunpack.c.h.b16 %v773
        %v1129 = vunpack.c.l.b16 %v774
        %v1130 = vunpack.c.h.b16 %v774
        %v1131 = vunpack.c.l.b16 %v775
        %v1132 = vunpack.c.h.b16 %v775
        %v1133 = vunpack.c.l.b16 %v776
        %v1134 = vunpack.c.h.b16 %v776
        %v1135 = vunpack.c.l.b16 %v777
        %v1136 = vunpack.c.h.b16 %v777
        %v1137 = vunpack.c.l.b16 %v778
        %v1138 = vunpack.c.h.b16 %v778
        %v1139 = vunpack.c.l.b16 %v779
        %v1140 = vunpack.c.h.b16 %v779
        %v1141 = vunpack.c.l.b16 %v780
        %v1142 = vunpack.c.h.b16 %v780
        %v1143 = vunpack.c.l.b16 %v781
        %v1144 = vunpack.c.h.b16 %v781
        %v1145 = vunpack.c.l.b16 %v782
        %v1146 = vunpack.c.h.b16 %v782
        %v1147 = vunpack.c.l.b16 %v783
        %v1148 = vunpack.c.h.b16 %v783
        %v1149 = vunpack.c.l.b16 %v784
        %v1150 = vunpack.c.h.b16 %v784
        %v1151 = vunpack.c.l.b16 %v785
        %v1152 = vunpack.c.h.b16 %v785
        %v1153 = vunpack.c.l.b16 %v786
        %v1154 = vunpack.c.h.b16 %v786
        %v1155 = vunpack.c.l.b16 %v787
        %v1156 = vunpack.c.h.b16 %v787
        %v1157 = vunpack.c.l.b16 %v788
        %v1158 = vunpack.c.h.b16 %v788
        %v1159 = vunpack.c.l.b16 %v789
        %v1160 = vunpack.c.h.b16 %v789
        %v1161 = vunpack.c.l.b16 %v790
        %v1162 = vunpack.c.h.b16 %v790
        %v1163 = vunpack.c.l.b16 %v791
        %v1164 = vunpack.c.h.b16 %v791
        %v1165 = vunpack.c.l.b16 %v792
        %v1166 = vunpack.c.h.b16 %v792
        %v1167 = vunpack.c.l.b16 %v793
        %v1168 = vunpack.c.h.b16 %v793
        %v1169 = vunpack.c.l.b16 %v794
        %v1170 = vunpack.c.h.b16 %v794
        %v1171 = vunpack.c.l.b16 %v795
        %v1172 = vunpack.c.h.b16 %v795
        %v1173 = vunpack.c.l.b16 %v796
        %v1174 = vunpack.c.h.b16 %v796
        %v1175 = vunpack.c.l.b16 %v797
        %v1176 = vunpack.c.h.b16 %v797
        %v1177 = vunpack.c.l.b16 %v798
        %v1178 = vunpack.c.h.b16 %v798
        %v1179 = vunpack.c.l.b16 %v799
        %v1180 = vunpack.c.h.b16 %v799
        %v1181 = vunpack.c.l.b16 %v800
        %v1182 = vunpack.c.h.b16 %v800
        %v1183 = vunpack.c.l.b16 %v801
        %v1184 = vunpack.c.h.b16 %v801
        %v1185 = vunpack.c.l.b16 %v802
        %v1186 = vunpack.c.h.b16 %v802
        %v1187 = vunpack.c.l.b16 %v803
        %v1188 = vunpack.c.h.b16 %v803
        %v1189 = vunpack.c.l.b16 %v804
        %v1190 = vunpack.c.h.b16 %v804
        %v1191 = vunpack.c.l.b16 %v805
        %v1192 = vunpack.c.h.b16 %v805
        %v1193 = vunpack.c.l.b16 %v806
        %v1194 = vunpack.c.h.b16 %v806
        %v1195 = vunpack.c.l.b16 %v807
        %v1196 = vunpack.c.h.b16 %v807
        %v1197 = vunpack.c.l.b16 %v808
        %v1198 = vunpack.c.h.b16 %v808
        %v1199 = vunpack.c.l.b16 %v809
        %v1200 = vunpack.c.h.b16 %v809
        %v1201 = vunpack.c.l.b16 %v810
        %v1202 = vunpack.c.h.b16 %v810
        %v1203 = vunpack.c.l.b16 %v811
        %v1204 = vunpack.c.h.b16 %v811
        %v1205 = vunpack.c.l.b16 %v812
        %v1206 = vunpack.c.h.b16 %v812
        %v1207 = vpack.c.b16 %v955, %v951
        %v1208 = vpack.c.b16 %v956, %v952
        %v1209 = vpack.c.b16 %v957, %v953
        %v1210 = vpack.c.b16 %v958, %v954
        %v1211 = vpack.c.b16 %v963, %v959
        %v1212 = vpack.c.b16 %v964, %v960
        %v1213 = vpack.c.b16 %v965, %v961
        %v1214 = vpack.c.b16 %v966, %v962
        %v1215 = vpack.c.b16 %v971, %v967
        %v1216 = vpack.c.b16 %v972, %v968
        %v1217 = vpack.c.b16 %v973, %v969
        %v1218 = vpack.c.b16 %v974, %v970
        %v1219 = vpack.c.b16 %v979, %v975
        %v1220 = vpack.c.b16 %v980, %v976
        %v1221 = vpack.c.b16 %v981, %v977
        %v1222 = vpack.c.b16 %v982, %v978
        %v1223 = vpack.c.b16 %v987, %v983
        %v1224 = vpack.c.b16 %v988, %v984
        %v1225 = vpack.c.b16 %v989, %v985
        %v1226 = vpack.c.b16 %v990, %v986
        %v1227 = vpack.c.b16 %v995, %v991
        %v1228 = vpack.c.b16 %v996, %v992
        %v1229 = vpack.c.b16 %v997, %v993
        %v1230 = vpack.c.b16 %v998, %v994
        %v1231 = vpack.c.b16 %v1003, %v999
        %v1232 = vpack.c.b16 %v1004, %v1000
        %v1233 = vpack.c.b16 %v1005, %v1001
        %v1234 = vpack.c.b16 %v1006, %v1002
        %v1235 = vpack.c.b16 %v1011, %v1007
        %v1236 = vpack.c.b16 %v1012, %v1008
        %v1237 = vpack.c.b16 %v1013, %v1009
        %v1238 = vpack.c.b16 %v1014, %v1010
        %v1239 = vpack.c.b16 %v1019, %v1015
        %v1240 = vpack.c.b16 %v1020, %v1016
        %v1241 = vpack.c.b16 %v1021, %v1017
        %v1242 = vpack.c.b16 %v1022, %v1018
        %v1243 = vpack.c.b16 %v1027, %v1023
        %v1244 = vpack.c.b16 %v1028, %v1024
        %v1245 = vpack.c.b16 %v1029, %v1025
        %v1246 = vpack.c.b16 %v1030, %v1026
        %v1247 = vpack.c.b16 %v1035, %v1031
        %v1248 = vpack.c.b16 %v1036, %v1032
        %v1249 = vpack.c.b16 %v1037, %v1033
        %v1250 = vpack.c.b16 %v1038, %v1034
        %v1251 = vpack.c.b16 %v1043, %v1039
        %v1252 = vpack.c.b16 %v1044, %v1040
        %v1253 = vpack.c.b16 %v1045, %v1041
        %v1254 = vpack.c.b16 %v1046, %v1042
        %v1255 = vpack.c.b16 %v1051, %v1047
        %v1256 = vpack.c.b16 %v1052, %v1048
        %v1257 = vpack.c.b16 %v1053, %v1049
        %v1258 = vpack.c.b16 %v1054, %v1050
        %v1259 = vpack.c.b16 %v1059, %v1055
        %v1260 = vpack.c.b16 %v1060, %v1056
        %v1261 = vpack.c.b16 %v1061, %v1057
        %v1262 = vpack.c.b16 %v1062, %v1058
        %v1263 = vpack.c.b16 %v1067, %v1063
        %v1264 = vpack.c.b16 %v1068, %v1064
        %v1265 = vpack.c.b16 %v1069, %v1065
        %v1266 = vpack.c.b16 %v1070, %v1066
        %v1267 = vpack.c.b16 %v1075, %v1071
        %v1268 = vpack.c.b16 %v1076, %v1072
        %v1269 = vpack.c.b16 %v1077, %v1073
        %v1270 = vpack.c.b16 %v1078, %v1074
        %v1271 = vpack.c.b16 %v1083, %v1079
        %v1272 = vpack.c.b16 %v1084, %v1080
        %v1273 = vpack.c.b16 %v1085, %v1081
        %v1274 = vpack.c.b16 %v1086, %v1082
        %v1275 = vpack.c.b16 %v1091, %v1087
        %v1276 = vpack.c.b16 %v1092, %v1088
        %v1277 = vpack.c.b16 %v1093, %v1089
        %v1278 = vpack.c.b16 %v1094, %v1090
        %v1279 = vpack.c.b16 %v1099, %v1095
        %v1280 = vpack.c.b16 %v1100, %v1096
        %v1281 = vpack.c.b16 %v1101, %v1097
        %v1282 = vpack.c.b16 %v1102, %v1098
        %v1283 = vpack.c.b16 %v1107, %v1103
        %v1284 = vpack.c.b16 %v1108, %v1104
        %v1285 = vpack.c.b16 %v1109, %v1105
        %v1286 = vpack.c.b16 %v1110, %v1106
        %v1287 = vpack.c.b16 %v1115, %v1111
        %v1288 = vpack.c.b16 %v1116, %v1112
        %v1289 = vpack.c.b16 %v1117, %v1113
        %v1290 = vpack.c.b16 %v1118, %v1114
        %v1291 = vpack.c.b16 %v1123, %v1119
        %v1292 = vpack.c.b16 %v1124, %v1120
        %v1293 = vpack.c.b16 %v1125, %v1121
        %v1294 = vpack.c.b16 %v1126, %v1122
        %v1295 = vpack.c.b16 %v1131, %v1127
        %v1296 = vpack.c.b16 %v1132, %v1128
        %v1297 = vpack.c.b16 %v1133, %v1129
        %v1298 = vpack.c.b16 %v1134, %v1130
        %v1299 = vpack.c.b16 %v1139, %v1135
        %v1300 = vpack.c.b16 %v1140, %v1136
        %v1301 = vpack.c.b16 %v1141, %v1137
        %v1302 = vpack.c.b16 %v1142, %v1138
        %v1303 = vpack.c.b16 %v1147, %v1143
        %v1304 = vpack.c.b16 %v1148, %v1144
        %v1305 = vpack.c.b16 %v1149, %v1145
        %v1306 = vpack.c.b16 %v1150, %v1146
        %v1307 = vpack.c.b16 %v1155, %v1151
        %v1308 = vpack.c.b16 %v1156, %v1152
        %v1309 = vpack.c.b16 %v1157, %v1153
        %v1310 = vpack.c.b16 %v1158, %v1154
        %v1311 = vpack.c.b16 %v1163, %v1159
        %v1312 = vpack.c.b16 %v1164, %v1160
        %v1313 = vpack.c.b16 %v1165, %v1161
        %v1314 = vpack.c.b16 %v1166, %v1162
        %v1315 = vpack.c.b16 %v1171, %v1167
        %v1316 = vpack.c.b16 %v1172, %v1168
        %v1317 = vpack.c.b16 %v1173, %v1169
        %v1318 = vpack.c.b16 %v1174, %v1170
        %v1319 = vpack.c.b16 %v1179, %v1175
        %v1320 = vpack.c.b16 %v1180, %v1176
        %v1321 = vpack.c.b16 %v1181, %v1177
        %v1322 = vpack.c.b16 %v1182, %v1178
        %v1323 = vpack.c.b16 %v1187, %v1183
        %v1324 = vpack.c.b16 %v1188, %v1184
        %v1325 = vpack.c.b16 %v1189, %v1185
        %v1326 = vpack.c.b16 %v1190, %v1186
        %v1327 = vpack.c.b16 %v1195, %v1191
        %v1328 = vpack.c.b16 %v1196, %v1192
        %v1329 = vpack.c.b16 %v1197, %v1193
        %v1330 = vpack.c.b16 %v1198, %v1194
        %v1331 = vpack.c.b16 %v1203, %v1199
        %v1332 = vpack.c.b16 %v1204, %v1200
        %v1333 = vpack.c.b16 %v1205, %v1201
        %v1334 = vpack.c.b16 %v1206, %v1202
        %1463 = vmatpush.bf16.msra.mxu0 %v1235
        %1464 = vmatpush.bf16.msra.mxu0 %v1231
        %1465 = vmatpush.bf16.msra.mxu0 %v1227
        %1466 = vmatpush.bf16.msra.mxu0 %v1223
        %1467 = vmatpush.bf16.msra.mxu0 %v1219
        %1468 = vmatpush.bf16.msra.mxu0 %v1215
        %1469 = vmatpush.bf16.msra.mxu0 %v1211
        %1470 = vmatpush.bf16.msra.mxu0 %v1207
        %1471 = vmatmul.bf16.gmra.mxu0 %v681
        %v1472 = vpop.f32.mrf.mxu0
        %v1473 = vadd.f32 %v815, %v1472
        %v1474 = vpop.f32.mrf.mxu0
        %v1475 = vadd.f32 %v815, %v1474
        %1476 = vdwg.mxu0
        %1477 = vmatpush.bf16.msra.mxu0 %v1267
        %1478 = vmatpush.bf16.msra.mxu0 %v1263
        %1479 = vmatpush.bf16.msra.mxu0 %v1259
        %1480 = vmatpush.bf16.msra.mxu0 %v1255
        %1481 = vmatpush.bf16.msra.mxu0 %v1251
        %1482 = vmatpush.bf16.msra.mxu0 %v1247
        %1483 = vmatpush.bf16.msra.mxu0 %v1243
        %1484 = vmatpush.bf16.msra.mxu0 %v1239
        %1485 = vmatmul.bf16.gmra.mxu0 %v682
        %v1486 = vpop.f32.mrf.mxu0
        %v1487 = vadd.f32 %v1473, %v1486
        %v1488 = vpop.f32.mrf.mxu0
        %v1489 = vadd.f32 %v1475, %v1488
        %1490 = vdwg.mxu0
        %1491 = vmatpush.bf16.msra.mxu0 %v1299
        %1492 = vmatpush.bf16.msra.mxu0 %v1295
        %1493 = vmatpush.bf16.msra.mxu0 %v1291
        %1494 = vmatpush.bf16.msra.mxu0 %v1287
        %1495 = vmatpush.bf16.msra.mxu0 %v1283
        %1496 = vmatpush.bf16.msra.mxu0 %v1279
        %1497 = vmatpush.bf16.msra.mxu0 %v1275
        %1498 = vmatpush.bf16.msra.mxu0 %v1271
        %1499 = vmatmul.bf16.gmra.mxu0 %v683
        %v1500 = vpop.f32.mrf.mxu0
        %v1501 = vadd.f32 %v1487, %v1500
        %v1502 = vpop.f32.mrf.mxu0
        %v1503 = vadd.f32 %v1489, %v1502
        %1504 = vdwg.mxu0
        %1505 = vmatpush.bf16.msra.mxu0 %v1331
        %1506 = vmatpush.bf16.msra.mxu0 %v1327
        %1507 = vmatpush.bf16.msra.mxu0 %v1323
        %1508 = vmatpush.bf16.msra.mxu0 %v1319
        %1509 = vmatpush.bf16.msra.mxu0 %v1315
        %1510 = vmatpush.bf16.msra.mxu0 %v1311
        %1511 = vmatpush.bf16.msra.mxu0 %v1307
        %1512 = vmatpush.bf16.msra.mxu0 %v1303
        %1513 = vmatmul.bf16.gmra.mxu0 %v684
        %v1514 = vpop.f32.mrf.mxu0
        %v1515 = vadd.f32 %v1501, %v1514
        %v1516 = vpop.f32.mrf.mxu0
        %v1517 = vadd.f32 %v1503, %v1516
        %1518 = vdwg.mxu0
        %1519 = vmatpush.bf16.msra.mxu0 %v1236
        %1520 = vmatpush.bf16.msra.mxu0 %v1232
        %1521 = vmatpush.bf16.msra.mxu0 %v1228
        %1522 = vmatpush.bf16.msra.mxu0 %v1224
        %1523 = vmatpush.bf16.msra.mxu0 %v1220
        %1524 = vmatpush.bf16.msra.mxu0 %v1216
        %1525 = vmatpush.bf16.msra.mxu0 %v1212
        %1526 = vmatpush.bf16.msra.mxu0 %v1208
        %1527 = vmatmul.bf16.gmra.mxu0 %v681
        %v1528 = vpop.f32.mrf.mxu0
        %v1529 = vadd.f32 %v816, %v1528
        %v1530 = vpop.f32.mrf.mxu0
        %v1531 = vadd.f32 %v816, %v1530
        %1532 = vdwg.mxu0
        %1533 = vmatpush.bf16.msra.mxu0 %v1268
        %1534 = vmatpush.bf16.msra.mxu0 %v1264
        %1535 = vmatpush.bf16.msra.mxu0 %v1260
        %1536 = vmatpush.bf16.msra.mxu0 %v1256
        %1537 = vmatpush.bf16.msra.mxu0 %v1252
        %1538 = vmatpush.bf16.msra.mxu0 %v1248
        %1539 = vmatpush.bf16.msra.mxu0 %v1244
        %1540 = vmatpush.bf16.msra.mxu0 %v1240
        %1541 = vmatmul.bf16.gmra.mxu0 %v682
        %v1542 = vpop.f32.mrf.mxu0
        %v1543 = vadd.f32 %v1529, %v1542
        %v1544 = vpop.f32.mrf.mxu0
        %v1545 = vadd.f32 %v1531, %v1544
        %1546 = vdwg.mxu0
        %1547 = vmatpush.bf16.msra.mxu0 %v1300
        %1548 = vmatpush.bf16.msra.mxu0 %v1296
        %1549 = vmatpush.bf16.msra.mxu0 %v1292
        %1550 = vmatpush.bf16.msra.mxu0 %v1288
        %1551 = vmatpush.bf16.msra.mxu0 %v1284
        %1552 = vmatpush.bf16.msra.mxu0 %v1280
        %1553 = vmatpush.bf16.msra.mxu0 %v1276
        %1554 = vmatpush.bf16.msra.mxu0 %v1272
        %1555 = vmatmul.bf16.gmra.mxu0 %v683
        %v1556 = vpop.f32.mrf.mxu0
        %v1557 = vadd.f32 %v1543, %v1556
        %v1558 = vpop.f32.mrf.mxu0
        %v1559 = vadd.f32 %v1545, %v1558
        %1560 = vdwg.mxu0
        %1561 = vmatpush.bf16.msra.mxu0 %v1332
        %1562 = vmatpush.bf16.msra.mxu0 %v1328
        %1563 = vmatpush.bf16.msra.mxu0 %v1324
        %1564 = vmatpush.bf16.msra.mxu0 %v1320
        %1565 = vmatpush.bf16.msra.mxu0 %v1316
        %1566 = vmatpush.bf16.msra.mxu0 %v1312
        %1567 = vmatpush.bf16.msra.mxu0 %v1308
        %1568 = vmatpush.bf16.msra.mxu0 %v1304
        %1569 = vmatmul.bf16.gmra.mxu0 %v684
        %v1570 = vpop.f32.mrf.mxu0
        %v1571 = vadd.f32 %v1557, %v1570
        %v1572 = vpop.f32.mrf.mxu0
        %v1573 = vadd.f32 %v1559, %v1572
        %1574 = vdwg.mxu0
        %1575 = vmatpush.bf16.msra.mxu0 %v1237
        %1576 = vmatpush.bf16.msra.mxu0 %v1233
        %1577 = vmatpush.bf16.msra.mxu0 %v1229
        %1578 = vmatpush.bf16.msra.mxu0 %v1225
        %1579 = vmatpush.bf16.msra.mxu0 %v1221
        %1580 = vmatpush.bf16.msra.mxu0 %v1217
        %1581 = vmatpush.bf16.msra.mxu0 %v1213
        %1582 = vmatpush.bf16.msra.mxu0 %v1209
        %1583 = vmatmul.bf16.gmra.mxu0 %v681
        %v1584 = vpop.f32.mrf.mxu0
        %v1585 = vadd.f32 %v817, %v1584
        %v1586 = vpop.f32.mrf.mxu0
        %v1587 = vadd.f32 %v817, %v1586
        %1588 = vdwg.mxu0
        %1589 = vmatpush.bf16.msra.mxu0 %v1269
        %1590 = vmatpush.bf16.msra.mxu0 %v1265
        %1591 = vmatpush.bf16.msra.mxu0 %v1261
        %1592 = vmatpush.bf16.msra.mxu0 %v1257
        %1593 = vmatpush.bf16.msra.mxu0 %v1253
        %1594 = vmatpush.bf16.msra.mxu0 %v1249
        %1595 = vmatpush.bf16.msra.mxu0 %v1245
        %1596 = vmatpush.bf16.msra.mxu0 %v1241
        %1597 = vmatmul.bf16.gmra.mxu0 %v682
        %v1598 = vpop.f32.mrf.mxu0
        %v1599 = vadd.f32 %v1585, %v1598
        %v1600 = vpop.f32.mrf.mxu0
        %v1601 = vadd.f32 %v1587, %v1600
        %1602 = vdwg.mxu0
        %1603 = vmatpush.bf16.msra.mxu0 %v1301
        %1604 = vmatpush.bf16.msra.mxu0 %v1297
        %1605 = vmatpush.bf16.msra.mxu0 %v1293
        %1606 = vmatpush.bf16.msra.mxu0 %v1289
        %1607 = vmatpush.bf16.msra.mxu0 %v1285
        %1608 = vmatpush.bf16.msra.mxu0 %v1281
        %1609 = vmatpush.bf16.msra.mxu0 %v1277
        %1610 = vmatpush.bf16.msra.mxu0 %v1273
        %1611 = vmatmul.bf16.gmra.mxu0 %v683
        %v1612 = vpop.f32.mrf.mxu0
        %v1613 = vadd.f32 %v1599, %v1612
        %v1614 = vpop.f32.mrf.mxu0
        %v1615 = vadd.f32 %v1601, %v1614
        %1616 = vdwg.mxu0
        %1617 = vmatpush.bf16.msra.mxu0 %v1333
        %1618 = vmatpush.bf16.msra.mxu0 %v1329
        %1619 = vmatpush.bf16.msra.mxu0 %v1325
        %1620 = vmatpush.bf16.msra.mxu0 %v1321
        %1621 = vmatpush.bf16.msra.mxu0 %v1317
        %1622 = vmatpush.bf16.msra.mxu0 %v1313
        %1623 = vmatpush.bf16.msra.mxu0 %v1309
        %1624 = vmatpush.bf16.msra.mxu0 %v1305
        %1625 = vmatmul.bf16.gmra.mxu0 %v684
        %v1626 = vpop.f32.mrf.mxu0
        %v1627 = vadd.f32 %v1613, %v1626
        %v1628 = vpop.f32.mrf.mxu0
        %v1629 = vadd.f32 %v1615, %v1628
        %1630 = vdwg.mxu0
        %1631 = vmatpush.bf16.msra.mxu0 %v1238
        %1632 = vmatpush.bf16.msra.mxu0 %v1234
        %1633 = vmatpush.bf16.msra.mxu0 %v1230
        %1634 = vmatpush.bf16.msra.mxu0 %v1226
        %1635 = vmatpush.bf16.msra.mxu0 %v1222
        %1636 = vmatpush.bf16.msra.mxu0 %v1218
        %1637 = vmatpush.bf16.msra.mxu0 %v1214
        %1638 = vmatpush.bf16.msra.mxu0 %v1210
        %1639 = vmatmul.bf16.gmra.mxu0 %v681
        %v1640 = vpop.f32.mrf.mxu0
        %v1641 = vadd.f32 %v818, %v1640
        %v1642 = vpop.f32.mrf.mxu0
        %v1643 = vadd.f32 %v818, %v1642
        %1644 = vdwg.mxu0
        %1645 = vmatpush.bf16.msra.mxu0 %v1270
        %1646 = vmatpush.bf16.msra.mxu0 %v1266
        %1647 = vmatpush.bf16.msra.mxu0 %v1262
        %1648 = vmatpush.bf16.msra.mxu0 %v1258
        %1649 = vmatpush.bf16.msra.mxu0 %v1254
        %1650 = vmatpush.bf16.msra.mxu0 %v1250
        %1651 = vmatpush.bf16.msra.mxu0 %v1246
        %1652 = vmatpush.bf16.msra.mxu0 %v1242
        %1653 = vmatmul.bf16.gmra.mxu0 %v682
        %v1654 = vpop.f32.mrf.mxu0
        %v1655 = vadd.f32 %v1641, %v1654
        %v1656 = vpop.f32.mrf.mxu0
        %v1657 = vadd.f32 %v1643, %v1656
        %1658 = vdwg.mxu0
        %1659 = vmatpush.bf16.msra.mxu0 %v1302
        %1660 = vmatpush.bf16.msra.mxu0 %v1298
        %1661 = vmatpush.bf16.msra.mxu0 %v1294
        %1662 = vmatpush.bf16.msra.mxu0 %v1290
        %1663 = vmatpush.bf16.msra.mxu0 %v1286
        %1664 = vmatpush.bf16.msra.mxu0 %v1282
        %1665 = vmatpush.bf16.msra.mxu0 %v1278
        %1666 = vmatpush.bf16.msra.mxu0 %v1274
        %1667 = vmatmul.bf16.gmra.mxu0 %v683
        %v1668 = vpop.f32.mrf.mxu0
        %v1669 = vadd.f32 %v1655, %v1668
        %v1670 = vpop.f32.mrf.mxu0
        %v1671 = vadd.f32 %v1657, %v1670
        %1672 = vdwg.mxu0
        %1673 = vmatpush.bf16.msra.mxu0 %v1334
        %1674 = vmatpush.bf16.msra.mxu0 %v1330
        %1675 = vmatpush.bf16.msra.mxu0 %v1326
        %1676 = vmatpush.bf16.msra.mxu0 %v1322
        %1677 = vmatpush.bf16.msra.mxu0 %v1318
        %1678 = vmatpush.bf16.msra.mxu0 %v1314
        %1679 = vmatpush.bf16.msra.mxu0 %v1310
        %1680 = vmatpush.bf16.msra.mxu0 %v1306
        %1681 = vmatmul.bf16.gmra.mxu0 %v684
        %v1682 = vpop.f32.mrf.mxu0
        %v1683 = vadd.f32 %v1669, %v1682
        %v1684 = vpop.f32.mrf.mxu0
        %v1685 = vadd.f32 %v1671, %v1684
        %1686 = vdwg.mxu0
        %v1687 = vmax.f32 %v1515, 0.0
        %v1688 = vmax.f32 %v1571, 0.0
        %v1689 = vmax.f32 %v1627, 0.0
        %v1690 = vmax.f32 %v1683, 0.0
        %v1691 = vmax.f32 %v1517, 0.0
        %v1692 = vmax.f32 %v1573, 0.0
        %v1693 = vmax.f32 %v1629, 0.0
        %v1694 = vmax.f32 %v1685, 0.0
        %v1695 = vpack.c.bf16 %v1691, %v1687
        %v1696 = vpack.c.bf16 %v1692, %v1688
        %v1697 = vpack.c.bf16 %v1693, %v1689
        %v1698 = vpack.c.bf16 %v1694, %v1690
        %v1699 = vld [vmem:[#allocation6] sm:$0xff]
        %v1700 = vld [vmem:[#allocation6 + $0x8] sm:$0xff]
        %v1701 = vld [vmem:[#allocation6 + $0x10] sm:$0xff]
        %v1702 = vld [vmem:[#allocation6 + $0x18] sm:$0xff]
        %v1703 = vld [vmem:[#allocation6 + $0x20] sm:$0xff]
        %v1704 = vld [vmem:[#allocation6 + $0x28] sm:$0xff]
        %v1705 = vld [vmem:[#allocation6 + $0x30] sm:$0xff]
        %v1706 = vld [vmem:[#allocation6 + $0x38] sm:$0xff]
        %v1707 = vld [vmem:[#allocation6 + $0x40] sm:$0xff]
        %v1708 = vld [vmem:[#allocation6 + $0x48] sm:$0xff]
        %v1709 = vld [vmem:[#allocation6 + $0x50] sm:$0xff]
        %v1710 = vld [vmem:[#allocation6 + $0x58] sm:$0xff]
        %v1711 = vld [vmem:[#allocation6 + $0x60] sm:$0xff]
        %v1712 = vld [vmem:[#allocation6 + $0x68] sm:$0xff]
        %v1713 = vld [vmem:[#allocation6 + $0x70] sm:$0xff]
        %v1714 = vld [vmem:[#allocation6 + $0x78] sm:$0xff]
        %v1715 = vld [vmem:[#allocation6 + $0x80] sm:$0xff]
        %v1716 = vld [vmem:[#allocation6 + $0x88] sm:$0xff]
        %v1717 = vld [vmem:[#allocation6 + $0x90] sm:$0xff]
        %v1718 = vld [vmem:[#allocation6 + $0x98] sm:$0xff]
        %v1719 = vld [vmem:[#allocation6 + $0xa0] sm:$0xff]
        %v1720 = vld [vmem:[#allocation6 + $0xa8] sm:$0xff]
        %v1721 = vld [vmem:[#allocation6 + $0xb0] sm:$0xff]
        %v1722 = vld [vmem:[#allocation6 + $0xb8] sm:$0xff]
        %v1723 = vld [vmem:[#allocation6 + $0xc0] sm:$0xff]
        %v1724 = vld [vmem:[#allocation6 + $0xc8] sm:$0xff]
        %v1725 = vld [vmem:[#allocation6 + $0xd0] sm:$0xff]
        %v1726 = vld [vmem:[#allocation6 + $0xd8] sm:$0xff]
        %v1727 = vld [vmem:[#allocation6 + $0xe0] sm:$0xff]
        %v1728 = vld [vmem:[#allocation6 + $0xe8] sm:$0xff]
        %v1729 = vld [vmem:[#allocation6 + $0xf0] sm:$0xff]
        %v1730 = vld [vmem:[#allocation6 + $0xf8] sm:$0xff]
        %v1731 = vld [vmem:[#allocation6 + $0x100] sm:$0xff]
        %v1732 = vld [vmem:[#allocation6 + $0x108] sm:$0xff]
        %v1733 = vld [vmem:[#allocation6 + $0x110] sm:$0xff]
        %v1734 = vld [vmem:[#allocation6 + $0x118] sm:$0xff]
        %v1735 = vld [vmem:[#allocation6 + $0x120] sm:$0xff]
        %v1736 = vld [vmem:[#allocation6 + $0x128] sm:$0xff]
        %v1737 = vld [vmem:[#allocation6 + $0x130] sm:$0xff]
        %v1738 = vld [vmem:[#allocation6 + $0x138] sm:$0xff]
        %v1739 = vld [vmem:[#allocation6 + $0x140] sm:$0xff]
        %v1740 = vld [vmem:[#allocation6 + $0x148] sm:$0xff]
        %v1741 = vld [vmem:[#allocation6 + $0x150] sm:$0xff]
        %v1742 = vld [vmem:[#allocation6 + $0x158] sm:$0xff]
        %v1743 = vld [vmem:[#allocation6 + $0x160] sm:$0xff]
        %v1744 = vld [vmem:[#allocation6 + $0x168] sm:$0xff]
        %v1745 = vld [vmem:[#allocation6 + $0x170] sm:$0xff]
        %v1746 = vld [vmem:[#allocation6 + $0x178] sm:$0xff]
        %v1747 = vld [vmem:[#allocation6 + $0x180] sm:$0xff]
        %v1748 = vld [vmem:[#allocation6 + $0x188] sm:$0xff]
        %v1749 = vld [vmem:[#allocation6 + $0x190] sm:$0xff]
        %v1750 = vld [vmem:[#allocation6 + $0x198] sm:$0xff]
        %v1751 = vld [vmem:[#allocation6 + $0x1a0] sm:$0xff]
        %v1752 = vld [vmem:[#allocation6 + $0x1a8] sm:$0xff]
        %v1753 = vld [vmem:[#allocation6 + $0x1b0] sm:$0xff]
        %v1754 = vld [vmem:[#allocation6 + $0x1b8] sm:$0xff]
        %v1755 = vld [vmem:[#allocation6 + $0x1c0] sm:$0xff]
        %v1756 = vld [vmem:[#allocation6 + $0x1c8] sm:$0xff]
        %v1757 = vld [vmem:[#allocation6 + $0x1d0] sm:$0xff]
        %v1758 = vld [vmem:[#allocation6 + $0x1d8] sm:$0xff]
        %v1759 = vld [vmem:[#allocation6 + $0x1e0] sm:$0xff]
        %v1760 = vld [vmem:[#allocation6 + $0x1e8] sm:$0xff]
        %v1761 = vld [vmem:[#allocation6 + $0x1f0] sm:$0xff]
        %v1762 = vld [vmem:[#allocation6 + $0x1f8] sm:$0xff]
        %v1763 = vld [vmem:[#allocation6 + $0x200] sm:$0xff]
        %v1764 = vld [vmem:[#allocation6 + $0x208] sm:$0xff]
        %v1765 = vld [vmem:[#allocation6 + $0x210] sm:$0xff]
        %v1766 = vld [vmem:[#allocation6 + $0x218] sm:$0xff]
        %v1767 = vld [vmem:[#allocation6 + $0x220] sm:$0xff]
        %v1768 = vld [vmem:[#allocation6 + $0x228] sm:$0xff]
        %v1769 = vld [vmem:[#allocation6 + $0x230] sm:$0xff]
        %v1770 = vld [vmem:[#allocation6 + $0x238] sm:$0xff]
        %v1771 = vld [vmem:[#allocation6 + $0x240] sm:$0xff]
        %v1772 = vld [vmem:[#allocation6 + $0x248] sm:$0xff]
        %v1773 = vld [vmem:[#allocation6 + $0x250] sm:$0xff]
        %v1774 = vld [vmem:[#allocation6 + $0x258] sm:$0xff]
        %v1775 = vld [vmem:[#allocation6 + $0x260] sm:$0xff]
        %v1776 = vld [vmem:[#allocation6 + $0x268] sm:$0xff]
        %v1777 = vld [vmem:[#allocation6 + $0x270] sm:$0xff]
        %v1778 = vld [vmem:[#allocation6 + $0x278] sm:$0xff]
        %v1779 = vld [vmem:[#allocation6 + $0x280] sm:$0xff]
        %v1780 = vld [vmem:[#allocation6 + $0x288] sm:$0xff]
        %v1781 = vld [vmem:[#allocation6 + $0x290] sm:$0xff]
        %v1782 = vld [vmem:[#allocation6 + $0x298] sm:$0xff]
        %v1783 = vld [vmem:[#allocation6 + $0x2a0] sm:$0xff]
        %v1784 = vld [vmem:[#allocation6 + $0x2a8] sm:$0xff]
        %v1785 = vld [vmem:[#allocation6 + $0x2b0] sm:$0xff]
        %v1786 = vld [vmem:[#allocation6 + $0x2b8] sm:$0xff]
        %v1787 = vld [vmem:[#allocation6 + $0x2c0] sm:$0xff]
        %v1788 = vld [vmem:[#allocation6 + $0x2c8] sm:$0xff]
        %v1789 = vld [vmem:[#allocation6 + $0x2d0] sm:$0xff]
        %v1790 = vld [vmem:[#allocation6 + $0x2d8] sm:$0xff]
        %v1791 = vld [vmem:[#allocation6 + $0x2e0] sm:$0xff]
        %v1792 = vld [vmem:[#allocation6 + $0x2e8] sm:$0xff]
        %v1793 = vld [vmem:[#allocation6 + $0x2f0] sm:$0xff]
        %v1794 = vld [vmem:[#allocation6 + $0x2f8] sm:$0xff]
        %v1795 = vld [vmem:[#allocation6 + $0x300] sm:$0xff]
        %v1796 = vld [vmem:[#allocation6 + $0x308] sm:$0xff]
        %v1797 = vld [vmem:[#allocation6 + $0x310] sm:$0xff]
        %v1798 = vld [vmem:[#allocation6 + $0x318] sm:$0xff]
        %v1799 = vld [vmem:[#allocation6 + $0x320] sm:$0xff]
        %v1800 = vld [vmem:[#allocation6 + $0x328] sm:$0xff]
        %v1801 = vld [vmem:[#allocation6 + $0x330] sm:$0xff]
        %v1802 = vld [vmem:[#allocation6 + $0x338] sm:$0xff]
        %v1803 = vld [vmem:[#allocation6 + $0x340] sm:$0xff]
        %v1804 = vld [vmem:[#allocation6 + $0x348] sm:$0xff]
        %v1805 = vld [vmem:[#allocation6 + $0x350] sm:$0xff]
        %v1806 = vld [vmem:[#allocation6 + $0x358] sm:$0xff]
        %v1807 = vld [vmem:[#allocation6 + $0x360] sm:$0xff]
        %v1808 = vld [vmem:[#allocation6 + $0x368] sm:$0xff]
        %v1809 = vld [vmem:[#allocation6 + $0x370] sm:$0xff]
        %v1810 = vld [vmem:[#allocation6 + $0x378] sm:$0xff]
        %v1811 = vld [vmem:[#allocation6 + $0x380] sm:$0xff]
        %v1812 = vld [vmem:[#allocation6 + $0x388] sm:$0xff]
        %v1813 = vld [vmem:[#allocation6 + $0x390] sm:$0xff]
        %v1814 = vld [vmem:[#allocation6 + $0x398] sm:$0xff]
        %v1815 = vld [vmem:[#allocation6 + $0x3a0] sm:$0xff]
        %v1816 = vld [vmem:[#allocation6 + $0x3a8] sm:$0xff]
        %v1817 = vld [vmem:[#allocation6 + $0x3b0] sm:$0xff]
        %v1818 = vld [vmem:[#allocation6 + $0x3b8] sm:$0xff]
        %v1819 = vld [vmem:[#allocation6 + $0x3c0] sm:$0xff]
        %v1820 = vld [vmem:[#allocation6 + $0x3c8] sm:$0xff]
        %v1821 = vld [vmem:[#allocation6 + $0x3d0] sm:$0xff]
        %v1822 = vld [vmem:[#allocation6 + $0x3d8] sm:$0xff]
        %v1823 = vld [vmem:[#allocation6 + $0x3e0] sm:$0xff]
        %v1824 = vld [vmem:[#allocation6 + $0x3e8] sm:$0xff]
        %v1825 = vld [vmem:[#allocation6 + $0x3f0] sm:$0xff]
        %v1826 = vld [vmem:[#allocation6 + $0x3f8] sm:$0xff]
        %v1827 = vld [vmem:[#allocation7] sm:$0xf]
        %v1829 = vperm.slane %v1827, 0
        %v1830 = vperm.slane %v1827, 1
        %v1831 = vperm.slane %v1827, 2
        %v1832 = vperm.slane %v1827, 3
        %v1965 = vunpack.c.l.b16 %v1699
        %v1966 = vunpack.c.h.b16 %v1699
        %v1967 = vunpack.c.l.b16 %v1700
        %v1968 = vunpack.c.h.b16 %v1700
        %v1969 = vunpack.c.l.b16 %v1701
        %v1970 = vunpack.c.h.b16 %v1701
        %v1971 = vunpack.c.l.b16 %v1702
        %v1972 = vunpack.c.h.b16 %v1702
        %v1973 = vunpack.c.l.b16 %v1703
        %v1974 = vunpack.c.h.b16 %v1703
        %v1975 = vunpack.c.l.b16 %v1704
        %v1976 = vunpack.c.h.b16 %v1704
        %v1977 = vunpack.c.l.b16 %v1705
        %v1978 = vunpack.c.h.b16 %v1705
        %v1979 = vunpack.c.l.b16 %v1706
        %v1980 = vunpack.c.h.b16 %v1706
        %v1981 = vunpack.c.l.b16 %v1707
        %v1982 = vunpack.c.h.b16 %v1707
        %v1983 = vunpack.c.l.b16 %v1708
        %v1984 = vunpack.c.h.b16 %v1708
        %v1985 = vunpack.c.l.b16 %v1709
        %v1986 = vunpack.c.h.b16 %v1709
        %v1987 = vunpack.c.l.b16 %v1710
        %v1988 = vunpack.c.h.b16 %v1710
        %v1989 = vunpack.c.l.b16 %v1711
        %v1990 = vunpack.c.h.b16 %v1711
        %v1991 = vunpack.c.l.b16 %v1712
        %v1992 = vunpack.c.h.b16 %v1712
        %v1993 = vunpack.c.l.b16 %v1713
        %v1994 = vunpack.c.h.b16 %v1713
        %v1995 = vunpack.c.l.b16 %v1714
        %v1996 = vunpack.c.h.b16 %v1714
        %v1997 = vunpack.c.l.b16 %v1715
        %v1998 = vunpack.c.h.b16 %v1715
        %v1999 = vunpack.c.l.b16 %v1716
        %v2000 = vunpack.c.h.b16 %v1716
        %v2001 = vunpack.c.l.b16 %v1717
        %v2002 = vunpack.c.h.b16 %v1717
        %v2003 = vunpack.c.l.b16 %v1718
        %v2004 = vunpack.c.h.b16 %v1718
        %v2005 = vunpack.c.l.b16 %v1719
        %v2006 = vunpack.c.h.b16 %v1719
        %v2007 = vunpack.c.l.b16 %v1720
        %v2008 = vunpack.c.h.b16 %v1720
        %v2009 = vunpack.c.l.b16 %v1721
        %v2010 = vunpack.c.h.b16 %v1721
        %v2011 = vunpack.c.l.b16 %v1722
        %v2012 = vunpack.c.h.b16 %v1722
        %v2013 = vunpack.c.l.b16 %v1723
        %v2014 = vunpack.c.h.b16 %v1723
        %v2015 = vunpack.c.l.b16 %v1724
        %v2016 = vunpack.c.h.b16 %v1724
        %v2017 = vunpack.c.l.b16 %v1725
        %v2018 = vunpack.c.h.b16 %v1725
        %v2019 = vunpack.c.l.b16 %v1726
        %v2020 = vunpack.c.h.b16 %v1726
        %v2021 = vunpack.c.l.b16 %v1727
        %v2022 = vunpack.c.h.b16 %v1727
        %v2023 = vunpack.c.l.b16 %v1728
        %v2024 = vunpack.c.h.b16 %v1728
        %v2025 = vunpack.c.l.b16 %v1729
        %v2026 = vunpack.c.h.b16 %v1729
        %v2027 = vunpack.c.l.b16 %v1730
        %v2028 = vunpack.c.h.b16 %v1730
        %v2029 = vunpack.c.l.b16 %v1731
        %v2030 = vunpack.c.h.b16 %v1731
        %v2031 = vunpack.c.l.b16 %v1732
        %v2032 = vunpack.c.h.b16 %v1732
        %v2033 = vunpack.c.l.b16 %v1733
        %v2034 = vunpack.c.h.b16 %v1733
        %v2035 = vunpack.c.l.b16 %v1734
        %v2036 = vunpack.c.h.b16 %v1734
        %v2037 = vunpack.c.l.b16 %v1735
        %v2038 = vunpack.c.h.b16 %v1735
        %v2039 = vunpack.c.l.b16 %v1736
        %v2040 = vunpack.c.h.b16 %v1736
        %v2041 = vunpack.c.l.b16 %v1737
        %v2042 = vunpack.c.h.b16 %v1737
        %v2043 = vunpack.c.l.b16 %v1738
        %v2044 = vunpack.c.h.b16 %v1738
        %v2045 = vunpack.c.l.b16 %v1739
        %v2046 = vunpack.c.h.b16 %v1739
        %v2047 = vunpack.c.l.b16 %v1740
        %v2048 = vunpack.c.h.b16 %v1740
        %v2049 = vunpack.c.l.b16 %v1741
        %v2050 = vunpack.c.h.b16 %v1741
        %v2051 = vunpack.c.l.b16 %v1742
        %v2052 = vunpack.c.h.b16 %v1742
        %v2053 = vunpack.c.l.b16 %v1743
        %v2054 = vunpack.c.h.b16 %v1743
        %v2055 = vunpack.c.l.b16 %v1744
        %v2056 = vunpack.c.h.b16 %v1744
        %v2057 = vunpack.c.l.b16 %v1745
        %v2058 = vunpack.c.h.b16 %v1745
        %v2059 = vunpack.c.l.b16 %v1746
        %v2060 = vunpack.c.h.b16 %v1746
        %v2061 = vunpack.c.l.b16 %v1747
        %v2062 = vunpack.c.h.b16 %v1747
        %v2063 = vunpack.c.l.b16 %v1748
        %v2064 = vunpack.c.h.b16 %v1748
        %v2065 = vunpack.c.l.b16 %v1749
        %v2066 = vunpack.c.h.b16 %v1749
        %v2067 = vunpack.c.l.b16 %v1750
        %v2068 = vunpack.c.h.b16 %v1750
        %v2069 = vunpack.c.l.b16 %v1751
        %v2070 = vunpack.c.h.b16 %v1751
        %v2071 = vunpack.c.l.b16 %v1752
        %v2072 = vunpack.c.h.b16 %v1752
        %v2073 = vunpack.c.l.b16 %v1753
        %v2074 = vunpack.c.h.b16 %v1753
        %v2075 = vunpack.c.l.b16 %v1754
        %v2076 = vunpack.c.h.b16 %v1754
        %v2077 = vunpack.c.l.b16 %v1755
        %v2078 = vunpack.c.h.b16 %v1755
        %v2079 = vunpack.c.l.b16 %v1756
        %v2080 = vunpack.c.h.b16 %v1756
        %v2081 = vunpack.c.l.b16 %v1757
        %v2082 = vunpack.c.h.b16 %v1757
        %v2083 = vunpack.c.l.b16 %v1758
        %v2084 = vunpack.c.h.b16 %v1758
        %v2085 = vunpack.c.l.b16 %v1759
        %v2086 = vunpack.c.h.b16 %v1759
        %v2087 = vunpack.c.l.b16 %v1760
        %v2088 = vunpack.c.h.b16 %v1760
        %v2089 = vunpack.c.l.b16 %v1761
        %v2090 = vunpack.c.h.b16 %v1761
        %v2091 = vunpack.c.l.b16 %v1762
        %v2092 = vunpack.c.h.b16 %v1762
        %v2093 = vunpack.c.l.b16 %v1763
        %v2094 = vunpack.c.h.b16 %v1763
        %v2095 = vunpack.c.l.b16 %v1764
        %v2096 = vunpack.c.h.b16 %v1764
        %v2097 = vunpack.c.l.b16 %v1765
        %v2098 = vunpack.c.h.b16 %v1765
        %v2099 = vunpack.c.l.b16 %v1766
        %v2100 = vunpack.c.h.b16 %v1766
        %v2101 = vunpack.c.l.b16 %v1767
        %v2102 = vunpack.c.h.b16 %v1767
        %v2103 = vunpack.c.l.b16 %v1768
        %v2104 = vunpack.c.h.b16 %v1768
        %v2105 = vunpack.c.l.b16 %v1769
        %v2106 = vunpack.c.h.b16 %v1769
        %v2107 = vunpack.c.l.b16 %v1770
        %v2108 = vunpack.c.h.b16 %v1770
        %v2109 = vunpack.c.l.b16 %v1771
        %v2110 = vunpack.c.h.b16 %v1771
        %v2111 = vunpack.c.l.b16 %v1772
        %v2112 = vunpack.c.h.b16 %v1772
        %v2113 = vunpack.c.l.b16 %v1773
        %v2114 = vunpack.c.h.b16 %v1773
        %v2115 = vunpack.c.l.b16 %v1774
        %v2116 = vunpack.c.h.b16 %v1774
        %v2117 = vunpack.c.l.b16 %v1775
        %v2118 = vunpack.c.h.b16 %v1775
        %v2119 = vunpack.c.l.b16 %v1776
        %v2120 = vunpack.c.h.b16 %v1776
        %v2121 = vunpack.c.l.b16 %v1777
        %v2122 = vunpack.c.h.b16 %v1777
        %v2123 = vunpack.c.l.b16 %v1778
        %v2124 = vunpack.c.h.b16 %v1778
        %v2125 = vunpack.c.l.b16 %v1779
        %v2126 = vunpack.c.h.b16 %v1779
        %v2127 = vunpack.c.l.b16 %v1780
        %v2128 = vunpack.c.h.b16 %v1780
        %v2129 = vunpack.c.l.b16 %v1781
        %v2130 = vunpack.c.h.b16 %v1781
        %v2131 = vunpack.c.l.b16 %v1782
        %v2132 = vunpack.c.h.b16 %v1782
        %v2133 = vunpack.c.l.b16 %v1783
        %v2134 = vunpack.c.h.b16 %v1783
        %v2135 = vunpack.c.l.b16 %v1784
        %v2136 = vunpack.c.h.b16 %v1784
        %v2137 = vunpack.c.l.b16 %v1785
        %v2138 = vunpack.c.h.b16 %v1785
        %v2139 = vunpack.c.l.b16 %v1786
        %v2140 = vunpack.c.h.b16 %v1786
        %v2141 = vunpack.c.l.b16 %v1787
        %v2142 = vunpack.c.h.b16 %v1787
        %v2143 = vunpack.c.l.b16 %v1788
        %v2144 = vunpack.c.h.b16 %v1788
        %v2145 = vunpack.c.l.b16 %v1789
        %v2146 = vunpack.c.h.b16 %v1789
        %v2147 = vunpack.c.l.b16 %v1790
        %v2148 = vunpack.c.h.b16 %v1790
        %v2149 = vunpack.c.l.b16 %v1791
        %v2150 = vunpack.c.h.b16 %v1791
        %v2151 = vunpack.c.l.b16 %v1792
        %v2152 = vunpack.c.h.b16 %v1792
        %v2153 = vunpack.c.l.b16 %v1793
        %v2154 = vunpack.c.h.b16 %v1793
        %v2155 = vunpack.c.l.b16 %v1794
        %v2156 = vunpack.c.h.b16 %v1794
        %v2157 = vunpack.c.l.b16 %v1795
        %v2158 = vunpack.c.h.b16 %v1795
        %v2159 = vunpack.c.l.b16 %v1796
        %v2160 = vunpack.c.h.b16 %v1796
        %v2161 = vunpack.c.l.b16 %v1797
        %v2162 = vunpack.c.h.b16 %v1797
        %v2163 = vunpack.c.l.b16 %v1798
        %v2164 = vunpack.c.h.b16 %v1798
        %v2165 = vunpack.c.l.b16 %v1799
        %v2166 = vunpack.c.h.b16 %v1799
        %v2167 = vunpack.c.l.b16 %v1800
        %v2168 = vunpack.c.h.b16 %v1800
        %v2169 = vunpack.c.l.b16 %v1801
        %v2170 = vunpack.c.h.b16 %v1801
        %v2171 = vunpack.c.l.b16 %v1802
        %v2172 = vunpack.c.h.b16 %v1802
        %v2173 = vunpack.c.l.b16 %v1803
        %v2174 = vunpack.c.h.b16 %v1803
        %v2175 = vunpack.c.l.b16 %v1804
        %v2176 = vunpack.c.h.b16 %v1804
        %v2177 = vunpack.c.l.b16 %v1805
        %v2178 = vunpack.c.h.b16 %v1805
        %v2179 = vunpack.c.l.b16 %v1806
        %v2180 = vunpack.c.h.b16 %v1806
        %v2181 = vunpack.c.l.b16 %v1807
        %v2182 = vunpack.c.h.b16 %v1807
        %v2183 = vunpack.c.l.b16 %v1808
        %v2184 = vunpack.c.h.b16 %v1808
        %v2185 = vunpack.c.l.b16 %v1809
        %v2186 = vunpack.c.h.b16 %v1809
        %v2187 = vunpack.c.l.b16 %v1810
        %v2188 = vunpack.c.h.b16 %v1810
        %v2189 = vunpack.c.l.b16 %v1811
        %v2190 = vunpack.c.h.b16 %v1811
        %v2191 = vunpack.c.l.b16 %v1812
        %v2192 = vunpack.c.h.b16 %v1812
        %v2193 = vunpack.c.l.b16 %v1813
        %v2194 = vunpack.c.h.b16 %v1813
        %v2195 = vunpack.c.l.b16 %v1814
        %v2196 = vunpack.c.h.b16 %v1814
        %v2197 = vunpack.c.l.b16 %v1815
        %v2198 = vunpack.c.h.b16 %v1815
        %v2199 = vunpack.c.l.b16 %v1816
        %v2200 = vunpack.c.h.b16 %v1816
        %v2201 = vunpack.c.l.b16 %v1817
        %v2202 = vunpack.c.h.b16 %v1817
        %v2203 = vunpack.c.l.b16 %v1818
        %v2204 = vunpack.c.h.b16 %v1818
        %v2205 = vunpack.c.l.b16 %v1819
        %v2206 = vunpack.c.h.b16 %v1819
        %v2207 = vunpack.c.l.b16 %v1820
        %v2208 = vunpack.c.h.b16 %v1820
        %v2209 = vunpack.c.l.b16 %v1821
        %v2210 = vunpack.c.h.b16 %v1821
        %v2211 = vunpack.c.l.b16 %v1822
        %v2212 = vunpack.c.h.b16 %v1822
        %v2213 = vunpack.c.l.b16 %v1823
        %v2214 = vunpack.c.h.b16 %v1823
        %v2215 = vunpack.c.l.b16 %v1824
        %v2216 = vunpack.c.h.b16 %v1824
        %v2217 = vunpack.c.l.b16 %v1825
        %v2218 = vunpack.c.h.b16 %v1825
        %v2219 = vunpack.c.l.b16 %v1826
        %v2220 = vunpack.c.h.b16 %v1826
        %v2221 = vpack.c.b16 %v1969, %v1965
        %v2222 = vpack.c.b16 %v1970, %v1966
        %v2223 = vpack.c.b16 %v1971, %v1967
        %v2224 = vpack.c.b16 %v1972, %v1968
        %v2225 = vpack.c.b16 %v1977, %v1973
        %v2226 = vpack.c.b16 %v1978, %v1974
        %v2227 = vpack.c.b16 %v1979, %v1975
        %v2228 = vpack.c.b16 %v1980, %v1976
        %v2229 = vpack.c.b16 %v1985, %v1981
        %v2230 = vpack.c.b16 %v1986, %v1982
        %v2231 = vpack.c.b16 %v1987, %v1983
        %v2232 = vpack.c.b16 %v1988, %v1984
        %v2233 = vpack.c.b16 %v1993, %v1989
        %v2234 = vpack.c.b16 %v1994, %v1990
        %v2235 = vpack.c.b16 %v1995, %v1991
        %v2236 = vpack.c.b16 %v1996, %v1992
        %v2237 = vpack.c.b16 %v2001, %v1997
        %v2238 = vpack.c.b16 %v2002, %v1998
        %v2239 = vpack.c.b16 %v2003, %v1999
        %v2240 = vpack.c.b16 %v2004, %v2000
        %v2241 = vpack.c.b16 %v2009, %v2005
        %v2242 = vpack.c.b16 %v2010, %v2006
        %v2243 = vpack.c.b16 %v2011, %v2007
        %v2244 = vpack.c.b16 %v2012, %v2008
        %v2245 = vpack.c.b16 %v2017, %v2013
        %v2246 = vpack.c.b16 %v2018, %v2014
        %v2247 = vpack.c.b16 %v2019, %v2015
        %v2248 = vpack.c.b16 %v2020, %v2016
        %v2249 = vpack.c.b16 %v2025, %v2021
        %v2250 = vpack.c.b16 %v2026, %v2022
        %v2251 = vpack.c.b16 %v2027, %v2023
        %v2252 = vpack.c.b16 %v2028, %v2024
        %v2253 = vpack.c.b16 %v2033, %v2029
        %v2254 = vpack.c.b16 %v2034, %v2030
        %v2255 = vpack.c.b16 %v2035, %v2031
        %v2256 = vpack.c.b16 %v2036, %v2032
        %v2257 = vpack.c.b16 %v2041, %v2037
        %v2258 = vpack.c.b16 %v2042, %v2038
        %v2259 = vpack.c.b16 %v2043, %v2039
        %v2260 = vpack.c.b16 %v2044, %v2040
        %v2261 = vpack.c.b16 %v2049, %v2045
        %v2262 = vpack.c.b16 %v2050, %v2046
        %v2263 = vpack.c.b16 %v2051, %v2047
        %v2264 = vpack.c.b16 %v2052, %v2048
        %v2265 = vpack.c.b16 %v2057, %v2053
        %v2266 = vpack.c.b16 %v2058, %v2054
        %v2267 = vpack.c.b16 %v2059, %v2055
        %v2268 = vpack.c.b16 %v2060, %v2056
        %v2269 = vpack.c.b16 %v2065, %v2061
        %v2270 = vpack.c.b16 %v2066, %v2062
        %v2271 = vpack.c.b16 %v2067, %v2063
        %v2272 = vpack.c.b16 %v2068, %v2064
        %v2273 = vpack.c.b16 %v2073, %v2069
        %v2274 = vpack.c.b16 %v2074, %v2070
        %v2275 = vpack.c.b16 %v2075, %v2071
        %v2276 = vpack.c.b16 %v2076, %v2072
        %v2277 = vpack.c.b16 %v2081, %v2077
        %v2278 = vpack.c.b16 %v2082, %v2078
        %v2279 = vpack.c.b16 %v2083, %v2079
        %v2280 = vpack.c.b16 %v2084, %v2080
        %v2281 = vpack.c.b16 %v2089, %v2085
        %v2282 = vpack.c.b16 %v2090, %v2086
        %v2283 = vpack.c.b16 %v2091, %v2087
        %v2284 = vpack.c.b16 %v2092, %v2088
        %v2285 = vpack.c.b16 %v2097, %v2093
        %v2286 = vpack.c.b16 %v2098, %v2094
        %v2287 = vpack.c.b16 %v2099, %v2095
        %v2288 = vpack.c.b16 %v2100, %v2096
        %v2289 = vpack.c.b16 %v2105, %v2101
        %v2290 = vpack.c.b16 %v2106, %v2102
        %v2291 = vpack.c.b16 %v2107, %v2103
        %v2292 = vpack.c.b16 %v2108, %v2104
        %v2293 = vpack.c.b16 %v2113, %v2109
        %v2294 = vpack.c.b16 %v2114, %v2110
        %v2295 = vpack.c.b16 %v2115, %v2111
        %v2296 = vpack.c.b16 %v2116, %v2112
        %v2297 = vpack.c.b16 %v2121, %v2117
        %v2298 = vpack.c.b16 %v2122, %v2118
        %v2299 = vpack.c.b16 %v2123, %v2119
        %v2300 = vpack.c.b16 %v2124, %v2120
        %v2301 = vpack.c.b16 %v2129, %v2125
        %v2302 = vpack.c.b16 %v2130, %v2126
        %v2303 = vpack.c.b16 %v2131, %v2127
        %v2304 = vpack.c.b16 %v2132, %v2128
        %v2305 = vpack.c.b16 %v2137, %v2133
        %v2306 = vpack.c.b16 %v2138, %v2134
        %v2307 = vpack.c.b16 %v2139, %v2135
        %v2308 = vpack.c.b16 %v2140, %v2136
        %v2309 = vpack.c.b16 %v2145, %v2141
        %v2310 = vpack.c.b16 %v2146, %v2142
        %v2311 = vpack.c.b16 %v2147, %v2143
        %v2312 = vpack.c.b16 %v2148, %v2144
        %v2313 = vpack.c.b16 %v2153, %v2149
        %v2314 = vpack.c.b16 %v2154, %v2150
        %v2315 = vpack.c.b16 %v2155, %v2151
        %v2316 = vpack.c.b16 %v2156, %v2152
        %v2317 = vpack.c.b16 %v2161, %v2157
        %v2318 = vpack.c.b16 %v2162, %v2158
        %v2319 = vpack.c.b16 %v2163, %v2159
        %v2320 = vpack.c.b16 %v2164, %v2160
        %v2321 = vpack.c.b16 %v2169, %v2165
        %v2322 = vpack.c.b16 %v2170, %v2166
        %v2323 = vpack.c.b16 %v2171, %v2167
        %v2324 = vpack.c.b16 %v2172, %v2168
        %v2325 = vpack.c.b16 %v2177, %v2173
        %v2326 = vpack.c.b16 %v2178, %v2174
        %v2327 = vpack.c.b16 %v2179, %v2175
        %v2328 = vpack.c.b16 %v2180, %v2176
        %v2329 = vpack.c.b16 %v2185, %v2181
        %v2330 = vpack.c.b16 %v2186, %v2182
        %v2331 = vpack.c.b16 %v2187, %v2183
        %v2332 = vpack.c.b16 %v2188, %v2184
        %v2333 = vpack.c.b16 %v2193, %v2189
        %v2334 = vpack.c.b16 %v2194, %v2190
        %v2335 = vpack.c.b16 %v2195, %v2191
        %v2336 = vpack.c.b16 %v2196, %v2192
        %v2337 = vpack.c.b16 %v2201, %v2197
        %v2338 = vpack.c.b16 %v2202, %v2198
        %v2339 = vpack.c.b16 %v2203, %v2199
        %v2340 = vpack.c.b16 %v2204, %v2200
        %v2341 = vpack.c.b16 %v2209, %v2205
        %v2342 = vpack.c.b16 %v2210, %v2206
        %v2343 = vpack.c.b16 %v2211, %v2207
        %v2344 = vpack.c.b16 %v2212, %v2208
        %v2345 = vpack.c.b16 %v2217, %v2213
        %v2346 = vpack.c.b16 %v2218, %v2214
        %v2347 = vpack.c.b16 %v2219, %v2215
        %v2348 = vpack.c.b16 %v2220, %v2216
        %2477 = vmatpush.bf16.msra.mxu0 %v2249
        %2478 = vmatpush.bf16.msra.mxu0 %v2245
        %2479 = vmatpush.bf16.msra.mxu0 %v2241
        %2480 = vmatpush.bf16.msra.mxu0 %v2237
        %2481 = vmatpush.bf16.msra.mxu0 %v2233
        %2482 = vmatpush.bf16.msra.mxu0 %v2229
        %2483 = vmatpush.bf16.msra.mxu0 %v2225
        %2484 = vmatpush.bf16.msra.mxu0 %v2221
        %2485 = vmatmul.bf16.gmra.mxu0 %v1695
        %v2486 = vpop.f32.mrf.mxu0
        %v2487 = vadd.f32 %v1829, %v2486
        %v2488 = vpop.f32.mrf.mxu0
        %v2489 = vadd.f32 %v1829, %v2488
        %2490 = vdwg.mxu0
        %2491 = vmatpush.bf16.msra.mxu0 %v2281
        %2492 = vmatpush.bf16.msra.mxu0 %v2277
        %2493 = vmatpush.bf16.msra.mxu0 %v2273
        %2494 = vmatpush.bf16.msra.mxu0 %v2269
        %2495 = vmatpush.bf16.msra.mxu0 %v2265
        %2496 = vmatpush.bf16.msra.mxu0 %v2261
        %2497 = vmatpush.bf16.msra.mxu0 %v2257
        %2498 = vmatpush.bf16.msra.mxu0 %v2253
        %2499 = vmatmul.bf16.gmra.mxu0 %v1696
        %v2500 = vpop.f32.mrf.mxu0
        %v2501 = vadd.f32 %v2487, %v2500
        %v2502 = vpop.f32.mrf.mxu0
        %v2503 = vadd.f32 %v2489, %v2502
        %2504 = vdwg.mxu0
        %2505 = vmatpush.bf16.msra.mxu0 %v2313
        %2506 = vmatpush.bf16.msra.mxu0 %v2309
        %2507 = vmatpush.bf16.msra.mxu0 %v2305
        %2508 = vmatpush.bf16.msra.mxu0 %v2301
        %2509 = vmatpush.bf16.msra.mxu0 %v2297
        %2510 = vmatpush.bf16.msra.mxu0 %v2293
        %2511 = vmatpush.bf16.msra.mxu0 %v2289
        %2512 = vmatpush.bf16.msra.mxu0 %v2285
        %2513 = vmatmul.bf16.gmra.mxu0 %v1697
        %v2514 = vpop.f32.mrf.mxu0
        %v2515 = vadd.f32 %v2501, %v2514
        %v2516 = vpop.f32.mrf.mxu0
        %v2517 = vadd.f32 %v2503, %v2516
        %2518 = vdwg.mxu0
        %2519 = vmatpush.bf16.msra.mxu0 %v2345
        %2520 = vmatpush.bf16.msra.mxu0 %v2341
        %2521 = vmatpush.bf16.msra.mxu0 %v2337
        %2522 = vmatpush.bf16.msra.mxu0 %v2333
        %2523 = vmatpush.bf16.msra.mxu0 %v2329
        %2524 = vmatpush.bf16.msra.mxu0 %v2325
        %2525 = vmatpush.bf16.msra.mxu0 %v2321
        %2526 = vmatpush.bf16.msra.mxu0 %v2317
        %2527 = vmatmul.bf16.gmra.mxu0 %v1698
        %v2528 = vpop.f32.mrf.mxu0
        %v2529 = vadd.f32 %v2515, %v2528
        %v2530 = vpop.f32.mrf.mxu0
        %v2531 = vadd.f32 %v2517, %v2530
        %2532 = vdwg.mxu0
        %2533 = vmatpush.bf16.msra.mxu0 %v2250
        %2534 = vmatpush.bf16.msra.mxu0 %v2246
        %2535 = vmatpush.bf16.msra.mxu0 %v2242
        %2536 = vmatpush.bf16.msra.mxu0 %v2238
        %2537 = vmatpush.bf16.msra.mxu0 %v2234
        %2538 = vmatpush.bf16.msra.mxu0 %v2230
        %2539 = vmatpush.bf16.msra.mxu0 %v2226
        %2540 = vmatpush.bf16.msra.mxu0 %v2222
        %2541 = vmatmul.bf16.gmra.mxu0 %v1695
        %v2542 = vpop.f32.mrf.mxu0
        %v2543 = vadd.f32 %v1830, %v2542
        %v2544 = vpop.f32.mrf.mxu0
        %v2545 = vadd.f32 %v1830, %v2544
        %2546 = vdwg.mxu0
        %2547 = vmatpush.bf16.msra.mxu0 %v2282
        %2548 = vmatpush.bf16.msra.mxu0 %v2278
        %2549 = vmatpush.bf16.msra.mxu0 %v2274
        %2550 = vmatpush.bf16.msra.mxu0 %v2270
        %2551 = vmatpush.bf16.msra.mxu0 %v2266
        %2552 = vmatpush.bf16.msra.mxu0 %v2262
        %2553 = vmatpush.bf16.msra.mxu0 %v2258
        %2554 = vmatpush.bf16.msra.mxu0 %v2254
        %2555 = vmatmul.bf16.gmra.mxu0 %v1696
        %v2556 = vpop.f32.mrf.mxu0
        %v2557 = vadd.f32 %v2543, %v2556
        %v2558 = vpop.f32.mrf.mxu0
        %v2559 = vadd.f32 %v2545, %v2558
        %2560 = vdwg.mxu0
        %2561 = vmatpush.bf16.msra.mxu0 %v2314
        %2562 = vmatpush.bf16.msra.mxu0 %v2310
        %2563 = vmatpush.bf16.msra.mxu0 %v2306
        %2564 = vmatpush.bf16.msra.mxu0 %v2302
        %2565 = vmatpush.bf16.msra.mxu0 %v2298
        %2566 = vmatpush.bf16.msra.mxu0 %v2294
        %2567 = vmatpush.bf16.msra.mxu0 %v2290
        %2568 = vmatpush.bf16.msra.mxu0 %v2286
        %2569 = vmatmul.bf16.gmra.mxu0 %v1697
        %v2570 = vpop.f32.mrf.mxu0
        %v2571 = vadd.f32 %v2557, %v2570
        %v2572 = vpop.f32.mrf.mxu0
        %v2573 = vadd.f32 %v2559, %v2572
        %2574 = vdwg.mxu0
        %2575 = vmatpush.bf16.msra.mxu0 %v2346
        %2576 = vmatpush.bf16.msra.mxu0 %v2342
        %2577 = vmatpush.bf16.msra.mxu0 %v2338
        %2578 = vmatpush.bf16.msra.mxu0 %v2334
        %2579 = vmatpush.bf16.msra.mxu0 %v2330
        %2580 = vmatpush.bf16.msra.mxu0 %v2326
        %2581 = vmatpush.bf16.msra.mxu0 %v2322
        %2582 = vmatpush.bf16.msra.mxu0 %v2318
        %2583 = vmatmul.bf16.gmra.mxu0 %v1698
        %v2584 = vpop.f32.mrf.mxu0
        %v2585 = vadd.f32 %v2571, %v2584
        %v2586 = vpop.f32.mrf.mxu0
        %v2587 = vadd.f32 %v2573, %v2586
        %2588 = vdwg.mxu0
        %2589 = vmatpush.bf16.msra.mxu0 %v2251
        %2590 = vmatpush.bf16.msra.mxu0 %v2247
        %2591 = vmatpush.bf16.msra.mxu0 %v2243
        %2592 = vmatpush.bf16.msra.mxu0 %v2239
        %2593 = vmatpush.bf16.msra.mxu0 %v2235
        %2594 = vmatpush.bf16.msra.mxu0 %v2231
        %2595 = vmatpush.bf16.msra.mxu0 %v2227
        %2596 = vmatpush.bf16.msra.mxu0 %v2223
        %2597 = vmatmul.bf16.gmra.mxu0 %v1695
        %v2598 = vpop.f32.mrf.mxu0
        %v2599 = vadd.f32 %v1831, %v2598
        %v2600 = vpop.f32.mrf.mxu0
        %v2601 = vadd.f32 %v1831, %v2600
        %2602 = vdwg.mxu0
        %2603 = vmatpush.bf16.msra.mxu0 %v2283
        %2604 = vmatpush.bf16.msra.mxu0 %v2279
        %2605 = vmatpush.bf16.msra.mxu0 %v2275
        %2606 = vmatpush.bf16.msra.mxu0 %v2271
        %2607 = vmatpush.bf16.msra.mxu0 %v2267
        %2608 = vmatpush.bf16.msra.mxu0 %v2263
        %2609 = vmatpush.bf16.msra.mxu0 %v2259
        %2610 = vmatpush.bf16.msra.mxu0 %v2255
        %2611 = vmatmul.bf16.gmra.mxu0 %v1696
        %v2612 = vpop.f32.mrf.mxu0
        %v2613 = vadd.f32 %v2599, %v2612
        %v2614 = vpop.f32.mrf.mxu0
        %v2615 = vadd.f32 %v2601, %v2614
        %2616 = vdwg.mxu0
        %2617 = vmatpush.bf16.msra.mxu0 %v2315
        %2618 = vmatpush.bf16.msra.mxu0 %v2311
        %2619 = vmatpush.bf16.msra.mxu0 %v2307
        %2620 = vmatpush.bf16.msra.mxu0 %v2303
        %2621 = vmatpush.bf16.msra.mxu0 %v2299
        %2622 = vmatpush.bf16.msra.mxu0 %v2295
        %2623 = vmatpush.bf16.msra.mxu0 %v2291
        %2624 = vmatpush.bf16.msra.mxu0 %v2287
        %2625 = vmatmul.bf16.gmra.mxu0 %v1697
        %v2626 = vpop.f32.mrf.mxu0
        %v2627 = vadd.f32 %v2613, %v2626
        %v2628 = vpop.f32.mrf.mxu0
        %v2629 = vadd.f32 %v2615, %v2628
        %2630 = vdwg.mxu0
        %2631 = vmatpush.bf16.msra.mxu0 %v2347
        %2632 = vmatpush.bf16.msra.mxu0 %v2343
        %2633 = vmatpush.bf16.msra.mxu0 %v2339
        %2634 = vmatpush.bf16.msra.mxu0 %v2335
        %2635 = vmatpush.bf16.msra.mxu0 %v2331
        %2636 = vmatpush.bf16.msra.mxu0 %v2327
        %2637 = vmatpush.bf16.msra.mxu0 %v2323
        %2638 = vmatpush.bf16.msra.mxu0 %v2319
        %2639 = vmatmul.bf16.gmra.mxu0 %v1698
        %v2640 = vpop.f32.mrf.mxu0
        %v2641 = vadd.f32 %v2627, %v2640
        %v2642 = vpop.f32.mrf.mxu0
        %v2643 = vadd.f32 %v2629, %v2642
        %2644 = vdwg.mxu0
        %2645 = vmatpush.bf16.msra.mxu0 %v2252
        %2646 = vmatpush.bf16.msra.mxu0 %v2248
        %2647 = vmatpush.bf16.msra.mxu0 %v2244
        %2648 = vmatpush.bf16.msra.mxu0 %v2240
        %2649 = vmatpush.bf16.msra.mxu0 %v2236
        %2650 = vmatpush.bf16.msra.mxu0 %v2232
        %2651 = vmatpush.bf16.msra.mxu0 %v2228
        %2652 = vmatpush.bf16.msra.mxu0 %v2224
        %2653 = vmatmul.bf16.gmra.mxu0 %v1695
        %v2654 = vpop.f32.mrf.mxu0
        %v2655 = vadd.f32 %v1832, %v2654
        %v2656 = vpop.f32.mrf.mxu0
        %v2657 = vadd.f32 %v1832, %v2656
        %2658 = vdwg.mxu0
        %2659 = vmatpush.bf16.msra.mxu0 %v2284
        %2660 = vmatpush.bf16.msra.mxu0 %v2280
        %2661 = vmatpush.bf16.msra.mxu0 %v2276
        %2662 = vmatpush.bf16.msra.mxu0 %v2272
        %2663 = vmatpush.bf16.msra.mxu0 %v2268
        %2664 = vmatpush.bf16.msra.mxu0 %v2264
        %2665 = vmatpush.bf16.msra.mxu0 %v2260
        %2666 = vmatpush.bf16.msra.mxu0 %v2256
        %2667 = vmatmul.bf16.gmra.mxu0 %v1696
        %v2668 = vpop.f32.mrf.mxu0
        %v2669 = vadd.f32 %v2655, %v2668
        %v2670 = vpop.f32.mrf.mxu0
        %v2671 = vadd.f32 %v2657, %v2670
        %2672 = vdwg.mxu0
        %2673 = vmatpush.bf16.msra.mxu0 %v2316
        %2674 = vmatpush.bf16.msra.mxu0 %v2312
        %2675 = vmatpush.bf16.msra.mxu0 %v2308
        %2676 = vmatpush.bf16.msra.mxu0 %v2304
        %2677 = vmatpush.bf16.msra.mxu0 %v2300
        %2678 = vmatpush.bf16.msra.mxu0 %v2296
        %2679 = vmatpush.bf16.msra.mxu0 %v2292
        %2680 = vmatpush.bf16.msra.mxu0 %v2288
        %2681 = vmatmul.bf16.gmra.mxu0 %v1697
        %v2682 = vpop.f32.mrf.mxu0
        %v2683 = vadd.f32 %v2669, %v2682
        %v2684 = vpop.f32.mrf.mxu0
        %v2685 = vadd.f32 %v2671, %v2684
        %2686 = vdwg.mxu0
        %2687 = vmatpush.bf16.msra.mxu0 %v2348
        %2688 = vmatpush.bf16.msra.mxu0 %v2344
        %2689 = vmatpush.bf16.msra.mxu0 %v2340
        %2690 = vmatpush.bf16.msra.mxu0 %v2336
        %2691 = vmatpush.bf16.msra.mxu0 %v2332
        %2692 = vmatpush.bf16.msra.mxu0 %v2328
        %2693 = vmatpush.bf16.msra.mxu0 %v2324
        %2694 = vmatpush.bf16.msra.mxu0 %v2320
        %2695 = vmatmul.bf16.gmra.mxu0 %v1698
        %v2696 = vpop.f32.mrf.mxu0
        %v2697 = vadd.f32 %v2683, %v2696
        %v2698 = vpop.f32.mrf.mxu0
        %v2699 = vadd.f32 %v2685, %v2698
        %2700 = vdwg.mxu0
        %v2701 = vmax.f32 %v2529, 0.0
        %v2702 = vmax.f32 %v2585, 0.0
        %v2703 = vmax.f32 %v2641, 0.0
        %v2704 = vmax.f32 %v2697, 0.0
        %v2705 = vmax.f32 %v2531, 0.0
        %v2706 = vmax.f32 %v2587, 0.0
        %v2707 = vmax.f32 %v2643, 0.0
        %v2708 = vmax.f32 %v2699, 0.0
        %v2709 = vpack.c.bf16 %v2705, %v2701
        %v2710 = vpack.c.bf16 %v2706, %v2702
        %v2711 = vpack.c.bf16 %v2707, %v2703
        %v2712 = vpack.c.bf16 %v2708, %v2704
        %v2713 = vld [vmem:[#allocation9] sm:$0xff]
        %v2714 = vld [vmem:[#allocation9 + $0x8] sm:$0xff]
        %v2715 = vld [vmem:[#allocation9 + $0x10] sm:$0xff]
        %v2716 = vld [vmem:[#allocation9 + $0x18] sm:$0xff]
        %v2717 = vld [vmem:[#allocation9 + $0x20] sm:$0xff]
        %v2718 = vld [vmem:[#allocation9 + $0x28] sm:$0xff]
        %v2719 = vld [vmem:[#allocation9 + $0x30] sm:$0xff]
        %v2720 = vld [vmem:[#allocation9 + $0x38] sm:$0xff]
        %v2721 = vld [vmem:[#allocation9 + $0x40] sm:$0xff]
        %v2722 = vld [vmem:[#allocation9 + $0x48] sm:$0xff]
        %v2723 = vld [vmem:[#allocation9 + $0x50] sm:$0xff]
        %v2724 = vld [vmem:[#allocation9 + $0x58] sm:$0xff]
        %v2725 = vld [vmem:[#allocation9 + $0x60] sm:$0xff]
        %v2726 = vld [vmem:[#allocation9 + $0x68] sm:$0xff]
        %v2727 = vld [vmem:[#allocation9 + $0x70] sm:$0xff]
        %v2728 = vld [vmem:[#allocation9 + $0x78] sm:$0xff]
        %v2729 = vld [vmem:[#allocation9 + $0x80] sm:$0xff]
        %v2730 = vld [vmem:[#allocation9 + $0x88] sm:$0xff]
        %v2731 = vld [vmem:[#allocation9 + $0x90] sm:$0xff]
        %v2732 = vld [vmem:[#allocation9 + $0x98] sm:$0xff]
        %v2733 = vld [vmem:[#allocation9 + $0xa0] sm:$0xff]
        %v2734 = vld [vmem:[#allocation9 + $0xa8] sm:$0xff]
        %v2735 = vld [vmem:[#allocation9 + $0xb0] sm:$0xff]
        %v2736 = vld [vmem:[#allocation9 + $0xb8] sm:$0xff]
        %v2737 = vld [vmem:[#allocation9 + $0xc0] sm:$0xff]
        %v2738 = vld [vmem:[#allocation9 + $0xc8] sm:$0xff]
        %v2739 = vld [vmem:[#allocation9 + $0xd0] sm:$0xff]
        %v2740 = vld [vmem:[#allocation9 + $0xd8] sm:$0xff]
        %v2741 = vld [vmem:[#allocation9 + $0xe0] sm:$0xff]
        %v2742 = vld [vmem:[#allocation9 + $0xe8] sm:$0xff]
        %v2743 = vld [vmem:[#allocation9 + $0xf0] sm:$0xff]
        %v2744 = vld [vmem:[#allocation9 + $0xf8] sm:$0xff]
        %v2745 = vld [vmem:[#allocation9 + $0x100] sm:$0xff]
        %v2746 = vld [vmem:[#allocation9 + $0x108] sm:$0xff]
        %v2747 = vld [vmem:[#allocation9 + $0x110] sm:$0xff]
        %v2748 = vld [vmem:[#allocation9 + $0x118] sm:$0xff]
        %v2749 = vld [vmem:[#allocation9 + $0x120] sm:$0xff]
        %v2750 = vld [vmem:[#allocation9 + $0x128] sm:$0xff]
        %v2751 = vld [vmem:[#allocation9 + $0x130] sm:$0xff]
        %v2752 = vld [vmem:[#allocation9 + $0x138] sm:$0xff]
        %v2753 = vld [vmem:[#allocation9 + $0x140] sm:$0xff]
        %v2754 = vld [vmem:[#allocation9 + $0x148] sm:$0xff]
        %v2755 = vld [vmem:[#allocation9 + $0x150] sm:$0xff]
        %v2756 = vld [vmem:[#allocation9 + $0x158] sm:$0xff]
        %v2757 = vld [vmem:[#allocation9 + $0x160] sm:$0xff]
        %v2758 = vld [vmem:[#allocation9 + $0x168] sm:$0xff]
        %v2759 = vld [vmem:[#allocation9 + $0x170] sm:$0xff]
        %v2760 = vld [vmem:[#allocation9 + $0x178] sm:$0xff]
        %v2761 = vld [vmem:[#allocation9 + $0x180] sm:$0xff]
        %v2762 = vld [vmem:[#allocation9 + $0x188] sm:$0xff]
        %v2763 = vld [vmem:[#allocation9 + $0x190] sm:$0xff]
        %v2764 = vld [vmem:[#allocation9 + $0x198] sm:$0xff]
        %v2765 = vld [vmem:[#allocation9 + $0x1a0] sm:$0xff]
        %v2766 = vld [vmem:[#allocation9 + $0x1a8] sm:$0xff]
        %v2767 = vld [vmem:[#allocation9 + $0x1b0] sm:$0xff]
        %v2768 = vld [vmem:[#allocation9 + $0x1b8] sm:$0xff]
        %v2769 = vld [vmem:[#allocation9 + $0x1c0] sm:$0xff]
        %v2770 = vld [vmem:[#allocation9 + $0x1c8] sm:$0xff]
        %v2771 = vld [vmem:[#allocation9 + $0x1d0] sm:$0xff]
        %v2772 = vld [vmem:[#allocation9 + $0x1d8] sm:$0xff]
        %v2773 = vld [vmem:[#allocation9 + $0x1e0] sm:$0xff]
        %v2774 = vld [vmem:[#allocation9 + $0x1e8] sm:$0xff]
        %v2775 = vld [vmem:[#allocation9 + $0x1f0] sm:$0xff]
        %v2776 = vld [vmem:[#allocation9 + $0x1f8] sm:$0xff]
        %v2777 = vld [vmem:[#allocation9 + $0x200] sm:$0xff]
        %v2778 = vld [vmem:[#allocation9 + $0x208] sm:$0xff]
        %v2779 = vld [vmem:[#allocation9 + $0x210] sm:$0xff]
        %v2780 = vld [vmem:[#allocation9 + $0x218] sm:$0xff]
        %v2781 = vld [vmem:[#allocation9 + $0x220] sm:$0xff]
        %v2782 = vld [vmem:[#allocation9 + $0x228] sm:$0xff]
        %v2783 = vld [vmem:[#allocation9 + $0x230] sm:$0xff]
        %v2784 = vld [vmem:[#allocation9 + $0x238] sm:$0xff]
        %v2785 = vld [vmem:[#allocation9 + $0x240] sm:$0xff]
        %v2786 = vld [vmem:[#allocation9 + $0x248] sm:$0xff]
        %v2787 = vld [vmem:[#allocation9 + $0x250] sm:$0xff]
        %v2788 = vld [vmem:[#allocation9 + $0x258] sm:$0xff]
        %v2789 = vld [vmem:[#allocation9 + $0x260] sm:$0xff]
        %v2790 = vld [vmem:[#allocation9 + $0x268] sm:$0xff]
        %v2791 = vld [vmem:[#allocation9 + $0x270] sm:$0xff]
        %v2792 = vld [vmem:[#allocation9 + $0x278] sm:$0xff]
        %v2793 = vld [vmem:[#allocation9 + $0x280] sm:$0xff]
        %v2794 = vld [vmem:[#allocation9 + $0x288] sm:$0xff]
        %v2795 = vld [vmem:[#allocation9 + $0x290] sm:$0xff]
        %v2796 = vld [vmem:[#allocation9 + $0x298] sm:$0xff]
        %v2797 = vld [vmem:[#allocation9 + $0x2a0] sm:$0xff]
        %v2798 = vld [vmem:[#allocation9 + $0x2a8] sm:$0xff]
        %v2799 = vld [vmem:[#allocation9 + $0x2b0] sm:$0xff]
        %v2800 = vld [vmem:[#allocation9 + $0x2b8] sm:$0xff]
        %v2801 = vld [vmem:[#allocation9 + $0x2c0] sm:$0xff]
        %v2802 = vld [vmem:[#allocation9 + $0x2c8] sm:$0xff]
        %v2803 = vld [vmem:[#allocation9 + $0x2d0] sm:$0xff]
        %v2804 = vld [vmem:[#allocation9 + $0x2d8] sm:$0xff]
        %v2805 = vld [vmem:[#allocation9 + $0x2e0] sm:$0xff]
        %v2806 = vld [vmem:[#allocation9 + $0x2e8] sm:$0xff]
        %v2807 = vld [vmem:[#allocation9 + $0x2f0] sm:$0xff]
        %v2808 = vld [vmem:[#allocation9 + $0x2f8] sm:$0xff]
        %v2809 = vld [vmem:[#allocation9 + $0x300] sm:$0xff]
        %v2810 = vld [vmem:[#allocation9 + $0x308] sm:$0xff]
        %v2811 = vld [vmem:[#allocation9 + $0x310] sm:$0xff]
        %v2812 = vld [vmem:[#allocation9 + $0x318] sm:$0xff]
        %v2813 = vld [vmem:[#allocation9 + $0x320] sm:$0xff]
        %v2814 = vld [vmem:[#allocation9 + $0x328] sm:$0xff]
        %v2815 = vld [vmem:[#allocation9 + $0x330] sm:$0xff]
        %v2816 = vld [vmem:[#allocation9 + $0x338] sm:$0xff]
        %v2817 = vld [vmem:[#allocation9 + $0x340] sm:$0xff]
        %v2818 = vld [vmem:[#allocation9 + $0x348] sm:$0xff]
        %v2819 = vld [vmem:[#allocation9 + $0x350] sm:$0xff]
        %v2820 = vld [vmem:[#allocation9 + $0x358] sm:$0xff]
        %v2821 = vld [vmem:[#allocation9 + $0x360] sm:$0xff]
        %v2822 = vld [vmem:[#allocation9 + $0x368] sm:$0xff]
        %v2823 = vld [vmem:[#allocation9 + $0x370] sm:$0xff]
        %v2824 = vld [vmem:[#allocation9 + $0x378] sm:$0xff]
        %v2825 = vld [vmem:[#allocation9 + $0x380] sm:$0xff]
        %v2826 = vld [vmem:[#allocation9 + $0x388] sm:$0xff]
        %v2827 = vld [vmem:[#allocation9 + $0x390] sm:$0xff]
        %v2828 = vld [vmem:[#allocation9 + $0x398] sm:$0xff]
        %v2829 = vld [vmem:[#allocation9 + $0x3a0] sm:$0xff]
        %v2830 = vld [vmem:[#allocation9 + $0x3a8] sm:$0xff]
        %v2831 = vld [vmem:[#allocation9 + $0x3b0] sm:$0xff]
        %v2832 = vld [vmem:[#allocation9 + $0x3b8] sm:$0xff]
        %v2833 = vld [vmem:[#allocation9 + $0x3c0] sm:$0xff]
        %v2834 = vld [vmem:[#allocation9 + $0x3c8] sm:$0xff]
        %v2835 = vld [vmem:[#allocation9 + $0x3d0] sm:$0xff]
        %v2836 = vld [vmem:[#allocation9 + $0x3d8] sm:$0xff]
        %v2837 = vld [vmem:[#allocation9 + $0x3e0] sm:$0xff]
        %v2838 = vld [vmem:[#allocation9 + $0x3e8] sm:$0xff]
        %v2839 = vld [vmem:[#allocation9 + $0x3f0] sm:$0xff]
        %v2840 = vld [vmem:[#allocation9 + $0x3f8] sm:$0xff]
        %v2841 = vld [vmem:[%s8] sm:$0xf]
        %v2843 = vperm.slane %v2841, 0
        %v2844 = vperm.slane %v2841, 1
        %v2845 = vperm.slane %v2841, 2
        %v2846 = vperm.slane %v2841, 3
        %v2979 = vunpack.c.l.b16 %v2713
        %v2980 = vunpack.c.h.b16 %v2713
        %v2981 = vunpack.c.l.b16 %v2714
        %v2982 = vunpack.c.h.b16 %v2714
        %v2983 = vunpack.c.l.b16 %v2715
        %v2984 = vunpack.c.h.b16 %v2715
        %v2985 = vunpack.c.l.b16 %v2716
        %v2986 = vunpack.c.h.b16 %v2716
        %v2987 = vunpack.c.l.b16 %v2717
        %v2988 = vunpack.c.h.b16 %v2717
        %v2989 = vunpack.c.l.b16 %v2718
        %v2990 = vunpack.c.h.b16 %v2718
        %v2991 = vunpack.c.l.b16 %v2719
        %v2992 = vunpack.c.h.b16 %v2719
        %v2993 = vunpack.c.l.b16 %v2720
        %v2994 = vunpack.c.h.b16 %v2720
        %v2995 = vunpack.c.l.b16 %v2721
        %v2996 = vunpack.c.h.b16 %v2721
        %v2997 = vunpack.c.l.b16 %v2722
        %v2998 = vunpack.c.h.b16 %v2722
        %v2999 = vunpack.c.l.b16 %v2723
        %v3000 = vunpack.c.h.b16 %v2723
        %v3001 = vunpack.c.l.b16 %v2724
        %v3002 = vunpack.c.h.b16 %v2724
        %v3003 = vunpack.c.l.b16 %v2725
        %v3004 = vunpack.c.h.b16 %v2725
        %v3005 = vunpack.c.l.b16 %v2726
        %v3006 = vunpack.c.h.b16 %v2726
        %v3007 = vunpack.c.l.b16 %v2727
        %v3008 = vunpack.c.h.b16 %v2727
        %v3009 = vunpack.c.l.b16 %v2728
        %v3010 = vunpack.c.h.b16 %v2728
        %v3011 = vunpack.c.l.b16 %v2729
        %v3012 = vunpack.c.h.b16 %v2729
        %v3013 = vunpack.c.l.b16 %v2730
        %v3014 = vunpack.c.h.b16 %v2730
        %v3015 = vunpack.c.l.b16 %v2731
        %v3016 = vunpack.c.h.b16 %v2731
        %v3017 = vunpack.c.l.b16 %v2732
        %v3018 = vunpack.c.h.b16 %v2732
        %v3019 = vunpack.c.l.b16 %v2733
        %v3020 = vunpack.c.h.b16 %v2733
        %v3021 = vunpack.c.l.b16 %v2734
        %v3022 = vunpack.c.h.b16 %v2734
        %v3023 = vunpack.c.l.b16 %v2735
        %v3024 = vunpack.c.h.b16 %v2735
        %v3025 = vunpack.c.l.b16 %v2736
        %v3026 = vunpack.c.h.b16 %v2736
        %v3027 = vunpack.c.l.b16 %v2737
        %v3028 = vunpack.c.h.b16 %v2737
        %v3029 = vunpack.c.l.b16 %v2738
        %v3030 = vunpack.c.h.b16 %v2738
        %v3031 = vunpack.c.l.b16 %v2739
        %v3032 = vunpack.c.h.b16 %v2739
        %v3033 = vunpack.c.l.b16 %v2740
        %v3034 = vunpack.c.h.b16 %v2740
        %v3035 = vunpack.c.l.b16 %v2741
        %v3036 = vunpack.c.h.b16 %v2741
        %v3037 = vunpack.c.l.b16 %v2742
        %v3038 = vunpack.c.h.b16 %v2742
        %v3039 = vunpack.c.l.b16 %v2743
        %v3040 = vunpack.c.h.b16 %v2743
        %v3041 = vunpack.c.l.b16 %v2744
        %v3042 = vunpack.c.h.b16 %v2744
        %v3043 = vunpack.c.l.b16 %v2745
        %v3044 = vunpack.c.h.b16 %v2745
        %v3045 = vunpack.c.l.b16 %v2746
        %v3046 = vunpack.c.h.b16 %v2746
        %v3047 = vunpack.c.l.b16 %v2747
        %v3048 = vunpack.c.h.b16 %v2747
        %v3049 = vunpack.c.l.b16 %v2748
        %v3050 = vunpack.c.h.b16 %v2748
        %v3051 = vunpack.c.l.b16 %v2749
        %v3052 = vunpack.c.h.b16 %v2749
        %v3053 = vunpack.c.l.b16 %v2750
        %v3054 = vunpack.c.h.b16 %v2750
        %v3055 = vunpack.c.l.b16 %v2751
        %v3056 = vunpack.c.h.b16 %v2751
        %v3057 = vunpack.c.l.b16 %v2752
        %v3058 = vunpack.c.h.b16 %v2752
        %v3059 = vunpack.c.l.b16 %v2753
        %v3060 = vunpack.c.h.b16 %v2753
        %v3061 = vunpack.c.l.b16 %v2754
        %v3062 = vunpack.c.h.b16 %v2754
        %v3063 = vunpack.c.l.b16 %v2755
        %v3064 = vunpack.c.h.b16 %v2755
        %v3065 = vunpack.c.l.b16 %v2756
        %v3066 = vunpack.c.h.b16 %v2756
        %v3067 = vunpack.c.l.b16 %v2757
        %v3068 = vunpack.c.h.b16 %v2757
        %v3069 = vunpack.c.l.b16 %v2758
        %v3070 = vunpack.c.h.b16 %v2758
        %v3071 = vunpack.c.l.b16 %v2759
        %v3072 = vunpack.c.h.b16 %v2759
        %v3073 = vunpack.c.l.b16 %v2760
        %v3074 = vunpack.c.h.b16 %v2760
        %v3075 = vunpack.c.l.b16 %v2761
        %v3076 = vunpack.c.h.b16 %v2761
        %v3077 = vunpack.c.l.b16 %v2762
        %v3078 = vunpack.c.h.b16 %v2762
        %v3079 = vunpack.c.l.b16 %v2763
        %v3080 = vunpack.c.h.b16 %v2763
        %v3081 = vunpack.c.l.b16 %v2764
        %v3082 = vunpack.c.h.b16 %v2764
        %v3083 = vunpack.c.l.b16 %v2765
        %v3084 = vunpack.c.h.b16 %v2765
        %v3085 = vunpack.c.l.b16 %v2766
        %v3086 = vunpack.c.h.b16 %v2766
        %v3087 = vunpack.c.l.b16 %v2767
        %v3088 = vunpack.c.h.b16 %v2767
        %v3089 = vunpack.c.l.b16 %v2768
        %v3090 = vunpack.c.h.b16 %v2768
        %v3091 = vunpack.c.l.b16 %v2769
        %v3092 = vunpack.c.h.b16 %v2769
        %v3093 = vunpack.c.l.b16 %v2770
        %v3094 = vunpack.c.h.b16 %v2770
        %v3095 = vunpack.c.l.b16 %v2771
        %v3096 = vunpack.c.h.b16 %v2771
        %v3097 = vunpack.c.l.b16 %v2772
        %v3098 = vunpack.c.h.b16 %v2772
        %v3099 = vunpack.c.l.b16 %v2773
        %v3100 = vunpack.c.h.b16 %v2773
        %v3101 = vunpack.c.l.b16 %v2774
        %v3102 = vunpack.c.h.b16 %v2774
        %v3103 = vunpack.c.l.b16 %v2775
        %v3104 = vunpack.c.h.b16 %v2775
        %v3105 = vunpack.c.l.b16 %v2776
        %v3106 = vunpack.c.h.b16 %v2776
        %v3107 = vunpack.c.l.b16 %v2777
        %v3108 = vunpack.c.h.b16 %v2777
        %v3109 = vunpack.c.l.b16 %v2778
        %v3110 = vunpack.c.h.b16 %v2778
        %v3111 = vunpack.c.l.b16 %v2779
        %v3112 = vunpack.c.h.b16 %v2779
        %v3113 = vunpack.c.l.b16 %v2780
        %v3114 = vunpack.c.h.b16 %v2780
        %v3115 = vunpack.c.l.b16 %v2781
        %v3116 = vunpack.c.h.b16 %v2781
        %v3117 = vunpack.c.l.b16 %v2782
        %v3118 = vunpack.c.h.b16 %v2782
        %v3119 = vunpack.c.l.b16 %v2783
        %v3120 = vunpack.c.h.b16 %v2783
        %v3121 = vunpack.c.l.b16 %v2784
        %v3122 = vunpack.c.h.b16 %v2784
        %v3123 = vunpack.c.l.b16 %v2785
        %v3124 = vunpack.c.h.b16 %v2785
        %v3125 = vunpack.c.l.b16 %v2786
        %v3126 = vunpack.c.h.b16 %v2786
        %v3127 = vunpack.c.l.b16 %v2787
        %v3128 = vunpack.c.h.b16 %v2787
        %v3129 = vunpack.c.l.b16 %v2788
        %v3130 = vunpack.c.h.b16 %v2788
        %v3131 = vunpack.c.l.b16 %v2789
        %v3132 = vunpack.c.h.b16 %v2789
        %v3133 = vunpack.c.l.b16 %v2790
        %v3134 = vunpack.c.h.b16 %v2790
        %v3135 = vunpack.c.l.b16 %v2791
        %v3136 = vunpack.c.h.b16 %v2791
        %v3137 = vunpack.c.l.b16 %v2792
        %v3138 = vunpack.c.h.b16 %v2792
        %v3139 = vunpack.c.l.b16 %v2793
        %v3140 = vunpack.c.h.b16 %v2793
        %v3141 = vunpack.c.l.b16 %v2794
        %v3142 = vunpack.c.h.b16 %v2794
        %v3143 = vunpack.c.l.b16 %v2795
        %v3144 = vunpack.c.h.b16 %v2795
        %v3145 = vunpack.c.l.b16 %v2796
        %v3146 = vunpack.c.h.b16 %v2796
        %v3147 = vunpack.c.l.b16 %v2797
        %v3148 = vunpack.c.h.b16 %v2797
        %v3149 = vunpack.c.l.b16 %v2798
        %v3150 = vunpack.c.h.b16 %v2798
        %v3151 = vunpack.c.l.b16 %v2799
        %v3152 = vunpack.c.h.b16 %v2799
        %v3153 = vunpack.c.l.b16 %v2800
        %v3154 = vunpack.c.h.b16 %v2800
        %v3155 = vunpack.c.l.b16 %v2801
        %v3156 = vunpack.c.h.b16 %v2801
        %v3157 = vunpack.c.l.b16 %v2802
        %v3158 = vunpack.c.h.b16 %v2802
        %v3159 = vunpack.c.l.b16 %v2803
        %v3160 = vunpack.c.h.b16 %v2803
        %v3161 = vunpack.c.l.b16 %v2804
        %v3162 = vunpack.c.h.b16 %v2804
        %v3163 = vunpack.c.l.b16 %v2805
        %v3164 = vunpack.c.h.b16 %v2805
        %v3165 = vunpack.c.l.b16 %v2806
        %v3166 = vunpack.c.h.b16 %v2806
        %v3167 = vunpack.c.l.b16 %v2807
        %v3168 = vunpack.c.h.b16 %v2807
        %v3169 = vunpack.c.l.b16 %v2808
        %v3170 = vunpack.c.h.b16 %v2808
        %v3171 = vunpack.c.l.b16 %v2809
        %v3172 = vunpack.c.h.b16 %v2809
        %v3173 = vunpack.c.l.b16 %v2810
        %v3174 = vunpack.c.h.b16 %v2810
        %v3175 = vunpack.c.l.b16 %v2811
        %v3176 = vunpack.c.h.b16 %v2811
        %v3177 = vunpack.c.l.b16 %v2812
        %v3178 = vunpack.c.h.b16 %v2812
        %v3179 = vunpack.c.l.b16 %v2813
        %v3180 = vunpack.c.h.b16 %v2813
        %v3181 = vunpack.c.l.b16 %v2814
        %v3182 = vunpack.c.h.b16 %v2814
        %v3183 = vunpack.c.l.b16 %v2815
        %v3184 = vunpack.c.h.b16 %v2815
        %v3185 = vunpack.c.l.b16 %v2816
        %v3186 = vunpack.c.h.b16 %v2816
        %v3187 = vunpack.c.l.b16 %v2817
        %v3188 = vunpack.c.h.b16 %v2817
        %v3189 = vunpack.c.l.b16 %v2818
        %v3190 = vunpack.c.h.b16 %v2818
        %v3191 = vunpack.c.l.b16 %v2819
        %v3192 = vunpack.c.h.b16 %v2819
        %v3193 = vunpack.c.l.b16 %v2820
        %v3194 = vunpack.c.h.b16 %v2820
        %v3195 = vunpack.c.l.b16 %v2821
        %v3196 = vunpack.c.h.b16 %v2821
        %v3197 = vunpack.c.l.b16 %v2822
        %v3198 = vunpack.c.h.b16 %v2822
        %v3199 = vunpack.c.l.b16 %v2823
        %v3200 = vunpack.c.h.b16 %v2823
        %v3201 = vunpack.c.l.b16 %v2824
        %v3202 = vunpack.c.h.b16 %v2824
        %v3203 = vunpack.c.l.b16 %v2825
        %v3204 = vunpack.c.h.b16 %v2825
        %v3205 = vunpack.c.l.b16 %v2826
        %v3206 = vunpack.c.h.b16 %v2826
        %v3207 = vunpack.c.l.b16 %v2827
        %v3208 = vunpack.c.h.b16 %v2827
        %v3209 = vunpack.c.l.b16 %v2828
        %v3210 = vunpack.c.h.b16 %v2828
        %v3211 = vunpack.c.l.b16 %v2829
        %v3212 = vunpack.c.h.b16 %v2829
        %v3213 = vunpack.c.l.b16 %v2830
        %v3214 = vunpack.c.h.b16 %v2830
        %v3215 = vunpack.c.l.b16 %v2831
        %v3216 = vunpack.c.h.b16 %v2831
        %v3217 = vunpack.c.l.b16 %v2832
        %v3218 = vunpack.c.h.b16 %v2832
        %v3219 = vunpack.c.l.b16 %v2833
        %v3220 = vunpack.c.h.b16 %v2833
        %v3221 = vunpack.c.l.b16 %v2834
        %v3222 = vunpack.c.h.b16 %v2834
        %v3223 = vunpack.c.l.b16 %v2835
        %v3224 = vunpack.c.h.b16 %v2835
        %v3225 = vunpack.c.l.b16 %v2836
        %v3226 = vunpack.c.h.b16 %v2836
        %v3227 = vunpack.c.l.b16 %v2837
        %v3228 = vunpack.c.h.b16 %v2837
        %v3229 = vunpack.c.l.b16 %v2838
        %v3230 = vunpack.c.h.b16 %v2838
        %v3231 = vunpack.c.l.b16 %v2839
        %v3232 = vunpack.c.h.b16 %v2839
        %v3233 = vunpack.c.l.b16 %v2840
        %v3234 = vunpack.c.h.b16 %v2840
        %v3235 = vpack.c.b16 %v2983, %v2979
        %v3236 = vpack.c.b16 %v2984, %v2980
        %v3237 = vpack.c.b16 %v2985, %v2981
        %v3238 = vpack.c.b16 %v2986, %v2982
        %v3239 = vpack.c.b16 %v2991, %v2987
        %v3240 = vpack.c.b16 %v2992, %v2988
        %v3241 = vpack.c.b16 %v2993, %v2989
        %v3242 = vpack.c.b16 %v2994, %v2990
        %v3243 = vpack.c.b16 %v2999, %v2995
        %v3244 = vpack.c.b16 %v3000, %v2996
        %v3245 = vpack.c.b16 %v3001, %v2997
        %v3246 = vpack.c.b16 %v3002, %v2998
        %v3247 = vpack.c.b16 %v3007, %v3003
        %v3248 = vpack.c.b16 %v3008, %v3004
        %v3249 = vpack.c.b16 %v3009, %v3005
        %v3250 = vpack.c.b16 %v3010, %v3006
        %v3251 = vpack.c.b16 %v3015, %v3011
        %v3252 = vpack.c.b16 %v3016, %v3012
        %v3253 = vpack.c.b16 %v3017, %v3013
        %v3254 = vpack.c.b16 %v3018, %v3014
        %v3255 = vpack.c.b16 %v3023, %v3019
        %v3256 = vpack.c.b16 %v3024, %v3020
        %v3257 = vpack.c.b16 %v3025, %v3021
        %v3258 = vpack.c.b16 %v3026, %v3022
        %v3259 = vpack.c.b16 %v3031, %v3027
        %v3260 = vpack.c.b16 %v3032, %v3028
        %v3261 = vpack.c.b16 %v3033, %v3029
        %v3262 = vpack.c.b16 %v3034, %v3030
        %v3263 = vpack.c.b16 %v3039, %v3035
        %v3264 = vpack.c.b16 %v3040, %v3036
        %v3265 = vpack.c.b16 %v3041, %v3037
        %v3266 = vpack.c.b16 %v3042, %v3038
        %v3267 = vpack.c.b16 %v3047, %v3043
        %v3268 = vpack.c.b16 %v3048, %v3044
        %v3269 = vpack.c.b16 %v3049, %v3045
        %v3270 = vpack.c.b16 %v3050, %v3046
        %v3271 = vpack.c.b16 %v3055, %v3051
        %v3272 = vpack.c.b16 %v3056, %v3052
        %v3273 = vpack.c.b16 %v3057, %v3053
        %v3274 = vpack.c.b16 %v3058, %v3054
        %v3275 = vpack.c.b16 %v3063, %v3059
        %v3276 = vpack.c.b16 %v3064, %v3060
        %v3277 = vpack.c.b16 %v3065, %v3061
        %v3278 = vpack.c.b16 %v3066, %v3062
        %v3279 = vpack.c.b16 %v3071, %v3067
        %v3280 = vpack.c.b16 %v3072, %v3068
        %v3281 = vpack.c.b16 %v3073, %v3069
        %v3282 = vpack.c.b16 %v3074, %v3070
        %v3283 = vpack.c.b16 %v3079, %v3075
        %v3284 = vpack.c.b16 %v3080, %v3076
        %v3285 = vpack.c.b16 %v3081, %v3077
        %v3286 = vpack.c.b16 %v3082, %v3078
        %v3287 = vpack.c.b16 %v3087, %v3083
        %v3288 = vpack.c.b16 %v3088, %v3084
        %v3289 = vpack.c.b16 %v3089, %v3085
        %v3290 = vpack.c.b16 %v3090, %v3086
        %v3291 = vpack.c.b16 %v3095, %v3091
        %v3292 = vpack.c.b16 %v3096, %v3092
        %v3293 = vpack.c.b16 %v3097, %v3093
        %v3294 = vpack.c.b16 %v3098, %v3094
        %v3295 = vpack.c.b16 %v3103, %v3099
        %v3296 = vpack.c.b16 %v3104, %v3100
        %v3297 = vpack.c.b16 %v3105, %v3101
        %v3298 = vpack.c.b16 %v3106, %v3102
        %v3299 = vpack.c.b16 %v3111, %v3107
        %v3300 = vpack.c.b16 %v3112, %v3108
        %v3301 = vpack.c.b16 %v3113, %v3109
        %v3302 = vpack.c.b16 %v3114, %v3110
        %v3303 = vpack.c.b16 %v3119, %v3115
        %v3304 = vpack.c.b16 %v3120, %v3116
        %v3305 = vpack.c.b16 %v3121, %v3117
        %v3306 = vpack.c.b16 %v3122, %v3118
        %v3307 = vpack.c.b16 %v3127, %v3123
        %v3308 = vpack.c.b16 %v3128, %v3124
        %v3309 = vpack.c.b16 %v3129, %v3125
        %v3310 = vpack.c.b16 %v3130, %v3126
        %v3311 = vpack.c.b16 %v3135, %v3131
        %v3312 = vpack.c.b16 %v3136, %v3132
        %v3313 = vpack.c.b16 %v3137, %v3133
        %v3314 = vpack.c.b16 %v3138, %v3134
        %v3315 = vpack.c.b16 %v3143, %v3139
        %v3316 = vpack.c.b16 %v3144, %v3140
        %v3317 = vpack.c.b16 %v3145, %v3141
        %v3318 = vpack.c.b16 %v3146, %v3142
        %v3319 = vpack.c.b16 %v3151, %v3147
        %v3320 = vpack.c.b16 %v3152, %v3148
        %v3321 = vpack.c.b16 %v3153, %v3149
        %v3322 = vpack.c.b16 %v3154, %v3150
        %v3323 = vpack.c.b16 %v3159, %v3155
        %v3324 = vpack.c.b16 %v3160, %v3156
        %v3325 = vpack.c.b16 %v3161, %v3157
        %v3326 = vpack.c.b16 %v3162, %v3158
        %v3327 = vpack.c.b16 %v3167, %v3163
        %v3328 = vpack.c.b16 %v3168, %v3164
        %v3329 = vpack.c.b16 %v3169, %v3165
        %v3330 = vpack.c.b16 %v3170, %v3166
        %v3331 = vpack.c.b16 %v3175, %v3171
        %v3332 = vpack.c.b16 %v3176, %v3172
        %v3333 = vpack.c.b16 %v3177, %v3173
        %v3334 = vpack.c.b16 %v3178, %v3174
        %v3335 = vpack.c.b16 %v3183, %v3179
        %v3336 = vpack.c.b16 %v3184, %v3180
        %v3337 = vpack.c.b16 %v3185, %v3181
        %v3338 = vpack.c.b16 %v3186, %v3182
        %v3339 = vpack.c.b16 %v3191, %v3187
        %v3340 = vpack.c.b16 %v3192, %v3188
        %v3341 = vpack.c.b16 %v3193, %v3189
        %v3342 = vpack.c.b16 %v3194, %v3190
        %v3343 = vpack.c.b16 %v3199, %v3195
        %v3344 = vpack.c.b16 %v3200, %v3196
        %v3345 = vpack.c.b16 %v3201, %v3197
        %v3346 = vpack.c.b16 %v3202, %v3198
        %v3347 = vpack.c.b16 %v3207, %v3203
        %v3348 = vpack.c.b16 %v3208, %v3204
        %v3349 = vpack.c.b16 %v3209, %v3205
        %v3350 = vpack.c.b16 %v3210, %v3206
        %v3351 = vpack.c.b16 %v3215, %v3211
        %v3352 = vpack.c.b16 %v3216, %v3212
        %v3353 = vpack.c.b16 %v3217, %v3213
        %v3354 = vpack.c.b16 %v3218, %v3214
        %v3355 = vpack.c.b16 %v3223, %v3219
        %v3356 = vpack.c.b16 %v3224, %v3220
        %v3357 = vpack.c.b16 %v3225, %v3221
        %v3358 = vpack.c.b16 %v3226, %v3222
        %v3359 = vpack.c.b16 %v3231, %v3227
        %v3360 = vpack.c.b16 %v3232, %v3228
        %v3361 = vpack.c.b16 %v3233, %v3229
        %v3362 = vpack.c.b16 %v3234, %v3230
        %3491 = vmatpush.bf16.msra.mxu0 %v3263
        %3492 = vmatpush.bf16.msra.mxu0 %v3259
        %3493 = vmatpush.bf16.msra.mxu0 %v3255
        %3494 = vmatpush.bf16.msra.mxu0 %v3251
        %3495 = vmatpush.bf16.msra.mxu0 %v3247
        %3496 = vmatpush.bf16.msra.mxu0 %v3243
        %3497 = vmatpush.bf16.msra.mxu0 %v3239
        %3498 = vmatpush.bf16.msra.mxu0 %v3235
        %3499 = vmatmul.bf16.gmra.mxu0 %v2709
        %v3500 = vpop.f32.mrf.mxu0
        %v3501 = vadd.f32 %v2843, %v3500
        %v3502 = vpop.f32.mrf.mxu0
        %v3503 = vadd.f32 %v2843, %v3502
        %3504 = vdwg.mxu0
        %3505 = vmatpush.bf16.msra.mxu0 %v3295
        %3506 = vmatpush.bf16.msra.mxu0 %v3291
        %3507 = vmatpush.bf16.msra.mxu0 %v3287
        %3508 = vmatpush.bf16.msra.mxu0 %v3283
        %3509 = vmatpush.bf16.msra.mxu0 %v3279
        %3510 = vmatpush.bf16.msra.mxu0 %v3275
        %3511 = vmatpush.bf16.msra.mxu0 %v3271
        %3512 = vmatpush.bf16.msra.mxu0 %v3267
        %3513 = vmatmul.bf16.gmra.mxu0 %v2710
        %v3514 = vpop.f32.mrf.mxu0
        %v3515 = vadd.f32 %v3501, %v3514
        %v3516 = vpop.f32.mrf.mxu0
        %v3517 = vadd.f32 %v3503, %v3516
        %3518 = vdwg.mxu0
        %3519 = vmatpush.bf16.msra.mxu0 %v3327
        %3520 = vmatpush.bf16.msra.mxu0 %v3323
        %3521 = vmatpush.bf16.msra.mxu0 %v3319
        %3522 = vmatpush.bf16.msra.mxu0 %v3315
        %3523 = vmatpush.bf16.msra.mxu0 %v3311
        %3524 = vmatpush.bf16.msra.mxu0 %v3307
        %3525 = vmatpush.bf16.msra.mxu0 %v3303
        %3526 = vmatpush.bf16.msra.mxu0 %v3299
        %3527 = vmatmul.bf16.gmra.mxu0 %v2711
        %v3528 = vpop.f32.mrf.mxu0
        %v3529 = vadd.f32 %v3515, %v3528
        %v3530 = vpop.f32.mrf.mxu0
        %v3531 = vadd.f32 %v3517, %v3530
        %3532 = vdwg.mxu0
        %3533 = vmatpush.bf16.msra.mxu0 %v3359
        %3534 = vmatpush.bf16.msra.mxu0 %v3355
        %3535 = vmatpush.bf16.msra.mxu0 %v3351
        %3536 = vmatpush.bf16.msra.mxu0 %v3347
        %3537 = vmatpush.bf16.msra.mxu0 %v3343
        %3538 = vmatpush.bf16.msra.mxu0 %v3339
        %3539 = vmatpush.bf16.msra.mxu0 %v3335
        %3540 = vmatpush.bf16.msra.mxu0 %v3331
        %3541 = vmatmul.bf16.gmra.mxu0 %v2712
        %v3542 = vpop.f32.mrf.mxu0
        %v3543 = vadd.f32 %v3529, %v3542
        %v3544 = vpop.f32.mrf.mxu0
        %v3545 = vadd.f32 %v3531, %v3544
        %3546 = vdwg.mxu0
        %3547 = vmatpush.bf16.msra.mxu0 %v3264
        %3548 = vmatpush.bf16.msra.mxu0 %v3260
        %3549 = vmatpush.bf16.msra.mxu0 %v3256
        %3550 = vmatpush.bf16.msra.mxu0 %v3252
        %3551 = vmatpush.bf16.msra.mxu0 %v3248
        %3552 = vmatpush.bf16.msra.mxu0 %v3244
        %3553 = vmatpush.bf16.msra.mxu0 %v3240
        %3554 = vmatpush.bf16.msra.mxu0 %v3236
        %3555 = vmatmul.bf16.gmra.mxu0 %v2709
        %v3556 = vpop.f32.mrf.mxu0
        %v3557 = vadd.f32 %v2844, %v3556
        %v3558 = vpop.f32.mrf.mxu0
        %v3559 = vadd.f32 %v2844, %v3558
        %3560 = vdwg.mxu0
        %3561 = vmatpush.bf16.msra.mxu0 %v3296
        %3562 = vmatpush.bf16.msra.mxu0 %v3292
        %3563 = vmatpush.bf16.msra.mxu0 %v3288
        %3564 = vmatpush.bf16.msra.mxu0 %v3284
        %3565 = vmatpush.bf16.msra.mxu0 %v3280
        %3566 = vmatpush.bf16.msra.mxu0 %v3276
        %3567 = vmatpush.bf16.msra.mxu0 %v3272
        %3568 = vmatpush.bf16.msra.mxu0 %v3268
        %3569 = vmatmul.bf16.gmra.mxu0 %v2710
        %v3570 = vpop.f32.mrf.mxu0
        %v3571 = vadd.f32 %v3557, %v3570
        %v3572 = vpop.f32.mrf.mxu0
        %v3573 = vadd.f32 %v3559, %v3572
        %3574 = vdwg.mxu0
        %3575 = vmatpush.bf16.msra.mxu0 %v3328
        %3576 = vmatpush.bf16.msra.mxu0 %v3324
        %3577 = vmatpush.bf16.msra.mxu0 %v3320
        %3578 = vmatpush.bf16.msra.mxu0 %v3316
        %3579 = vmatpush.bf16.msra.mxu0 %v3312
        %3580 = vmatpush.bf16.msra.mxu0 %v3308
        %3581 = vmatpush.bf16.msra.mxu0 %v3304
        %3582 = vmatpush.bf16.msra.mxu0 %v3300
        %3583 = vmatmul.bf16.gmra.mxu0 %v2711
        %v3584 = vpop.f32.mrf.mxu0
        %v3585 = vadd.f32 %v3571, %v3584
        %v3586 = vpop.f32.mrf.mxu0
        %v3587 = vadd.f32 %v3573, %v3586
        %3588 = vdwg.mxu0
        %3589 = vmatpush.bf16.msra.mxu0 %v3360
        %3590 = vmatpush.bf16.msra.mxu0 %v3356
        %3591 = vmatpush.bf16.msra.mxu0 %v3352
        %3592 = vmatpush.bf16.msra.mxu0 %v3348
        %3593 = vmatpush.bf16.msra.mxu0 %v3344
        %3594 = vmatpush.bf16.msra.mxu0 %v3340
        %3595 = vmatpush.bf16.msra.mxu0 %v3336
        %3596 = vmatpush.bf16.msra.mxu0 %v3332
        %3597 = vmatmul.bf16.gmra.mxu0 %v2712
        %v3598 = vpop.f32.mrf.mxu0
        %v3599 = vadd.f32 %v3585, %v3598
        %v3600 = vpop.f32.mrf.mxu0
        %v3601 = vadd.f32 %v3587, %v3600
        %3602 = vdwg.mxu0
        %3603 = vmatpush.bf16.msra.mxu0 %v3265
        %3604 = vmatpush.bf16.msra.mxu0 %v3261
        %3605 = vmatpush.bf16.msra.mxu0 %v3257
        %3606 = vmatpush.bf16.msra.mxu0 %v3253
        %3607 = vmatpush.bf16.msra.mxu0 %v3249
        %3608 = vmatpush.bf16.msra.mxu0 %v3245
        %3609 = vmatpush.bf16.msra.mxu0 %v3241
        %3610 = vmatpush.bf16.msra.mxu0 %v3237
        %3611 = vmatmul.bf16.gmra.mxu0 %v2709
        %v3612 = vpop.f32.mrf.mxu0
        %v3613 = vadd.f32 %v2845, %v3612
        %v3614 = vpop.f32.mrf.mxu0
        %v3615 = vadd.f32 %v2845, %v3614
        %3616 = vdwg.mxu0
        %3617 = vmatpush.bf16.msra.mxu0 %v3297
        %3618 = vmatpush.bf16.msra.mxu0 %v3293
        %3619 = vmatpush.bf16.msra.mxu0 %v3289
        %3620 = vmatpush.bf16.msra.mxu0 %v3285
        %3621 = vmatpush.bf16.msra.mxu0 %v3281
        %3622 = vmatpush.bf16.msra.mxu0 %v3277
        %3623 = vmatpush.bf16.msra.mxu0 %v3273
        %3624 = vmatpush.bf16.msra.mxu0 %v3269
        %3625 = vmatmul.bf16.gmra.mxu0 %v2710
        %v3626 = vpop.f32.mrf.mxu0
        %v3627 = vadd.f32 %v3613, %v3626
        %v3628 = vpop.f32.mrf.mxu0
        %v3629 = vadd.f32 %v3615, %v3628
        %3630 = vdwg.mxu0
        %3631 = vmatpush.bf16.msra.mxu0 %v3329
        %3632 = vmatpush.bf16.msra.mxu0 %v3325
        %3633 = vmatpush.bf16.msra.mxu0 %v3321
        %3634 = vmatpush.bf16.msra.mxu0 %v3317
        %3635 = vmatpush.bf16.msra.mxu0 %v3313
        %3636 = vmatpush.bf16.msra.mxu0 %v3309
        %3637 = vmatpush.bf16.msra.mxu0 %v3305
        %3638 = vmatpush.bf16.msra.mxu0 %v3301
        %3639 = vmatmul.bf16.gmra.mxu0 %v2711
        %v3640 = vpop.f32.mrf.mxu0
        %v3641 = vadd.f32 %v3627, %v3640
        %v3642 = vpop.f32.mrf.mxu0
        %v3643 = vadd.f32 %v3629, %v3642
        %3644 = vdwg.mxu0
        %3645 = vmatpush.bf16.msra.mxu0 %v3361
        %3646 = vmatpush.bf16.msra.mxu0 %v3357
        %3647 = vmatpush.bf16.msra.mxu0 %v3353
        %3648 = vmatpush.bf16.msra.mxu0 %v3349
        %3649 = vmatpush.bf16.msra.mxu0 %v3345
        %3650 = vmatpush.bf16.msra.mxu0 %v3341
        %3651 = vmatpush.bf16.msra.mxu0 %v3337
        %3652 = vmatpush.bf16.msra.mxu0 %v3333
        %3653 = vmatmul.bf16.gmra.mxu0 %v2712
        %v3654 = vpop.f32.mrf.mxu0
        %v3655 = vadd.f32 %v3641, %v3654
        %v3656 = vpop.f32.mrf.mxu0
        %v3657 = vadd.f32 %v3643, %v3656
        %3658 = vdwg.mxu0
        %3659 = vmatpush.bf16.msra.mxu0 %v3266
        %3660 = vmatpush.bf16.msra.mxu0 %v3262
        %3661 = vmatpush.bf16.msra.mxu0 %v3258
        %3662 = vmatpush.bf16.msra.mxu0 %v3254
        %3663 = vmatpush.bf16.msra.mxu0 %v3250
        %3664 = vmatpush.bf16.msra.mxu0 %v3246
        %3665 = vmatpush.bf16.msra.mxu0 %v3242
        %3666 = vmatpush.bf16.msra.mxu0 %v3238
        %3667 = vmatmul.bf16.gmra.mxu0 %v2709
        %v3668 = vpop.f32.mrf.mxu0
        %v3669 = vadd.f32 %v2846, %v3668
        %v3670 = vpop.f32.mrf.mxu0
        %v3671 = vadd.f32 %v2846, %v3670
        %3672 = vdwg.mxu0
        %3673 = vmatpush.bf16.msra.mxu0 %v3298
        %3674 = vmatpush.bf16.msra.mxu0 %v3294
        %3675 = vmatpush.bf16.msra.mxu0 %v3290
        %3676 = vmatpush.bf16.msra.mxu0 %v3286
        %3677 = vmatpush.bf16.msra.mxu0 %v3282
        %3678 = vmatpush.bf16.msra.mxu0 %v3278
        %3679 = vmatpush.bf16.msra.mxu0 %v3274
        %3680 = vmatpush.bf16.msra.mxu0 %v3270
        %3681 = vmatmul.bf16.gmra.mxu0 %v2710
        %v3682 = vpop.f32.mrf.mxu0
        %v3683 = vadd.f32 %v3669, %v3682
        %v3684 = vpop.f32.mrf.mxu0
        %v3685 = vadd.f32 %v3671, %v3684
        %3686 = vdwg.mxu0
        %3687 = vmatpush.bf16.msra.mxu0 %v3330
        %3688 = vmatpush.bf16.msra.mxu0 %v3326
        %3689 = vmatpush.bf16.msra.mxu0 %v3322
        %3690 = vmatpush.bf16.msra.mxu0 %v3318
        %3691 = vmatpush.bf16.msra.mxu0 %v3314
        %3692 = vmatpush.bf16.msra.mxu0 %v3310
        %3693 = vmatpush.bf16.msra.mxu0 %v3306
        %3694 = vmatpush.bf16.msra.mxu0 %v3302
        %3695 = vmatmul.bf16.gmra.mxu0 %v2711
        %v3696 = vpop.f32.mrf.mxu0
        %v3697 = vadd.f32 %v3683, %v3696
        %v3698 = vpop.f32.mrf.mxu0
        %v3699 = vadd.f32 %v3685, %v3698
        %3700 = vdwg.mxu0
        %3701 = vmatpush.bf16.msra.mxu0 %v3362
        %3702 = vmatpush.bf16.msra.mxu0 %v3358
        %3703 = vmatpush.bf16.msra.mxu0 %v3354
        %3704 = vmatpush.bf16.msra.mxu0 %v3350
        %3705 = vmatpush.bf16.msra.mxu0 %v3346
        %3706 = vmatpush.bf16.msra.mxu0 %v3342
        %3707 = vmatpush.bf16.msra.mxu0 %v3338
        %3708 = vmatpush.bf16.msra.mxu0 %v3334
        %3709 = vmatmul.bf16.gmra.mxu0 %v2712
        %v3710 = vpop.f32.mrf.mxu0
        %v3711 = vadd.f32 %v3697, %v3710
        %v3712 = vpop.f32.mrf.mxu0
        %v3713 = vadd.f32 %v3699, %v3712
        %3714 = vdwg.mxu0
        %v3715 = vmax.f32 %v3543, 0.0
        %v3716 = vmax.f32 %v3599, 0.0
        %v3717 = vmax.f32 %v3655, 0.0
        %v3718 = vmax.f32 %v3711, 0.0
        %v3719 = vmax.f32 %v3545, 0.0
        %v3720 = vmax.f32 %v3601, 0.0
        %v3721 = vmax.f32 %v3657, 0.0
        %v3722 = vmax.f32 %v3713, 0.0
        %v3723 = vpack.c.bf16 %v3719, %v3715
        %v3724 = vpack.c.bf16 %v3720, %v3716
        %v3725 = vpack.c.bf16 %v3721, %v3717
        %v3726 = vpack.c.bf16 %v3722, %v3718
        %v3727 = vld [vmem:[#allocation10] sm:$0xff]
        %v3728 = vld [vmem:[#allocation10 + $0x8] sm:$0xff]
        %v3729 = vld [vmem:[#allocation10 + $0x10] sm:$0xff]
        %v3730 = vld [vmem:[#allocation10 + $0x18] sm:$0xff]
        %v3731 = vld [vmem:[#allocation10 + $0x20] sm:$0xff]
        %v3732 = vld [vmem:[#allocation10 + $0x28] sm:$0xff]
        %v3733 = vld [vmem:[#allocation10 + $0x30] sm:$0xff]
        %v3734 = vld [vmem:[#allocation10 + $0x38] sm:$0xff]
        %v3735 = vld [vmem:[#allocation10 + $0x40] sm:$0xff]
        %v3736 = vld [vmem:[#allocation10 + $0x48] sm:$0xff]
        %v3737 = vld [vmem:[#allocation10 + $0x50] sm:$0xff]
        %v3738 = vld [vmem:[#allocation10 + $0x58] sm:$0xff]
        %v3739 = vld [vmem:[#allocation10 + $0x60] sm:$0xff]
        %v3740 = vld [vmem:[#allocation10 + $0x68] sm:$0xff]
        %v3741 = vld [vmem:[#allocation10 + $0x70] sm:$0xff]
        %v3742 = vld [vmem:[#allocation10 + $0x78] sm:$0xff]
        %v3743 = vld [vmem:[#allocation10 + $0x80] sm:$0xff]
        %v3744 = vld [vmem:[#allocation10 + $0x88] sm:$0xff]
        %v3745 = vld [vmem:[#allocation10 + $0x90] sm:$0xff]
        %v3746 = vld [vmem:[#allocation10 + $0x98] sm:$0xff]
        %v3747 = vld [vmem:[#allocation10 + $0xa0] sm:$0xff]
        %v3748 = vld [vmem:[#allocation10 + $0xa8] sm:$0xff]
        %v3749 = vld [vmem:[#allocation10 + $0xb0] sm:$0xff]
        %v3750 = vld [vmem:[#allocation10 + $0xb8] sm:$0xff]
        %v3751 = vld [vmem:[#allocation10 + $0xc0] sm:$0xff]
        %v3752 = vld [vmem:[#allocation10 + $0xc8] sm:$0xff]
        %v3753 = vld [vmem:[#allocation10 + $0xd0] sm:$0xff]
        %v3754 = vld [vmem:[#allocation10 + $0xd8] sm:$0xff]
        %v3755 = vld [vmem:[#allocation10 + $0xe0] sm:$0xff]
        %v3756 = vld [vmem:[#allocation10 + $0xe8] sm:$0xff]
        %v3757 = vld [vmem:[#allocation10 + $0xf0] sm:$0xff]
        %v3758 = vld [vmem:[#allocation10 + $0xf8] sm:$0xff]
        %v3759 = vld [vmem:[#allocation10 + $0x100] sm:$0xff]
        %v3760 = vld [vmem:[#allocation10 + $0x108] sm:$0xff]
        %v3761 = vld [vmem:[#allocation10 + $0x110] sm:$0xff]
        %v3762 = vld [vmem:[#allocation10 + $0x118] sm:$0xff]
        %v3763 = vld [vmem:[#allocation10 + $0x120] sm:$0xff]
        %v3764 = vld [vmem:[#allocation10 + $0x128] sm:$0xff]
        %v3765 = vld [vmem:[#allocation10 + $0x130] sm:$0xff]
        %v3766 = vld [vmem:[#allocation10 + $0x138] sm:$0xff]
        %v3767 = vld [vmem:[#allocation10 + $0x140] sm:$0xff]
        %v3768 = vld [vmem:[#allocation10 + $0x148] sm:$0xff]
        %v3769 = vld [vmem:[#allocation10 + $0x150] sm:$0xff]
        %v3770 = vld [vmem:[#allocation10 + $0x158] sm:$0xff]
        %v3771 = vld [vmem:[#allocation10 + $0x160] sm:$0xff]
        %v3772 = vld [vmem:[#allocation10 + $0x168] sm:$0xff]
        %v3773 = vld [vmem:[#allocation10 + $0x170] sm:$0xff]
        %v3774 = vld [vmem:[#allocation10 + $0x178] sm:$0xff]
        %v3775 = vld [vmem:[#allocation10 + $0x180] sm:$0xff]
        %v3776 = vld [vmem:[#allocation10 + $0x188] sm:$0xff]
        %v3777 = vld [vmem:[#allocation10 + $0x190] sm:$0xff]
        %v3778 = vld [vmem:[#allocation10 + $0x198] sm:$0xff]
        %v3779 = vld [vmem:[#allocation10 + $0x1a0] sm:$0xff]
        %v3780 = vld [vmem:[#allocation10 + $0x1a8] sm:$0xff]
        %v3781 = vld [vmem:[#allocation10 + $0x1b0] sm:$0xff]
        %v3782 = vld [vmem:[#allocation10 + $0x1b8] sm:$0xff]
        %v3783 = vld [vmem:[#allocation10 + $0x1c0] sm:$0xff]
        %v3784 = vld [vmem:[#allocation10 + $0x1c8] sm:$0xff]
        %v3785 = vld [vmem:[#allocation10 + $0x1d0] sm:$0xff]
        %v3786 = vld [vmem:[#allocation10 + $0x1d8] sm:$0xff]
        %v3787 = vld [vmem:[#allocation10 + $0x1e0] sm:$0xff]
        %v3788 = vld [vmem:[#allocation10 + $0x1e8] sm:$0xff]
        %v3789 = vld [vmem:[#allocation10 + $0x1f0] sm:$0xff]
        %v3790 = vld [vmem:[#allocation10 + $0x1f8] sm:$0xff]
        %v3791 = vld [vmem:[#allocation10 + $0x200] sm:$0xff]
        %v3792 = vld [vmem:[#allocation10 + $0x208] sm:$0xff]
        %v3793 = vld [vmem:[#allocation10 + $0x210] sm:$0xff]
        %v3794 = vld [vmem:[#allocation10 + $0x218] sm:$0xff]
        %v3795 = vld [vmem:[#allocation10 + $0x220] sm:$0xff]
        %v3796 = vld [vmem:[#allocation10 + $0x228] sm:$0xff]
        %v3797 = vld [vmem:[#allocation10 + $0x230] sm:$0xff]
        %v3798 = vld [vmem:[#allocation10 + $0x238] sm:$0xff]
        %v3799 = vld [vmem:[#allocation10 + $0x240] sm:$0xff]
        %v3800 = vld [vmem:[#allocation10 + $0x248] sm:$0xff]
        %v3801 = vld [vmem:[#allocation10 + $0x250] sm:$0xff]
        %v3802 = vld [vmem:[#allocation10 + $0x258] sm:$0xff]
        %v3803 = vld [vmem:[#allocation10 + $0x260] sm:$0xff]
        %v3804 = vld [vmem:[#allocation10 + $0x268] sm:$0xff]
        %v3805 = vld [vmem:[#allocation10 + $0x270] sm:$0xff]
        %v3806 = vld [vmem:[#allocation10 + $0x278] sm:$0xff]
        %v3807 = vld [vmem:[#allocation10 + $0x280] sm:$0xff]
        %v3808 = vld [vmem:[#allocation10 + $0x288] sm:$0xff]
        %v3809 = vld [vmem:[#allocation10 + $0x290] sm:$0xff]
        %v3810 = vld [vmem:[#allocation10 + $0x298] sm:$0xff]
        %v3811 = vld [vmem:[#allocation10 + $0x2a0] sm:$0xff]
        %v3812 = vld [vmem:[#allocation10 + $0x2a8] sm:$0xff]
        %v3813 = vld [vmem:[#allocation10 + $0x2b0] sm:$0xff]
        %v3814 = vld [vmem:[#allocation10 + $0x2b8] sm:$0xff]
        %v3815 = vld [vmem:[#allocation10 + $0x2c0] sm:$0xff]
        %v3816 = vld [vmem:[#allocation10 + $0x2c8] sm:$0xff]
        %v3817 = vld [vmem:[#allocation10 + $0x2d0] sm:$0xff]
        %v3818 = vld [vmem:[#allocation10 + $0x2d8] sm:$0xff]
        %v3819 = vld [vmem:[#allocation10 + $0x2e0] sm:$0xff]
        %v3820 = vld [vmem:[#allocation10 + $0x2e8] sm:$0xff]
        %v3821 = vld [vmem:[#allocation10 + $0x2f0] sm:$0xff]
        %v3822 = vld [vmem:[#allocation10 + $0x2f8] sm:$0xff]
        %v3823 = vld [vmem:[#allocation10 + $0x300] sm:$0xff]
        %v3824 = vld [vmem:[#allocation10 + $0x308] sm:$0xff]
        %v3825 = vld [vmem:[#allocation10 + $0x310] sm:$0xff]
        %v3826 = vld [vmem:[#allocation10 + $0x318] sm:$0xff]
        %v3827 = vld [vmem:[#allocation10 + $0x320] sm:$0xff]
        %v3828 = vld [vmem:[#allocation10 + $0x328] sm:$0xff]
        %v3829 = vld [vmem:[#allocation10 + $0x330] sm:$0xff]
        %v3830 = vld [vmem:[#allocation10 + $0x338] sm:$0xff]
        %v3831 = vld [vmem:[#allocation10 + $0x340] sm:$0xff]
        %v3832 = vld [vmem:[#allocation10 + $0x348] sm:$0xff]
        %v3833 = vld [vmem:[#allocation10 + $0x350] sm:$0xff]
        %v3834 = vld [vmem:[#allocation10 + $0x358] sm:$0xff]
        %v3835 = vld [vmem:[#allocation10 + $0x360] sm:$0xff]
        %v3836 = vld [vmem:[#allocation10 + $0x368] sm:$0xff]
        %v3837 = vld [vmem:[#allocation10 + $0x370] sm:$0xff]
        %v3838 = vld [vmem:[#allocation10 + $0x378] sm:$0xff]
        %v3839 = vld [vmem:[#allocation10 + $0x380] sm:$0xff]
        %v3840 = vld [vmem:[#allocation10 + $0x388] sm:$0xff]
        %v3841 = vld [vmem:[#allocation10 + $0x390] sm:$0xff]
        %v3842 = vld [vmem:[#allocation10 + $0x398] sm:$0xff]
        %v3843 = vld [vmem:[#allocation10 + $0x3a0] sm:$0xff]
        %v3844 = vld [vmem:[#allocation10 + $0x3a8] sm:$0xff]
        %v3845 = vld [vmem:[#allocation10 + $0x3b0] sm:$0xff]
        %v3846 = vld [vmem:[#allocation10 + $0x3b8] sm:$0xff]
        %v3847 = vld [vmem:[#allocation10 + $0x3c0] sm:$0xff]
        %v3848 = vld [vmem:[#allocation10 + $0x3c8] sm:$0xff]
        %v3849 = vld [vmem:[#allocation10 + $0x3d0] sm:$0xff]
        %v3850 = vld [vmem:[#allocation10 + $0x3d8] sm:$0xff]
        %v3851 = vld [vmem:[#allocation10 + $0x3e0] sm:$0xff]
        %v3852 = vld [vmem:[#allocation10 + $0x3e8] sm:$0xff]
        %v3853 = vld [vmem:[#allocation10 + $0x3f0] sm:$0xff]
        %v3854 = vld [vmem:[#allocation10 + $0x3f8] sm:$0xff]
        %v3855 = vld [vmem:[#allocation12] sm:$0xf]
        %v3857 = vperm.slane %v3855, 0
        %v3858 = vperm.slane %v3855, 1
        %v3859 = vperm.slane %v3855, 2
        %v3860 = vperm.slane %v3855, 3
        %v3993 = vunpack.c.l.b16 %v3727
        %v3994 = vunpack.c.h.b16 %v3727
        %v3995 = vunpack.c.l.b16 %v3728
        %v3996 = vunpack.c.h.b16 %v3728
        %v3997 = vunpack.c.l.b16 %v3729
        %v3998 = vunpack.c.h.b16 %v3729
        %v3999 = vunpack.c.l.b16 %v3730
        %v4000 = vunpack.c.h.b16 %v3730
        %v4001 = vunpack.c.l.b16 %v3731
        %v4002 = vunpack.c.h.b16 %v3731
        %v4003 = vunpack.c.l.b16 %v3732
        %v4004 = vunpack.c.h.b16 %v3732
        %v4005 = vunpack.c.l.b16 %v3733
        %v4006 = vunpack.c.h.b16 %v3733
        %v4007 = vunpack.c.l.b16 %v3734
        %v4008 = vunpack.c.h.b16 %v3734
        %v4009 = vunpack.c.l.b16 %v3735
        %v4010 = vunpack.c.h.b16 %v3735
        %v4011 = vunpack.c.l.b16 %v3736
        %v4012 = vunpack.c.h.b16 %v3736
        %v4013 = vunpack.c.l.b16 %v3737
        %v4014 = vunpack.c.h.b16 %v3737
        %v4015 = vunpack.c.l.b16 %v3738
        %v4016 = vunpack.c.h.b16 %v3738
        %v4017 = vunpack.c.l.b16 %v3739
        %v4018 = vunpack.c.h.b16 %v3739
        %v4019 = vunpack.c.l.b16 %v3740
        %v4020 = vunpack.c.h.b16 %v3740
        %v4021 = vunpack.c.l.b16 %v3741
        %v4022 = vunpack.c.h.b16 %v3741
        %v4023 = vunpack.c.l.b16 %v3742
        %v4024 = vunpack.c.h.b16 %v3742
        %v4025 = vunpack.c.l.b16 %v3743
        %v4026 = vunpack.c.h.b16 %v3743
        %v4027 = vunpack.c.l.b16 %v3744
        %v4028 = vunpack.c.h.b16 %v3744
        %v4029 = vunpack.c.l.b16 %v3745
        %v4030 = vunpack.c.h.b16 %v3745
        %v4031 = vunpack.c.l.b16 %v3746
        %v4032 = vunpack.c.h.b16 %v3746
        %v4033 = vunpack.c.l.b16 %v3747
        %v4034 = vunpack.c.h.b16 %v3747
        %v4035 = vunpack.c.l.b16 %v3748
        %v4036 = vunpack.c.h.b16 %v3748
        %v4037 = vunpack.c.l.b16 %v3749
        %v4038 = vunpack.c.h.b16 %v3749
        %v4039 = vunpack.c.l.b16 %v3750
        %v4040 = vunpack.c.h.b16 %v3750
        %v4041 = vunpack.c.l.b16 %v3751
        %v4042 = vunpack.c.h.b16 %v3751
        %v4043 = vunpack.c.l.b16 %v3752
        %v4044 = vunpack.c.h.b16 %v3752
        %v4045 = vunpack.c.l.b16 %v3753
        %v4046 = vunpack.c.h.b16 %v3753
        %v4047 = vunpack.c.l.b16 %v3754
        %v4048 = vunpack.c.h.b16 %v3754
        %v4049 = vunpack.c.l.b16 %v3755
        %v4050 = vunpack.c.h.b16 %v3755
        %v4051 = vunpack.c.l.b16 %v3756
        %v4052 = vunpack.c.h.b16 %v3756
        %v4053 = vunpack.c.l.b16 %v3757
        %v4054 = vunpack.c.h.b16 %v3757
        %v4055 = vunpack.c.l.b16 %v3758
        %v4056 = vunpack.c.h.b16 %v3758
        %v4057 = vunpack.c.l.b16 %v3759
        %v4058 = vunpack.c.h.b16 %v3759
        %v4059 = vunpack.c.l.b16 %v3760
        %v4060 = vunpack.c.h.b16 %v3760
        %v4061 = vunpack.c.l.b16 %v3761
        %v4062 = vunpack.c.h.b16 %v3761
        %v4063 = vunpack.c.l.b16 %v3762
        %v4064 = vunpack.c.h.b16 %v3762
        %v4065 = vunpack.c.l.b16 %v3763
        %v4066 = vunpack.c.h.b16 %v3763
        %v4067 = vunpack.c.l.b16 %v3764
        %v4068 = vunpack.c.h.b16 %v3764
        %v4069 = vunpack.c.l.b16 %v3765
        %v4070 = vunpack.c.h.b16 %v3765
        %v4071 = vunpack.c.l.b16 %v3766
        %v4072 = vunpack.c.h.b16 %v3766
        %v4073 = vunpack.c.l.b16 %v3767
        %v4074 = vunpack.c.h.b16 %v3767
        %v4075 = vunpack.c.l.b16 %v3768
        %v4076 = vunpack.c.h.b16 %v3768
        %v4077 = vunpack.c.l.b16 %v3769
        %v4078 = vunpack.c.h.b16 %v3769
        %v4079 = vunpack.c.l.b16 %v3770
        %v4080 = vunpack.c.h.b16 %v3770
        %v4081 = vunpack.c.l.b16 %v3771
        %v4082 = vunpack.c.h.b16 %v3771
        %v4083 = vunpack.c.l.b16 %v3772
        %v4084 = vunpack.c.h.b16 %v3772
        %v4085 = vunpack.c.l.b16 %v3773
        %v4086 = vunpack.c.h.b16 %v3773
        %v4087 = vunpack.c.l.b16 %v3774
        %v4088 = vunpack.c.h.b16 %v3774
        %v4089 = vunpack.c.l.b16 %v3775
        %v4090 = vunpack.c.h.b16 %v3775
        %v4091 = vunpack.c.l.b16 %v3776
        %v4092 = vunpack.c.h.b16 %v3776
        %v4093 = vunpack.c.l.b16 %v3777
        %v4094 = vunpack.c.h.b16 %v3777
        %v4095 = vunpack.c.l.b16 %v3778
        %v4096 = vunpack.c.h.b16 %v3778
        %v4097 = vunpack.c.l.b16 %v3779
        %v4098 = vunpack.c.h.b16 %v3779
        %v4099 = vunpack.c.l.b16 %v3780
        %v4100 = vunpack.c.h.b16 %v3780
        %v4101 = vunpack.c.l.b16 %v3781
        %v4102 = vunpack.c.h.b16 %v3781
        %v4103 = vunpack.c.l.b16 %v3782
        %v4104 = vunpack.c.h.b16 %v3782
        %v4105 = vunpack.c.l.b16 %v3783
        %v4106 = vunpack.c.h.b16 %v3783
        %v4107 = vunpack.c.l.b16 %v3784
        %v4108 = vunpack.c.h.b16 %v3784
        %v4109 = vunpack.c.l.b16 %v3785
        %v4110 = vunpack.c.h.b16 %v3785
        %v4111 = vunpack.c.l.b16 %v3786
        %v4112 = vunpack.c.h.b16 %v3786
        %v4113 = vunpack.c.l.b16 %v3787
        %v4114 = vunpack.c.h.b16 %v3787
        %v4115 = vunpack.c.l.b16 %v3788
        %v4116 = vunpack.c.h.b16 %v3788
        %v4117 = vunpack.c.l.b16 %v3789
        %v4118 = vunpack.c.h.b16 %v3789
        %v4119 = vunpack.c.l.b16 %v3790
        %v4120 = vunpack.c.h.b16 %v3790
        %v4121 = vunpack.c.l.b16 %v3791
        %v4122 = vunpack.c.h.b16 %v3791
        %v4123 = vunpack.c.l.b16 %v3792
        %v4124 = vunpack.c.h.b16 %v3792
        %v4125 = vunpack.c.l.b16 %v3793
        %v4126 = vunpack.c.h.b16 %v3793
        %v4127 = vunpack.c.l.b16 %v3794
        %v4128 = vunpack.c.h.b16 %v3794
        %v4129 = vunpack.c.l.b16 %v3795
        %v4130 = vunpack.c.h.b16 %v3795
        %v4131 = vunpack.c.l.b16 %v3796
        %v4132 = vunpack.c.h.b16 %v3796
        %v4133 = vunpack.c.l.b16 %v3797
        %v4134 = vunpack.c.h.b16 %v3797
        %v4135 = vunpack.c.l.b16 %v3798
        %v4136 = vunpack.c.h.b16 %v3798
        %v4137 = vunpack.c.l.b16 %v3799
        %v4138 = vunpack.c.h.b16 %v3799
        %v4139 = vunpack.c.l.b16 %v3800
        %v4140 = vunpack.c.h.b16 %v3800
        %v4141 = vunpack.c.l.b16 %v3801
        %v4142 = vunpack.c.h.b16 %v3801
        %v4143 = vunpack.c.l.b16 %v3802
        %v4144 = vunpack.c.h.b16 %v3802
        %v4145 = vunpack.c.l.b16 %v3803
        %v4146 = vunpack.c.h.b16 %v3803
        %v4147 = vunpack.c.l.b16 %v3804
        %v4148 = vunpack.c.h.b16 %v3804
        %v4149 = vunpack.c.l.b16 %v3805
        %v4150 = vunpack.c.h.b16 %v3805
        %v4151 = vunpack.c.l.b16 %v3806
        %v4152 = vunpack.c.h.b16 %v3806
        %v4153 = vunpack.c.l.b16 %v3807
        %v4154 = vunpack.c.h.b16 %v3807
        %v4155 = vunpack.c.l.b16 %v3808
        %v4156 = vunpack.c.h.b16 %v3808
        %v4157 = vunpack.c.l.b16 %v3809
        %v4158 = vunpack.c.h.b16 %v3809
        %v4159 = vunpack.c.l.b16 %v3810
        %v4160 = vunpack.c.h.b16 %v3810
        %v4161 = vunpack.c.l.b16 %v3811
        %v4162 = vunpack.c.h.b16 %v3811
        %v4163 = vunpack.c.l.b16 %v3812
        %v4164 = vunpack.c.h.b16 %v3812
        %v4165 = vunpack.c.l.b16 %v3813
        %v4166 = vunpack.c.h.b16 %v3813
        %v4167 = vunpack.c.l.b16 %v3814
        %v4168 = vunpack.c.h.b16 %v3814
        %v4169 = vunpack.c.l.b16 %v3815
        %v4170 = vunpack.c.h.b16 %v3815
        %v4171 = vunpack.c.l.b16 %v3816
        %v4172 = vunpack.c.h.b16 %v3816
        %v4173 = vunpack.c.l.b16 %v3817
        %v4174 = vunpack.c.h.b16 %v3817
        %v4175 = vunpack.c.l.b16 %v3818
        %v4176 = vunpack.c.h.b16 %v3818
        %v4177 = vunpack.c.l.b16 %v3819
        %v4178 = vunpack.c.h.b16 %v3819
        %v4179 = vunpack.c.l.b16 %v3820
        %v4180 = vunpack.c.h.b16 %v3820
        %v4181 = vunpack.c.l.b16 %v3821
        %v4182 = vunpack.c.h.b16 %v3821
        %v4183 = vunpack.c.l.b16 %v3822
        %v4184 = vunpack.c.h.b16 %v3822
        %v4185 = vunpack.c.l.b16 %v3823
        %v4186 = vunpack.c.h.b16 %v3823
        %v4187 = vunpack.c.l.b16 %v3824
        %v4188 = vunpack.c.h.b16 %v3824
        %v4189 = vunpack.c.l.b16 %v3825
        %v4190 = vunpack.c.h.b16 %v3825
        %v4191 = vunpack.c.l.b16 %v3826
        %v4192 = vunpack.c.h.b16 %v3826
        %v4193 = vunpack.c.l.b16 %v3827
        %v4194 = vunpack.c.h.b16 %v3827
        %v4195 = vunpack.c.l.b16 %v3828
        %v4196 = vunpack.c.h.b16 %v3828
        %v4197 = vunpack.c.l.b16 %v3829
        %v4198 = vunpack.c.h.b16 %v3829
        %v4199 = vunpack.c.l.b16 %v3830
        %v4200 = vunpack.c.h.b16 %v3830
        %v4201 = vunpack.c.l.b16 %v3831
        %v4202 = vunpack.c.h.b16 %v3831
        %v4203 = vunpack.c.l.b16 %v3832
        %v4204 = vunpack.c.h.b16 %v3832
        %v4205 = vunpack.c.l.b16 %v3833
        %v4206 = vunpack.c.h.b16 %v3833
        %v4207 = vunpack.c.l.b16 %v3834
        %v4208 = vunpack.c.h.b16 %v3834
        %v4209 = vunpack.c.l.b16 %v3835
        %v4210 = vunpack.c.h.b16 %v3835
        %v4211 = vunpack.c.l.b16 %v3836
        %v4212 = vunpack.c.h.b16 %v3836
        %v4213 = vunpack.c.l.b16 %v3837
        %v4214 = vunpack.c.h.b16 %v3837
        %v4215 = vunpack.c.l.b16 %v3838
        %v4216 = vunpack.c.h.b16 %v3838
        %v4217 = vunpack.c.l.b16 %v3839
        %v4218 = vunpack.c.h.b16 %v3839
        %v4219 = vunpack.c.l.b16 %v3840
        %v4220 = vunpack.c.h.b16 %v3840
        %v4221 = vunpack.c.l.b16 %v3841
        %v4222 = vunpack.c.h.b16 %v3841
        %v4223 = vunpack.c.l.b16 %v3842
        %v4224 = vunpack.c.h.b16 %v3842
        %v4225 = vunpack.c.l.b16 %v3843
        %v4226 = vunpack.c.h.b16 %v3843
        %v4227 = vunpack.c.l.b16 %v3844
        %v4228 = vunpack.c.h.b16 %v3844
        %v4229 = vunpack.c.l.b16 %v3845
        %v4230 = vunpack.c.h.b16 %v3845
        %v4231 = vunpack.c.l.b16 %v3846
        %v4232 = vunpack.c.h.b16 %v3846
        %v4233 = vunpack.c.l.b16 %v3847
        %v4234 = vunpack.c.h.b16 %v3847
        %v4235 = vunpack.c.l.b16 %v3848
        %v4236 = vunpack.c.h.b16 %v3848
        %v4237 = vunpack.c.l.b16 %v3849
        %v4238 = vunpack.c.h.b16 %v3849
        %v4239 = vunpack.c.l.b16 %v3850
        %v4240 = vunpack.c.h.b16 %v3850
        %v4241 = vunpack.c.l.b16 %v3851
        %v4242 = vunpack.c.h.b16 %v3851
        %v4243 = vunpack.c.l.b16 %v3852
        %v4244 = vunpack.c.h.b16 %v3852
        %v4245 = vunpack.c.l.b16 %v3853
        %v4246 = vunpack.c.h.b16 %v3853
        %v4247 = vunpack.c.l.b16 %v3854
        %v4248 = vunpack.c.h.b16 %v3854
        %v4249 = vpack.c.b16 %v3997, %v3993
        %v4250 = vpack.c.b16 %v3998, %v3994
        %v4251 = vpack.c.b16 %v3999, %v3995
        %v4252 = vpack.c.b16 %v4000, %v3996
        %v4253 = vpack.c.b16 %v4005, %v4001
        %v4254 = vpack.c.b16 %v4006, %v4002
        %v4255 = vpack.c.b16 %v4007, %v4003
        %v4256 = vpack.c.b16 %v4008, %v4004
        %v4257 = vpack.c.b16 %v4013, %v4009
        %v4258 = vpack.c.b16 %v4014, %v4010
        %v4259 = vpack.c.b16 %v4015, %v4011
        %v4260 = vpack.c.b16 %v4016, %v4012
        %v4261 = vpack.c.b16 %v4021, %v4017
        %v4262 = vpack.c.b16 %v4022, %v4018
        %v4263 = vpack.c.b16 %v4023, %v4019
        %v4264 = vpack.c.b16 %v4024, %v4020
        %v4265 = vpack.c.b16 %v4029, %v4025
        %v4266 = vpack.c.b16 %v4030, %v4026
        %v4267 = vpack.c.b16 %v4031, %v4027
        %v4268 = vpack.c.b16 %v4032, %v4028
        %v4269 = vpack.c.b16 %v4037, %v4033
        %v4270 = vpack.c.b16 %v4038, %v4034
        %v4271 = vpack.c.b16 %v4039, %v4035
        %v4272 = vpack.c.b16 %v4040, %v4036
        %v4273 = vpack.c.b16 %v4045, %v4041
        %v4274 = vpack.c.b16 %v4046, %v4042
        %v4275 = vpack.c.b16 %v4047, %v4043
        %v4276 = vpack.c.b16 %v4048, %v4044
        %v4277 = vpack.c.b16 %v4053, %v4049
        %v4278 = vpack.c.b16 %v4054, %v4050
        %v4279 = vpack.c.b16 %v4055, %v4051
        %v4280 = vpack.c.b16 %v4056, %v4052
        %v4281 = vpack.c.b16 %v4061, %v4057
        %v4282 = vpack.c.b16 %v4062, %v4058
        %v4283 = vpack.c.b16 %v4063, %v4059
        %v4284 = vpack.c.b16 %v4064, %v4060
        %v4285 = vpack.c.b16 %v4069, %v4065
        %v4286 = vpack.c.b16 %v4070, %v4066
        %v4287 = vpack.c.b16 %v4071, %v4067
        %v4288 = vpack.c.b16 %v4072, %v4068
        %v4289 = vpack.c.b16 %v4077, %v4073
        %v4290 = vpack.c.b16 %v4078, %v4074
        %v4291 = vpack.c.b16 %v4079, %v4075
        %v4292 = vpack.c.b16 %v4080, %v4076
        %v4293 = vpack.c.b16 %v4085, %v4081
        %v4294 = vpack.c.b16 %v4086, %v4082
        %v4295 = vpack.c.b16 %v4087, %v4083
        %v4296 = vpack.c.b16 %v4088, %v4084
        %v4297 = vpack.c.b16 %v4093, %v4089
        %v4298 = vpack.c.b16 %v4094, %v4090
        %v4299 = vpack.c.b16 %v4095, %v4091
        %v4300 = vpack.c.b16 %v4096, %v4092
        %v4301 = vpack.c.b16 %v4101, %v4097
        %v4302 = vpack.c.b16 %v4102, %v4098
        %v4303 = vpack.c.b16 %v4103, %v4099
        %v4304 = vpack.c.b16 %v4104, %v4100
        %v4305 = vpack.c.b16 %v4109, %v4105
        %v4306 = vpack.c.b16 %v4110, %v4106
        %v4307 = vpack.c.b16 %v4111, %v4107
        %v4308 = vpack.c.b16 %v4112, %v4108
        %v4309 = vpack.c.b16 %v4117, %v4113
        %v4310 = vpack.c.b16 %v4118, %v4114
        %v4311 = vpack.c.b16 %v4119, %v4115
        %v4312 = vpack.c.b16 %v4120, %v4116
        %v4313 = vpack.c.b16 %v4125, %v4121
        %v4314 = vpack.c.b16 %v4126, %v4122
        %v4315 = vpack.c.b16 %v4127, %v4123
        %v4316 = vpack.c.b16 %v4128, %v4124
        %v4317 = vpack.c.b16 %v4133, %v4129
        %v4318 = vpack.c.b16 %v4134, %v4130
        %v4319 = vpack.c.b16 %v4135, %v4131
        %v4320 = vpack.c.b16 %v4136, %v4132
        %v4321 = vpack.c.b16 %v4141, %v4137
        %v4322 = vpack.c.b16 %v4142, %v4138
        %v4323 = vpack.c.b16 %v4143, %v4139
        %v4324 = vpack.c.b16 %v4144, %v4140
        %v4325 = vpack.c.b16 %v4149, %v4145
        %v4326 = vpack.c.b16 %v4150, %v4146
        %v4327 = vpack.c.b16 %v4151, %v4147
        %v4328 = vpack.c.b16 %v4152, %v4148
        %v4329 = vpack.c.b16 %v4157, %v4153
        %v4330 = vpack.c.b16 %v4158, %v4154
        %v4331 = vpack.c.b16 %v4159, %v4155
        %v4332 = vpack.c.b16 %v4160, %v4156
        %v4333 = vpack.c.b16 %v4165, %v4161
        %v4334 = vpack.c.b16 %v4166, %v4162
        %v4335 = vpack.c.b16 %v4167, %v4163
        %v4336 = vpack.c.b16 %v4168, %v4164
        %v4337 = vpack.c.b16 %v4173, %v4169
        %v4338 = vpack.c.b16 %v4174, %v4170
        %v4339 = vpack.c.b16 %v4175, %v4171
        %v4340 = vpack.c.b16 %v4176, %v4172
        %v4341 = vpack.c.b16 %v4181, %v4177
        %v4342 = vpack.c.b16 %v4182, %v4178
        %v4343 = vpack.c.b16 %v4183, %v4179
        %v4344 = vpack.c.b16 %v4184, %v4180
        %v4345 = vpack.c.b16 %v4189, %v4185
        %v4346 = vpack.c.b16 %v4190, %v4186
        %v4347 = vpack.c.b16 %v4191, %v4187
        %v4348 = vpack.c.b16 %v4192, %v4188
        %v4349 = vpack.c.b16 %v4197, %v4193
        %v4350 = vpack.c.b16 %v4198, %v4194
        %v4351 = vpack.c.b16 %v4199, %v4195
        %v4352 = vpack.c.b16 %v4200, %v4196
        %v4353 = vpack.c.b16 %v4205, %v4201
        %v4354 = vpack.c.b16 %v4206, %v4202
        %v4355 = vpack.c.b16 %v4207, %v4203
        %v4356 = vpack.c.b16 %v4208, %v4204
        %v4357 = vpack.c.b16 %v4213, %v4209
        %v4358 = vpack.c.b16 %v4214, %v4210
        %v4359 = vpack.c.b16 %v4215, %v4211
        %v4360 = vpack.c.b16 %v4216, %v4212
        %v4361 = vpack.c.b16 %v4221, %v4217
        %v4362 = vpack.c.b16 %v4222, %v4218
        %v4363 = vpack.c.b16 %v4223, %v4219
        %v4364 = vpack.c.b16 %v4224, %v4220
        %v4365 = vpack.c.b16 %v4229, %v4225
        %v4366 = vpack.c.b16 %v4230, %v4226
        %v4367 = vpack.c.b16 %v4231, %v4227
        %v4368 = vpack.c.b16 %v4232, %v4228
        %v4369 = vpack.c.b16 %v4237, %v4233
        %v4370 = vpack.c.b16 %v4238, %v4234
        %v4371 = vpack.c.b16 %v4239, %v4235
        %v4372 = vpack.c.b16 %v4240, %v4236
        %v4373 = vpack.c.b16 %v4245, %v4241
        %v4374 = vpack.c.b16 %v4246, %v4242
        %v4375 = vpack.c.b16 %v4247, %v4243
        %v4376 = vpack.c.b16 %v4248, %v4244
        %4505 = vmatpush.bf16.msra.mxu0 %v4277
        %4506 = vmatpush.bf16.msra.mxu0 %v4273
        %4507 = vmatpush.bf16.msra.mxu0 %v4269
        %4508 = vmatpush.bf16.msra.mxu0 %v4265
        %4509 = vmatpush.bf16.msra.mxu0 %v4261
        %4510 = vmatpush.bf16.msra.mxu0 %v4257
        %4511 = vmatpush.bf16.msra.mxu0 %v4253
        %4512 = vmatpush.bf16.msra.mxu0 %v4249
        %4513 = vmatmul.bf16.gmra.mxu0 %v3723
        %v4514 = vpop.f32.mrf.mxu0
        %v4515 = vadd.f32 %v3857, %v4514
        %v4516 = vpop.f32.mrf.mxu0
        %v4517 = vadd.f32 %v3857, %v4516
        %4518 = vdwg.mxu0
        %4519 = vmatpush.bf16.msra.mxu0 %v4309
        %4520 = vmatpush.bf16.msra.mxu0 %v4305
        %4521 = vmatpush.bf16.msra.mxu0 %v4301
        %4522 = vmatpush.bf16.msra.mxu0 %v4297
        %4523 = vmatpush.bf16.msra.mxu0 %v4293
        %4524 = vmatpush.bf16.msra.mxu0 %v4289
        %4525 = vmatpush.bf16.msra.mxu0 %v4285
        %4526 = vmatpush.bf16.msra.mxu0 %v4281
        %4527 = vmatmul.bf16.gmra.mxu0 %v3724
        %v4528 = vpop.f32.mrf.mxu0
        %v4529 = vadd.f32 %v4515, %v4528
        %v4530 = vpop.f32.mrf.mxu0
        %v4531 = vadd.f32 %v4517, %v4530
        %4532 = vdwg.mxu0
        %4533 = vmatpush.bf16.msra.mxu0 %v4341
        %4534 = vmatpush.bf16.msra.mxu0 %v4337
        %4535 = vmatpush.bf16.msra.mxu0 %v4333
        %4536 = vmatpush.bf16.msra.mxu0 %v4329
        %4537 = vmatpush.bf16.msra.mxu0 %v4325
        %4538 = vmatpush.bf16.msra.mxu0 %v4321
        %4539 = vmatpush.bf16.msra.mxu0 %v4317
        %4540 = vmatpush.bf16.msra.mxu0 %v4313
        %4541 = vmatmul.bf16.gmra.mxu0 %v3725
        %v4542 = vpop.f32.mrf.mxu0
        %v4543 = vadd.f32 %v4529, %v4542
        %v4544 = vpop.f32.mrf.mxu0
        %v4545 = vadd.f32 %v4531, %v4544
        %4546 = vdwg.mxu0
        %4547 = vmatpush.bf16.msra.mxu0 %v4373
        %4548 = vmatpush.bf16.msra.mxu0 %v4369
        %4549 = vmatpush.bf16.msra.mxu0 %v4365
        %4550 = vmatpush.bf16.msra.mxu0 %v4361
        %4551 = vmatpush.bf16.msra.mxu0 %v4357
        %4552 = vmatpush.bf16.msra.mxu0 %v4353
        %4553 = vmatpush.bf16.msra.mxu0 %v4349
        %4554 = vmatpush.bf16.msra.mxu0 %v4345
        %4555 = vmatmul.bf16.gmra.mxu0 %v3726
        %v4556 = vpop.f32.mrf.mxu0
        %v4557 = vadd.f32 %v4543, %v4556
        %v4558 = vpop.f32.mrf.mxu0
        %v4559 = vadd.f32 %v4545, %v4558
        %4560 = vdwg.mxu0
        %4561 = vmatpush.bf16.msra.mxu0 %v4278
        %4562 = vmatpush.bf16.msra.mxu0 %v4274
        %4563 = vmatpush.bf16.msra.mxu0 %v4270
        %4564 = vmatpush.bf16.msra.mxu0 %v4266
        %4565 = vmatpush.bf16.msra.mxu0 %v4262
        %4566 = vmatpush.bf16.msra.mxu0 %v4258
        %4567 = vmatpush.bf16.msra.mxu0 %v4254
        %4568 = vmatpush.bf16.msra.mxu0 %v4250
        %4569 = vmatmul.bf16.gmra.mxu0 %v3723
        %v4570 = vpop.f32.mrf.mxu0
        %v4571 = vadd.f32 %v3858, %v4570
        %v4572 = vpop.f32.mrf.mxu0
        %v4573 = vadd.f32 %v3858, %v4572
        %4574 = vdwg.mxu0
        %4575 = vmatpush.bf16.msra.mxu0 %v4310
        %4576 = vmatpush.bf16.msra.mxu0 %v4306
        %4577 = vmatpush.bf16.msra.mxu0 %v4302
        %4578 = vmatpush.bf16.msra.mxu0 %v4298
        %4579 = vmatpush.bf16.msra.mxu0 %v4294
        %4580 = vmatpush.bf16.msra.mxu0 %v4290
        %4581 = vmatpush.bf16.msra.mxu0 %v4286
        %4582 = vmatpush.bf16.msra.mxu0 %v4282
        %4583 = vmatmul.bf16.gmra.mxu0 %v3724
        %v4584 = vpop.f32.mrf.mxu0
        %v4585 = vadd.f32 %v4571, %v4584
        %v4586 = vpop.f32.mrf.mxu0
        %v4587 = vadd.f32 %v4573, %v4586
        %4588 = vdwg.mxu0
        %4589 = vmatpush.bf16.msra.mxu0 %v4342
        %4590 = vmatpush.bf16.msra.mxu0 %v4338
        %4591 = vmatpush.bf16.msra.mxu0 %v4334
        %4592 = vmatpush.bf16.msra.mxu0 %v4330
        %4593 = vmatpush.bf16.msra.mxu0 %v4326
        %4594 = vmatpush.bf16.msra.mxu0 %v4322
        %4595 = vmatpush.bf16.msra.mxu0 %v4318
        %4596 = vmatpush.bf16.msra.mxu0 %v4314
        %4597 = vmatmul.bf16.gmra.mxu0 %v3725
        %v4598 = vpop.f32.mrf.mxu0
        %v4599 = vadd.f32 %v4585, %v4598
        %v4600 = vpop.f32.mrf.mxu0
        %v4601 = vadd.f32 %v4587, %v4600
        %4602 = vdwg.mxu0
        %4603 = vmatpush.bf16.msra.mxu0 %v4374
        %4604 = vmatpush.bf16.msra.mxu0 %v4370
        %4605 = vmatpush.bf16.msra.mxu0 %v4366
        %4606 = vmatpush.bf16.msra.mxu0 %v4362
        %4607 = vmatpush.bf16.msra.mxu0 %v4358
        %4608 = vmatpush.bf16.msra.mxu0 %v4354
        %4609 = vmatpush.bf16.msra.mxu0 %v4350
        %4610 = vmatpush.bf16.msra.mxu0 %v4346
        %4611 = vmatmul.bf16.gmra.mxu0 %v3726
        %v4612 = vpop.f32.mrf.mxu0
        %v4613 = vadd.f32 %v4599, %v4612
        %v4614 = vpop.f32.mrf.mxu0
        %v4615 = vadd.f32 %v4601, %v4614
        %4616 = vdwg.mxu0
        %4617 = vmatpush.bf16.msra.mxu0 %v4279
        %4618 = vmatpush.bf16.msra.mxu0 %v4275
        %4619 = vmatpush.bf16.msra.mxu0 %v4271
        %4620 = vmatpush.bf16.msra.mxu0 %v4267
        %4621 = vmatpush.bf16.msra.mxu0 %v4263
        %4622 = vmatpush.bf16.msra.mxu0 %v4259
        %4623 = vmatpush.bf16.msra.mxu0 %v4255
        %4624 = vmatpush.bf16.msra.mxu0 %v4251
        %4625 = vmatmul.bf16.gmra.mxu0 %v3723
        %v4626 = vpop.f32.mrf.mxu0
        %v4627 = vadd.f32 %v3859, %v4626
        %v4628 = vpop.f32.mrf.mxu0
        %v4629 = vadd.f32 %v3859, %v4628
        %4630 = vdwg.mxu0
        %4631 = vmatpush.bf16.msra.mxu0 %v4311
        %4632 = vmatpush.bf16.msra.mxu0 %v4307
        %4633 = vmatpush.bf16.msra.mxu0 %v4303
        %4634 = vmatpush.bf16.msra.mxu0 %v4299
        %4635 = vmatpush.bf16.msra.mxu0 %v4295
        %4636 = vmatpush.bf16.msra.mxu0 %v4291
        %4637 = vmatpush.bf16.msra.mxu0 %v4287
        %4638 = vmatpush.bf16.msra.mxu0 %v4283
        %4639 = vmatmul.bf16.gmra.mxu0 %v3724
        %v4640 = vpop.f32.mrf.mxu0
        %v4641 = vadd.f32 %v4627, %v4640
        %v4642 = vpop.f32.mrf.mxu0
        %v4643 = vadd.f32 %v4629, %v4642
        %4644 = vdwg.mxu0
        %4645 = vmatpush.bf16.msra.mxu0 %v4343
        %4646 = vmatpush.bf16.msra.mxu0 %v4339
        %4647 = vmatpush.bf16.msra.mxu0 %v4335
        %4648 = vmatpush.bf16.msra.mxu0 %v4331
        %4649 = vmatpush.bf16.msra.mxu0 %v4327
        %4650 = vmatpush.bf16.msra.mxu0 %v4323
        %4651 = vmatpush.bf16.msra.mxu0 %v4319
        %4652 = vmatpush.bf16.msra.mxu0 %v4315
        %4653 = vmatmul.bf16.gmra.mxu0 %v3725
        %v4654 = vpop.f32.mrf.mxu0
        %v4655 = vadd.f32 %v4641, %v4654
        %v4656 = vpop.f32.mrf.mxu0
        %v4657 = vadd.f32 %v4643, %v4656
        %4658 = vdwg.mxu0
        %4659 = vmatpush.bf16.msra.mxu0 %v4375
        %4660 = vmatpush.bf16.msra.mxu0 %v4371
        %4661 = vmatpush.bf16.msra.mxu0 %v4367
        %4662 = vmatpush.bf16.msra.mxu0 %v4363
        %4663 = vmatpush.bf16.msra.mxu0 %v4359
        %4664 = vmatpush.bf16.msra.mxu0 %v4355
        %4665 = vmatpush.bf16.msra.mxu0 %v4351
        %4666 = vmatpush.bf16.msra.mxu0 %v4347
        %4667 = vmatmul.bf16.gmra.mxu0 %v3726
        %v4668 = vpop.f32.mrf.mxu0
        %v4669 = vadd.f32 %v4655, %v4668
        %v4670 = vpop.f32.mrf.mxu0
        %v4671 = vadd.f32 %v4657, %v4670
        %4672 = vdwg.mxu0
        %4673 = vmatpush.bf16.msra.mxu0 %v4280
        %4674 = vmatpush.bf16.msra.mxu0 %v4276
        %4675 = vmatpush.bf16.msra.mxu0 %v4272
        %4676 = vmatpush.bf16.msra.mxu0 %v4268
        %4677 = vmatpush.bf16.msra.mxu0 %v4264
        %4678 = vmatpush.bf16.msra.mxu0 %v4260
        %4679 = vmatpush.bf16.msra.mxu0 %v4256
        %4680 = vmatpush.bf16.msra.mxu0 %v4252
        %4681 = vmatmul.bf16.gmra.mxu0 %v3723
        %v4682 = vpop.f32.mrf.mxu0
        %v4683 = vadd.f32 %v3860, %v4682
        %v4684 = vpop.f32.mrf.mxu0
        %v4685 = vadd.f32 %v3860, %v4684
        %4686 = vdwg.mxu0
        %4687 = vmatpush.bf16.msra.mxu0 %v4312
        %4688 = vmatpush.bf16.msra.mxu0 %v4308
        %4689 = vmatpush.bf16.msra.mxu0 %v4304
        %4690 = vmatpush.bf16.msra.mxu0 %v4300
        %4691 = vmatpush.bf16.msra.mxu0 %v4296
        %4692 = vmatpush.bf16.msra.mxu0 %v4292
        %4693 = vmatpush.bf16.msra.mxu0 %v4288
        %4694 = vmatpush.bf16.msra.mxu0 %v4284
        %4695 = vmatmul.bf16.gmra.mxu0 %v3724
        %v4696 = vpop.f32.mrf.mxu0
        %v4697 = vadd.f32 %v4683, %v4696
        %v4698 = vpop.f32.mrf.mxu0
        %v4699 = vadd.f32 %v4685, %v4698
        %4700 = vdwg.mxu0
        %4701 = vmatpush.bf16.msra.mxu0 %v4344
        %4702 = vmatpush.bf16.msra.mxu0 %v4340
        %4703 = vmatpush.bf16.msra.mxu0 %v4336
        %4704 = vmatpush.bf16.msra.mxu0 %v4332
        %4705 = vmatpush.bf16.msra.mxu0 %v4328
        %4706 = vmatpush.bf16.msra.mxu0 %v4324
        %4707 = vmatpush.bf16.msra.mxu0 %v4320
        %4708 = vmatpush.bf16.msra.mxu0 %v4316
        %4709 = vmatmul.bf16.gmra.mxu0 %v3725
        %v4710 = vpop.f32.mrf.mxu0
        %v4711 = vadd.f32 %v4697, %v4710
        %v4712 = vpop.f32.mrf.mxu0
        %v4713 = vadd.f32 %v4699, %v4712
        %4714 = vdwg.mxu0
        %4715 = vmatpush.bf16.msra.mxu0 %v4376
        %4716 = vmatpush.bf16.msra.mxu0 %v4372
        %4717 = vmatpush.bf16.msra.mxu0 %v4368
        %4718 = vmatpush.bf16.msra.mxu0 %v4364
        %4719 = vmatpush.bf16.msra.mxu0 %v4360
        %4720 = vmatpush.bf16.msra.mxu0 %v4356
        %4721 = vmatpush.bf16.msra.mxu0 %v4352
        %4722 = vmatpush.bf16.msra.mxu0 %v4348
        %4723 = vmatmul.bf16.gmra.mxu0 %v3726
        %v4724 = vpop.f32.mrf.mxu0
        %v4725 = vadd.f32 %v4711, %v4724
        %v4726 = vpop.f32.mrf.mxu0
        %v4727 = vadd.f32 %v4713, %v4726
        %4728 = vdwg.mxu0
        %v4729 = vmax.f32 %v4557, 0.0
        %v4730 = vmax.f32 %v4613, 0.0
        %v4731 = vmax.f32 %v4669, 0.0
        %v4732 = vmax.f32 %v4725, 0.0
        %v4733 = vmax.f32 %v4559, 0.0
        %v4734 = vmax.f32 %v4615, 0.0
        %v4735 = vmax.f32 %v4671, 0.0
        %v4736 = vmax.f32 %v4727, 0.0
        %v4737 = vld [vmem:[#allocation13] sm:$0xff]
        %v4738 = vld [vmem:[#allocation13 + $0x8] sm:$0xff]
        %v4739 = vld [vmem:[#allocation13 + $0x10] sm:$0xff]
        %v4740 = vld [vmem:[#allocation13 + $0x18] sm:$0xff]
        %v4741 = vld [vmem:[#allocation13 + $0x20] sm:$0xff]
        %v4742 = vld [vmem:[#allocation13 + $0x28] sm:$0xff]
        %v4743 = vld [vmem:[#allocation13 + $0x30] sm:$0xff]
        %v4744 = vld [vmem:[#allocation13 + $0x38] sm:$0xff]
        %v4745 = vld [vmem:[#allocation13 + $0x40] sm:$0xff]
        %v4746 = vld [vmem:[#allocation13 + $0x48] sm:$0xff]
        %v4747 = vld [vmem:[#allocation13 + $0x50] sm:$0xff]
        %v4748 = vld [vmem:[#allocation13 + $0x58] sm:$0xff]
        %v4749 = vld [vmem:[#allocation13 + $0x60] sm:$0xff]
        %v4750 = vld [vmem:[#allocation13 + $0x68] sm:$0xff]
        %v4751 = vld [vmem:[#allocation13 + $0x70] sm:$0xff]
        %v4752 = vld [vmem:[#allocation13 + $0x78] sm:$0xff]
        %v4753 = vld [vmem:[#allocation13 + $0x80] sm:$0xff]
        %v4754 = vld [vmem:[#allocation13 + $0x88] sm:$0xff]
        %v4755 = vld [vmem:[#allocation13 + $0x90] sm:$0xff]
        %v4756 = vld [vmem:[#allocation13 + $0x98] sm:$0xff]
        %v4757 = vld [vmem:[#allocation13 + $0xa0] sm:$0xff]
        %v4758 = vld [vmem:[#allocation13 + $0xa8] sm:$0xff]
        %v4759 = vld [vmem:[#allocation13 + $0xb0] sm:$0xff]
        %v4760 = vld [vmem:[#allocation13 + $0xb8] sm:$0xff]
        %v4761 = vld [vmem:[#allocation13 + $0xc0] sm:$0xff]
        %v4762 = vld [vmem:[#allocation13 + $0xc8] sm:$0xff]
        %v4763 = vld [vmem:[#allocation13 + $0xd0] sm:$0xff]
        %v4764 = vld [vmem:[#allocation13 + $0xd8] sm:$0xff]
        %v4765 = vld [vmem:[#allocation13 + $0xe0] sm:$0xff]
        %v4766 = vld [vmem:[#allocation13 + $0xe8] sm:$0xff]
        %v4767 = vld [vmem:[#allocation13 + $0xf0] sm:$0xff]
        %v4768 = vld [vmem:[#allocation13 + $0xf8] sm:$0xff]
        %v4769 = vld [vmem:[#allocation13 + $0x100] sm:$0xff]
        %v4770 = vld [vmem:[#allocation13 + $0x108] sm:$0xff]
        %v4771 = vld [vmem:[#allocation13 + $0x110] sm:$0xff]
        %v4772 = vld [vmem:[#allocation13 + $0x118] sm:$0xff]
        %v4773 = vld [vmem:[#allocation13 + $0x120] sm:$0xff]
        %v4774 = vld [vmem:[#allocation13 + $0x128] sm:$0xff]
        %v4775 = vld [vmem:[#allocation13 + $0x130] sm:$0xff]
        %v4776 = vld [vmem:[#allocation13 + $0x138] sm:$0xff]
        %v4777 = vld [vmem:[#allocation13 + $0x140] sm:$0xff]
        %v4778 = vld [vmem:[#allocation13 + $0x148] sm:$0xff]
        %v4779 = vld [vmem:[#allocation13 + $0x150] sm:$0xff]
        %v4780 = vld [vmem:[#allocation13 + $0x158] sm:$0xff]
        %v4781 = vld [vmem:[#allocation13 + $0x160] sm:$0xff]
        %v4782 = vld [vmem:[#allocation13 + $0x168] sm:$0xff]
        %v4783 = vld [vmem:[#allocation13 + $0x170] sm:$0xff]
        %v4784 = vld [vmem:[#allocation13 + $0x178] sm:$0xff]
        %v4785 = vld [vmem:[#allocation13 + $0x180] sm:$0xff]
        %v4786 = vld [vmem:[#allocation13 + $0x188] sm:$0xff]
        %v4787 = vld [vmem:[#allocation13 + $0x190] sm:$0xff]
        %v4788 = vld [vmem:[#allocation13 + $0x198] sm:$0xff]
        %v4789 = vld [vmem:[#allocation13 + $0x1a0] sm:$0xff]
        %v4790 = vld [vmem:[#allocation13 + $0x1a8] sm:$0xff]
        %v4791 = vld [vmem:[#allocation13 + $0x1b0] sm:$0xff]
        %v4792 = vld [vmem:[#allocation13 + $0x1b8] sm:$0xff]
        %v4793 = vld [vmem:[#allocation13 + $0x1c0] sm:$0xff]
        %v4794 = vld [vmem:[#allocation13 + $0x1c8] sm:$0xff]
        %v4795 = vld [vmem:[#allocation13 + $0x1d0] sm:$0xff]
        %v4796 = vld [vmem:[#allocation13 + $0x1d8] sm:$0xff]
        %v4797 = vld [vmem:[#allocation13 + $0x1e0] sm:$0xff]
        %v4798 = vld [vmem:[#allocation13 + $0x1e8] sm:$0xff]
        %v4799 = vld [vmem:[#allocation13 + $0x1f0] sm:$0xff]
        %v4800 = vld [vmem:[#allocation13 + $0x1f8] sm:$0xff]
        %v4801 = vld [vmem:[%s12] sm:$0x1]
        %v4803 = vperm.slane %v4801, 0
        %4805 = vmatpush.msra.mxu0 %v4752
        %4806 = vmatpush.msra.mxu0 %v4751
        %4807 = vmatpush.msra.mxu0 %v4750
        %4808 = vmatpush.msra.mxu0 %v4749
        %4809 = vmatpush.msra.mxu0 %v4748
        %4810 = vmatpush.msra.mxu0 %v4747
        %4811 = vmatpush.msra.mxu0 %v4746
        %4812 = vmatpush.msra.mxu0 %v4745
        %4813 = vmatpush.msra.mxu0 %v4744
        %4814 = vmatpush.msra.mxu0 %v4743
        %4815 = vmatpush.msra.mxu0 %v4742
        %4816 = vmatpush.msra.mxu0 %v4741
        %4817 = vmatpush.msra.mxu0 %v4740
        %4818 = vmatpush.msra.mxu0 %v4739
        %4819 = vmatpush.msra.mxu0 %v4738
        %4820 = vmatpush.msra.mxu0 %v4737
        %4821 = vmatmul.f32.gmra.mxu0 %v4729
        %v4822 = vpop.f32.mrf.mxu0
        %v4823 = vadd.f32 %v4803, %v4822
        %4824 = vmatmul.f32.gmra.mxu0 %v4733
        %v4825 = vpop.f32.mrf.mxu0
        %v4826 = vadd.f32 %v4803, %v4825
        %4827 = vdwg.mxu0
        %4828 = vmatpush.msra.mxu0 %v4768
        %4829 = vmatpush.msra.mxu0 %v4767
        %4830 = vmatpush.msra.mxu0 %v4766
        %4831 = vmatpush.msra.mxu0 %v4765
        %4832 = vmatpush.msra.mxu0 %v4764
        %4833 = vmatpush.msra.mxu0 %v4763
        %4834 = vmatpush.msra.mxu0 %v4762
        %4835 = vmatpush.msra.mxu0 %v4761
        %4836 = vmatpush.msra.mxu0 %v4760
        %4837 = vmatpush.msra.mxu0 %v4759
        %4838 = vmatpush.msra.mxu0 %v4758
        %4839 = vmatpush.msra.mxu0 %v4757
        %4840 = vmatpush.msra.mxu0 %v4756
        %4841 = vmatpush.msra.mxu0 %v4755
        %4842 = vmatpush.msra.mxu0 %v4754
        %4843 = vmatpush.msra.mxu0 %v4753
        %4844 = vmatmul.f32.gmra.mxu0 %v4730
        %v4845 = vpop.f32.mrf.mxu0
        %v4846 = vadd.f32 %v4823, %v4845
        %4847 = vmatmul.f32.gmra.mxu0 %v4734
        %v4848 = vpop.f32.mrf.mxu0
        %v4849 = vadd.f32 %v4826, %v4848
        %4850 = vdwg.mxu0
        %4851 = vmatpush.msra.mxu0 %v4784
        %4852 = vmatpush.msra.mxu0 %v4783
        %4853 = vmatpush.msra.mxu0 %v4782
        %4854 = vmatpush.msra.mxu0 %v4781
        %4855 = vmatpush.msra.mxu0 %v4780
        %4856 = vmatpush.msra.mxu0 %v4779
        %4857 = vmatpush.msra.mxu0 %v4778
        %4858 = vmatpush.msra.mxu0 %v4777
        %4859 = vmatpush.msra.mxu0 %v4776
        %4860 = vmatpush.msra.mxu0 %v4775
        %4861 = vmatpush.msra.mxu0 %v4774
        %4862 = vmatpush.msra.mxu0 %v4773
        %4863 = vmatpush.msra.mxu0 %v4772
        %4864 = vmatpush.msra.mxu0 %v4771
        %4865 = vmatpush.msra.mxu0 %v4770
        %4866 = vmatpush.msra.mxu0 %v4769
        %4867 = vmatmul.f32.gmra.mxu0 %v4731
        %v4868 = vpop.f32.mrf.mxu0
        %v4869 = vadd.f32 %v4846, %v4868
        %4870 = vmatmul.f32.gmra.mxu0 %v4735
        %v4871 = vpop.f32.mrf.mxu0
        %v4872 = vadd.f32 %v4849, %v4871
        %4873 = vdwg.mxu0
        %4874 = vmatpush.msra.mxu0 %v4800
        %4875 = vmatpush.msra.mxu0 %v4799
        %4876 = vmatpush.msra.mxu0 %v4798
        %4877 = vmatpush.msra.mxu0 %v4797
        %4878 = vmatpush.msra.mxu0 %v4796
        %4879 = vmatpush.msra.mxu0 %v4795
        %4880 = vmatpush.msra.mxu0 %v4794
        %4881 = vmatpush.msra.mxu0 %v4793
        %4882 = vmatpush.msra.mxu0 %v4792
        %4883 = vmatpush.msra.mxu0 %v4791
        %4884 = vmatpush.msra.mxu0 %v4790
        %4885 = vmatpush.msra.mxu0 %v4789
        %4886 = vmatpush.msra.mxu0 %v4788
        %4887 = vmatpush.msra.mxu0 %v4787
        %4888 = vmatpush.msra.mxu0 %v4786
        %4889 = vmatpush.msra.mxu0 %v4785
        %4890 = vmatmul.f32.gmra.mxu0 %v4732
        %v4891 = vpop.f32.mrf.mxu0
        %v4892 = vadd.f32 %v4869, %v4891
        %4893 = vmatmul.f32.gmra.mxu0 %v4736
        %v4894 = vpop.f32.mrf.mxu0
        %v4895 = vadd.f32 %v4872, %v4894
        %4896 = vdwg.mxu0
        %4897 = vst [vmem:[%s569] sm:$0xff] %v4892
        %4898 = vst [vmem:[%s569 + $0x8] sm:$0xff] %v4895
        %s4899 = smul.u32 2, %s29
        %p4900 = scmp.lt.s32.totalorder %s4899, 3
        %s4901 = scalar_select %p4900, %s4899, 3
        %s4902 = smul.addr %s4901, 8
        %s4903 = scalar_lea.vmem %s13, %s4902
        // Predicated region
        $region105: #{qnetwork_forward.1} parent=71 // pred_check
          %p4904 = pneg %p325
        $region106: #{qnetwork_forward.1} parent=71 // pred_check_branch
          %4906 = sbr.rel (%p4904) target = $region108
        $region107: #{qnetwork_forward.1} parent=71 // pred_region
          %s4907 = smul.u32 2, %s29
        $region108: #{qnetwork_forward.1} parent=71 // pred_fallthru
          _
      $region72: #{qnetwork_forward.1} parent=5 // pred_fallthru
        _
      %p4908 = scmp.le.s32.totalorder 2, %s24
      // Predicated region
      $region109: #{qnetwork_forward.1} parent=5 // pred_check
        %p4909 = pneg %p4908
      $region110: #{qnetwork_forward.1} parent=5 // pred_check_branch
        %4911 = sbr.rel (%p4909) target = $region112
      $region111: #{qnetwork_forward.1} parent=5 // pred_region
        %s4912 = ssub.s32 %s24, 2
        // Predicated region
        $region113: #{qnetwork_forward.1} parent=111 // pred_check
          %p4913 = pneg %p331
        $region114: #{qnetwork_forward.1} parent=111 // pred_check_branch
          %4915 = sbr.rel (%p4913) target = $region116
        $region115: #{qnetwork_forward.1} parent=111 // pred_region
          %s4916 = smul.u32 2, %s30
          %p4917 = scmp.lt.s32.totalorder %s4916, 3
          %s4918 = scalar_select %p4917, %s4916, 3
          %s4919 = smul.addr %s4918, 8
          %s4920 = scalar_lea.vmem %s13, %s4919
        $region116: #{qnetwork_forward.1} parent=111 // pred_fallthru
          _
      $region112: #{qnetwork_forward.1} parent=5 // pred_fallthru
        _
    $region6: #{qnetwork_forward.1} parent=1 // loop_footer
      %s28 = sadd.s32 1, %s24
    $region7: #{qnetwork_forward.1} parent=1 // loop_footer_branch
      %23 = sbr.rel target = $region3
    $region8: #{qnetwork_forward.1} parent=1 // loop_exit
      _
    %4921 = vsyncpa [#allocation3], 1
    %s4922 = scalar_lea.sflag [#allocation3], 1
    %4923 = vsyncpa %s4922, 1
    %4924 = vsyncpa [#allocation5], 1
    %4925 = vsyncpa [#allocation8], 1
    %4926 = vsyncpa [#allocation11], 1
    %4927 = vsyncpa [#allocation14], 1

</llo_original>
